<compile_context>
chip_gen: v7x
topology: tpu7x:2x2x1
jax: 0.10.0
libtpu: 0.0.40
codegen_flags: <defaults>
</compile_context>

<pallas_src>
import jax
import jax.numpy as jnp
from jax.experimental import pallas as pl
from jax.experimental.pallas import tpu as pltpu


# ----------------------------------------------------------------------------
# Fused matching-attention + pooling kernel.
# One grid step = one stacked sequence-set (one option, or the question),
# whole batch in the block so weight matmuls see M = bs*seq rows.
# ----------------------------------------------------------------------------
def _matching_pool_kernel(A_ref, P_ref, GwT_ref, Gb_ref,
                          fca_w1T_ref, fca_w2T_ref, fca_b_ref,
                          fcp_w1T_ref, fcp_w2T_ref, fcp_b_ref,
                          w_sp_ref, w_sa_ref, out_ref):
    bs, A_len, l = A_ref.shape
    P_len = P_ref.shape[1]

    A = A_ref[...]                                    # (bs, A_len, l) f32
    P = P_ref[...]                                    # (bs, P_len, l) f32

    # --- G linear: fold (bs, A_len) into one M axis; bf16 operands, f32 acc.
    GA = (jnp.dot(A.reshape(bs * A_len, l).astype(jnp.bfloat16), GwT_ref[...],
                  preferred_element_type=jnp.float32)
          + Gb_ref[...]).reshape(bs, A_len, l)        # f32

    # --- attention bmm: W = P @ GA^T (contraction over hidden, no explicit .T)
    W = jnp.einsum("bpl,bal->bpa", P, GA,
                   preferred_element_type=jnp.float32)          # (bs, P_len, A_len)
    # softmax over the A_len axis (as in the reference), f32 path
    W = W - jnp.max(W, axis=-1, keepdims=True)
    Wexp = jnp.exp(W)
    W = Wexp * pl.reciprocal(jnp.sum(Wexp, axis=-1, keepdims=True), approx=True)

    MP = jnp.einsum("bpa,bal->bpl", W, GA,
                    preferred_element_type=jnp.float32)         # (bs, P_len, l)
    MA = jnp.einsum("bpa,bpl->bal", W, P,
                    preferred_element_type=jnp.float32)         # (bs, A_len, l)

    # --- SA = ReLU(cat(MA - GA, MA * GA) @ fca_w^T + b).  GA is the
    # G-transformed A: the PyTorch module overwrites A with self.G(A) before
    # the co-matching, so this matches the reference semantics.
    diff_a = (MA - GA).reshape(bs * A_len, l)
    prod_a = (MA * GA).reshape(bs * A_len, l)
    SA = (jnp.dot(diff_a.astype(jnp.bfloat16), fca_w1T_ref[...],
                  preferred_element_type=jnp.float32)
          + jnp.dot(prod_a.astype(jnp.bfloat16), fca_w2T_ref[...],
                    preferred_element_type=jnp.float32)
          + fca_b_ref[...])
    SA = jnp.maximum(SA, 0.0).reshape(bs, A_len, l)

    diff_p = (MP - P).reshape(bs * P_len, l)
    prod_p = (MP * P).reshape(bs * P_len, l)
    SP = (jnp.dot(diff_p.astype(jnp.bfloat16), fcp_w1T_ref[...],
                  preferred_element_type=jnp.float32)
          + jnp.dot(prod_p.astype(jnp.bfloat16), fcp_w2T_ref[...],
                    preferred_element_type=jnp.float32)
          + fcp_b_ref[...])
    SP = jnp.maximum(SP, 0.0).reshape(bs, P_len, l)

    # --- fused Final_Pooling half: sequence-wise max pool + dot with the
    # pre-sliced chunks of the 4*size -> 1 pooling weight.
    CP = jnp.max(SP, axis=1)                          # (bs, l)
    CA = jnp.max(SA, axis=1)                          # (bs, l)
    out_ref[...] = (jnp.sum(CP * w_sp_ref[...], axis=-1, keepdims=True)
                    + jnp.sum(CA * w_sa_ref[...], axis=-1, keepdims=True))


def matching_pool(A_stack, P, prm, w_sp, w_sa):
    """Run matching attention of each A in A_stack against P, then the
    per-direction half of the final pooling.  A_stack: (n, bs, A_len, l),
    P: (bs, P_len, l).  Returns (n, bs, 1) partial pooling scores."""
    n, bs, A_len, l = A_stack.shape
    P_len = P.shape[1]

    grid_spec = pltpu.PrefetchScalarGridSpec(
        num_scalar_prefetch=0,
        grid=(n,),
        in_specs=[
            pl.BlockSpec((None, bs, A_len, l), lambda g: (g, 0, 0, 0)),  # A
            pl.BlockSpec((bs, P_len, l), lambda g: (0, 0, 0)),           # P (resident)
            pl.BlockSpec((l, l), lambda g: (0, 0)),                      # Gw^T (bf16)
            pl.BlockSpec((1, l), lambda g: (0, 0)),                      # Gb
            pl.BlockSpec((l, l), lambda g: (0, 0)),                      # fca_w1^T
            pl.BlockSpec((l, l), lambda g: (0, 0)),                      # fca_w2^T
            pl.BlockSpec((1, l), lambda g: (0, 0)),                      # fca_b
            pl.BlockSpec((l, l), lambda g: (0, 0)),                      # fcp_w1^T
            pl.BlockSpec((l, l), lambda g: (0, 0)),                      # fcp_w2^T
            pl.BlockSpec((1, l), lambda g: (0, 0)),                      # fcp_b
            pl.BlockSpec((1, l), lambda g: (0, 0)),                      # pool w (SP)
            pl.BlockSpec((1, l), lambda g: (0, 0)),                      # pool w (SA)
        ],
        out_specs=pl.BlockSpec((None, bs, 1), lambda g: (g, 0, 0)),
    )

    return pl.pallas_call(
        _matching_pool_kernel,
        out_shape=jax.ShapeDtypeStruct((n, bs, 1), jnp.float32),
        grid_spec=grid_spec,
        compiler_params=pltpu.CompilerParams(
            dimension_semantics=("parallel",)),
    )(A_stack, P, prm["GwT"], prm["Gb"],
      prm["fca_w1T"], prm["fca_w2T"], prm["fca_b"],
      prm["fcp_w1T"], prm["fcp_w2T"], prm["fcp_b"],
      w_sp, w_sa)


# ----------------------------------------------------------------------------
# DCMN forward (inference path)
# ----------------------------------------------------------------------------
def dcmn_forward(art, q, a, b, c, d, params):
    # Question <-> passage matching (match_que), fused with its pooling half:
    # base[b] = CPP . w[2l:3l] + CQ . w[3l:4l]  (identical for all 4 options).
    base = matching_pool(q[None], art, params["match_que"],
                         params["w_pp"], params["w_q"])        # (1, bs, 1)

    # All 4 options in one call: grid over the stacked-option axis.
    opts = jnp.stack((a, b, c, d), axis=0)                      # (4, bs, O, l)
    opt_scores = matching_pool(opts, art, params["match_opt"],
                               params["w_p"], params["w_a"])    # (4, bs, 1)

    final = opt_scores[:, :, 0].T + base[0]                     # (bs, 4)
    return jax.nn.log_softmax(final, axis=1)


# ----------------------------------------------------------------------------
# Deterministic parameter init (PyTorch nn.Linear default: U(-1/sqrt(in), +))
# and one-time weight preparation (transpose / slice / bf16 cast) outside jit.
# ----------------------------------------------------------------------------
def _init_linear(key, out_f, in_f, bias=True):
    kw, kb = jax.random.split(key)
    bound = 1.0 / (in_f ** 0.5)
    w = jax.random.uniform(kw, (out_f, in_f), jnp.float32, -bound, bound)
    if not bias:
        return w
    b = jax.random.uniform(kb, (out_f,), jnp.float32, -bound, bound)
    return w, b


def init_params(key, size):
    def match_params(k):
        k1, k2, k3 = jax.random.split(k, 3)
        Gw, Gb = _init_linear(k1, size, size)
        fca_w, fca_b = _init_linear(k2, size, 2 * size)
        fcp_w, fcp_b = _init_linear(k3, size, 2 * size)
        return dict(G_w=Gw, G_b=Gb, fca_w=fca_w, fca_b=fca_b,
                    fcp_w=fcp_w, fcp_b=fcp_b)

    k_que, k_opt, k_pool = jax.random.split(key, 3)
    return dict(
        match_que=match_params(k_que),
        match_opt=match_params(k_opt),
        pool_w=_init_linear(k_pool, 1, 4 * size, bias=False),   # (1, 4*size)
    )


def prepare_params(raw, size):
    """Materialize kernel-ready weights ONCE (outside the jitted forward):
    pre-transposed, pre-sliced, matmul weights cast to bf16."""
    def prep_match(m):
        return dict(
            GwT=m["G_w"].T.astype(jnp.bfloat16),
            Gb=m["G_b"].reshape(1, size),
            fca_w1T=m["fca_w"][:, :size].T.astype(jnp.bfloat16),
            fca_w2T=m["fca_w"][:, size:].T.astype(jnp.bfloat16),
            fca_b=m["fca_b"].reshape(1, size),
            fcp_w1T=m["fcp_w"][:, :size].T.astype(jnp.bfloat16),
            fcp_w2T=m["fcp_w"][:, size:].T.astype(jnp.bfloat16),
            fcp_b=m["fcp_b"].reshape(1, size),
        )

    pw = raw["pool_w"]
    return dict(
        match_que=prep_match(raw["match_que"]),
        match_opt=prep_match(raw["match_opt"]),
        w_p=pw[:, 0 * size:1 * size],
        w_a=pw[:, 1 * size:2 * size],
        w_pp=pw[:, 2 * size:3 * size],
        w_q=pw[:, 3 * size:4 * size],
    )


if __name__ == "__main__":
    size = 128        # hidden size (768 in the paper; small here)
    bs = 2
    P_len, Q_len, O_len = 16, 8, 8

    key = jax.random.PRNGKey(0)
    k_art, k_q, ka, kb_, kc, kd, k_p = jax.random.split(key, 7)
    art = jax.random.normal(k_art, (bs, P_len, size), jnp.float32)
    q = jax.random.normal(k_q, (bs, Q_len, size), jnp.float32)
    a = jax.random.normal(ka, (bs, O_len, size), jnp.float32)
    b = jax.random.normal(kb_, (bs, O_len, size), jnp.float32)
    c = jax.random.normal(kc, (bs, O_len, size), jnp.float32)
    d = jax.random.normal(kd, (bs, O_len, size), jnp.float32)

    params = prepare_params(init_params(k_p, size), size)   # eager, outside jit

    out = jax.jit(dcmn_forward)(art, q, a, b, c, d, params)
    out = jax.block_until_ready(out)
    assert out.shape == (bs, 4)
    assert bool(jnp.all(jnp.isfinite(out)))
    print("KERNEL_OK")
</pallas_src>

<mosaic_0001>
module attributes {stable_mosaic.version = 11 : i64} {
  func.func @_matching_pool_kernel(%arg0: i32, %arg1: memref<1x2x8x128xf32, #tpu.memory_space<vmem>>, %arg2: memref<2x16x128xf32, #tpu.memory_space<vmem>>, %arg3: memref<128x128xbf16, #tpu.memory_space<vmem>>, %arg4: memref<1x128xf32, #tpu.memory_space<vmem>>, %arg5: memref<128x128xbf16, #tpu.memory_space<vmem>>, %arg6: memref<128x128xbf16, #tpu.memory_space<vmem>>, %arg7: memref<1x128xf32, #tpu.memory_space<vmem>>, %arg8: memref<128x128xbf16, #tpu.memory_space<vmem>>, %arg9: memref<128x128xbf16, #tpu.memory_space<vmem>>, %arg10: memref<1x128xf32, #tpu.memory_space<vmem>>, %arg11: memref<1x128xf32, #tpu.memory_space<vmem>>, %arg12: memref<1x128xf32, #tpu.memory_space<vmem>>, %arg13: memref<1x2x1xf32, #tpu.memory_space<vmem>>) attributes {dimension_semantics = [#tpu.dimension_semantics<parallel>], iteration_bounds = array<i64: 4>, scalar_prefetch = 0 : i64, scratch_operands = 0 : i64, tpu.core_type = #tpu.core_type<tc>, window_params = [{transform_indices = @transform_0, window_bounds = array<i64: 1, 2, 8, 128>}, {pipeline_mode = #tpu.pipeline_mode<synchronous>, transform_indices = @transform_1, window_bounds = array<i64: 2, 16, 128>}, {pipeline_mode = #tpu.pipeline_mode<synchronous>, transform_indices = @transform_2, window_bounds = array<i64: 128, 128>}, {pipeline_mode = #tpu.pipeline_mode<synchronous>, transform_indices = @transform_3, window_bounds = array<i64: 1, 128>}, {pipeline_mode = #tpu.pipeline_mode<synchronous>, transform_indices = @transform_4, window_bounds = array<i64: 128, 128>}, {pipeline_mode = #tpu.pipeline_mode<synchronous>, transform_indices = @transform_5, window_bounds = array<i64: 128, 128>}, {pipeline_mode = #tpu.pipeline_mode<synchronous>, transform_indices = @transform_6, window_bounds = array<i64: 1, 128>}, {pipeline_mode = #tpu.pipeline_mode<synchronous>, transform_indices = @transform_7, window_bounds = array<i64: 128, 128>}, {pipeline_mode = #tpu.pipeline_mode<synchronous>, transform_indices = @transform_8, window_bounds = array<i64: 128, 128>}, {pipeline_mode = #tpu.pipeline_mode<synchronous>, transform_indices = @transform_9, window_bounds = array<i64: 1, 128>}, {pipeline_mode = #tpu.pipeline_mode<synchronous>, transform_indices = @transform_10, window_bounds = array<i64: 1, 128>}, {pipeline_mode = #tpu.pipeline_mode<synchronous>, transform_indices = @transform_11, window_bounds = array<i64: 1, 128>}, {transform_indices = @transform_12, window_bounds = array<i64: 1, 2, 1>}]} {
    %c0 = arith.constant 0 : index
    %c0_0 = arith.constant 0 : index
    %c0_1 = arith.constant 0 : index
    %c0_2 = arith.constant 0 : index
    %0 = vector.load %arg1[%c0, %c0_0, %c0_1, %c0_2] : memref<1x2x8x128xf32, #tpu.memory_space<vmem>>, vector<1x2x8x128xf32>
    %1 = vector.shape_cast %0 : vector<1x2x8x128xf32> to vector<2x8x128xf32>
    %c0_3 = arith.constant 0 : index
    %c0_4 = arith.constant 0 : index
    %c0_5 = arith.constant 0 : index
    %2 = vector.load %arg2[%c0_3, %c0_4, %c0_5] : memref<2x16x128xf32, #tpu.memory_space<vmem>>, vector<2x16x128xf32>
    %3 = vector.shape_cast %1 : vector<2x8x128xf32> to vector<16x128xf32>
    %4 = arith.truncf %3 : vector<16x128xf32> to vector<16x128xbf16>
    %c0_6 = arith.constant 0 : index
    %c0_7 = arith.constant 0 : index
    %5 = vector.load %arg3[%c0_6, %c0_7] : memref<128x128xbf16, #tpu.memory_space<vmem>>, vector<128x128xbf16>
    %cst = arith.constant dense<0.000000e+00> : vector<16x128xf32>
    %6 = tpu.matmul %4, %5, %cst {dimension_numbers = #tpu.dot_dimension_numbers<[1], [0], [0], [1], [0, 0, 1, 1], [], []>} : vector<16x128xbf16>, vector<128x128xbf16>, vector<16x128xf32> -> vector<16x128xf32>
    %c0_8 = arith.constant 0 : index
    %c0_9 = arith.constant 0 : index
    %7 = vector.load %arg4[%c0_8, %c0_9] : memref<1x128xf32, #tpu.memory_space<vmem>>, vector<1x128xf32>
    %8 = vector.broadcast %7 : vector<1x128xf32> to vector<16x128xf32>
    %9 = arith.addf %6, %8 : vector<16x128xf32>
    %10 = vector.shape_cast %9 : vector<16x128xf32> to vector<2x8x128xf32>
    "tpu.trace_start"() <{level = 10 : i32, message = "bpl,bal->bpa"}> : () -> ()
    %cst_10 = arith.constant dense<0.000000e+00> : vector<2x16x8xf32>
    %11 = tpu.matmul %2, %10, %cst_10 {dimension_numbers = #tpu.dot_dimension_numbers<[2], [2], [1], [1], [0, 0, 0, 1, 1, 1], [0], [0]>} : vector<2x16x128xf32>, vector<2x8x128xf32>, vector<2x16x8xf32> -> vector<2x16x8xf32>
    "tpu.trace_stop"() : () -> ()
    %cst_11 = arith.constant dense<0xFF800000> : vector<2x16xf32>
    %12 = vector.multi_reduction <maximumf>, %11, %cst_11 [2] : vector<2x16x8xf32> to vector<2x16xf32>
    %13 = vector.shape_cast %12 : vector<2x16xf32> to vector<2x16x1xf32>
    %14 = vector.broadcast %13 : vector<2x16x1xf32> to vector<2x16x8xf32>
    %15 = arith.subf %11, %14 : vector<2x16x8xf32>
    %16 = math.exp %15 : vector<2x16x8xf32>
    %cst_12 = arith.constant dense<0.000000e+00> : vector<2x16xf32>
    %17 = vector.multi_reduction <add>, %16, %cst_12 [2] : vector<2x16x8xf32> to vector<2x16xf32>
    %18 = vector.shape_cast %17 : vector<2x16xf32> to vector<2x16x1xf32>
    %19 = tpu.reciprocal %18 {approx = true} : vector<2x16x1xf32> -> vector<2x16x1xf32>
    %20 = vector.broadcast %19 : vector<2x16x1xf32> to vector<2x16x8xf32>
    %21 = arith.mulf %16, %20 : vector<2x16x8xf32>
    "tpu.trace_start"() <{level = 10 : i32, message = "bpa,bal->bpl"}> : () -> ()
    %cst_13 = arith.constant dense<0.000000e+00> : vector<2x16x128xf32>
    %22 = tpu.matmul %21, %10, %cst_13 {dimension_numbers = #tpu.dot_dimension_numbers<[2], [1], [1], [2], [0, 0, 0, 1, 1, 2], [0], [0]>} : vector<2x16x8xf32>, vector<2x8x128xf32>, vector<2x16x128xf32> -> vector<2x16x128xf32>
    "tpu.trace_stop"() : () -> ()
    "tpu.trace_start"() <{level = 10 : i32, message = "bpa,bpl->bal"}> : () -> ()
    %cst_14 = arith.constant dense<0.000000e+00> : vector<2x8x128xf32>
    %23 = tpu.matmul %21, %2, %cst_14 {dimension_numbers = #tpu.dot_dimension_numbers<[1], [1], [2], [2], [0, 0, 0, 2, 1, 2], [0], [0]>} : vector<2x16x8xf32>, vector<2x16x128xf32>, vector<2x8x128xf32> -> vector<2x8x128xf32>
    "tpu.trace_stop"() : () -> ()
    %24 = arith.subf %23, %10 : vector<2x8x128xf32>
    %25 = vector.shape_cast %24 : vector<2x8x128xf32> to vector<16x128xf32>
    %26 = arith.mulf %23, %10 : vector<2x8x128xf32>
    %27 = vector.shape_cast %26 : vector<2x8x128xf32> to vector<16x128xf32>
    %28 = arith.truncf %25 : vector<16x128xf32> to vector<16x128xbf16>
    %c0_15 = arith.constant 0 : index
    %c0_16 = arith.constant 0 : index
    %29 = vector.load %arg5[%c0_15, %c0_16] : memref<128x128xbf16, #tpu.memory_space<vmem>>, vector<128x128xbf16>
    %cst_17 = arith.constant dense<0.000000e+00> : vector<16x128xf32>
    %30 = tpu.matmul %28, %29, %cst_17 {dimension_numbers = #tpu.dot_dimension_numbers<[1], [0], [0], [1], [0, 0, 1, 1], [], []>} : vector<16x128xbf16>, vector<128x128xbf16>, vector<16x128xf32> -> vector<16x128xf32>
    %31 = arith.truncf %27 : vector<16x128xf32> to vector<16x128xbf16>
    %c0_18 = arith.constant 0 : index
    %c0_19 = arith.constant 0 : index
    %32 = vector.load %arg6[%c0_18, %c0_19] : memref<128x128xbf16, #tpu.memory_space<vmem>>, vector<128x128xbf16>
    %cst_20 = arith.constant dense<0.000000e+00> : vector<16x128xf32>
    %33 = tpu.matmul %31, %32, %cst_20 {dimension_numbers = #tpu.dot_dimension_numbers<[1], [0], [0], [1], [0, 0, 1, 1], [], []>} : vector<16x128xbf16>, vector<128x128xbf16>, vector<16x128xf32> -> vector<16x128xf32>
    %34 = arith.addf %30, %33 : vector<16x128xf32>
    %c0_21 = arith.constant 0 : index
    %c0_22 = arith.constant 0 : index
    %35 = vector.load %arg7[%c0_21, %c0_22] : memref<1x128xf32, #tpu.memory_space<vmem>>, vector<1x128xf32>
    %36 = vector.broadcast %35 : vector<1x128xf32> to vector<16x128xf32>
    %37 = arith.addf %34, %36 : vector<16x128xf32>
    %cst_23 = arith.constant 0.000000e+00 : f32
    %38 = vector.broadcast %cst_23 : f32 to vector<16x128xf32>
    %39 = arith.maximumf %37, %38 : vector<16x128xf32>
    %40 = vector.shape_cast %39 : vector<16x128xf32> to vector<2x8x128xf32>
    %41 = arith.subf %22, %2 : vector<2x16x128xf32>
    %42 = vector.shape_cast %41 : vector<2x16x128xf32> to vector<32x128xf32>
    %43 = arith.mulf %22, %2 : vector<2x16x128xf32>
    %44 = vector.shape_cast %43 : vector<2x16x128xf32> to vector<32x128xf32>
    %45 = arith.truncf %42 : vector<32x128xf32> to vector<32x128xbf16>
    %c0_24 = arith.constant 0 : index
    %c0_25 = arith.constant 0 : index
    %46 = vector.load %arg8[%c0_24, %c0_25] : memref<128x128xbf16, #tpu.memory_space<vmem>>, vector<128x128xbf16>
    %cst_26 = arith.constant dense<0.000000e+00> : vector<32x128xf32>
    %47 = tpu.matmul %45, %46, %cst_26 {dimension_numbers = #tpu.dot_dimension_numbers<[1], [0], [0], [1], [0, 0, 1, 1], [], []>} : vector<32x128xbf16>, vector<128x128xbf16>, vector<32x128xf32> -> vector<32x128xf32>
    %48 = arith.truncf %44 : vector<32x128xf32> to vector<32x128xbf16>
    %c0_27 = arith.constant 0 : index
    %c0_28 = arith.constant 0 : index
    %49 = vector.load %arg9[%c0_27, %c0_28] : memref<128x128xbf16, #tpu.memory_space<vmem>>, vector<128x128xbf16>
    %cst_29 = arith.constant dense<0.000000e+00> : vector<32x128xf32>
    %50 = tpu.matmul %48, %49, %cst_29 {dimension_numbers = #tpu.dot_dimension_numbers<[1], [0], [0], [1], [0, 0, 1, 1], [], []>} : vector<32x128xbf16>, vector<128x128xbf16>, vector<32x128xf32> -> vector<32x128xf32>
    %51 = arith.addf %47, %50 : vector<32x128xf32>
    %c0_30 = arith.constant 0 : index
    %c0_31 = arith.constant 0 : index
    %52 = vector.load %arg10[%c0_30, %c0_31] : memref<1x128xf32, #tpu.memory_space<vmem>>, vector<1x128xf32>
    %53 = vector.broadcast %52 : vector<1x128xf32> to vector<32x128xf32>
    %54 = arith.addf %51, %53 : vector<32x128xf32>
    %cst_32 = arith.constant 0.000000e+00 : f32
    %55 = vector.broadcast %cst_32 : f32 to vector<32x128xf32>
    %56 = arith.maximumf %54, %55 : vector<32x128xf32>
    %57 = vector.shape_cast %56 : vector<32x128xf32> to vector<2x16x128xf32>
    %cst_33 = arith.constant dense<0xFF800000> : vector<2x128xf32>
    %58 = vector.multi_reduction <maximumf>, %57, %cst_33 [1] : vector<2x16x128xf32> to vector<2x128xf32>
    %cst_34 = arith.constant dense<0xFF800000> : vector<2x128xf32>
    %59 = vector.multi_reduction <maximumf>, %40, %cst_34 [1] : vector<2x8x128xf32> to vector<2x128xf32>
    %c0_35 = arith.constant 0 : index
    %c0_36 = arith.constant 0 : index
    %60 = vector.load %arg11[%c0_35, %c0_36] : memref<1x128xf32, #tpu.memory_space<vmem>>, vector<1x128xf32>
    %61 = vector.broadcast %60 : vector<1x128xf32> to vector<2x128xf32>
    %62 = arith.mulf %58, %61 : vector<2x128xf32>
    %cst_37 = arith.constant dense<0.000000e+00> : vector<2xf32>
    %63 = vector.multi_reduction <add>, %62, %cst_37 [1] : vector<2x128xf32> to vector<2xf32>
    %64 = vector.shape_cast %63 : vector<2xf32> to vector<2x1xf32>
    %c0_38 = arith.constant 0 : index
    %c0_39 = arith.constant 0 : index
    %65 = vector.load %arg12[%c0_38, %c0_39] : memref<1x128xf32, #tpu.memory_space<vmem>>, vector<1x128xf32>
    %66 = vector.broadcast %65 : vector<1x128xf32> to vector<2x128xf32>
    %67 = arith.mulf %59, %66 : vector<2x128xf32>
    %cst_40 = arith.constant dense<0.000000e+00> : vector<2xf32>
    %68 = vector.multi_reduction <add>, %67, %cst_40 [1] : vector<2x128xf32> to vector<2xf32>
    %69 = vector.shape_cast %68 : vector<2xf32> to vector<2x1xf32>
    %70 = arith.addf %64, %69 : vector<2x1xf32>
    %c0_41 = arith.constant 0 : index
    %c0_42 = arith.constant 0 : index
    %c0_43 = arith.constant 0 : index
    %71 = vector.load %arg13[%c0_41, %c0_42, %c0_43] : memref<1x2x1xf32, #tpu.memory_space<vmem>>, vector<1x2x1xf32>
    %72 = vector.shape_cast %71 : vector<1x2x1xf32> to vector<2x1xf32>
    %73 = vector.shape_cast %70 : vector<2x1xf32> to vector<1x2x1xf32>
    tpu.vector_store %arg13[%c0_41, %c0_42, %c0_43], %73 {strides = array<i32>} : memref<1x2x1xf32, #tpu.memory_space<vmem>>, vector<1x2x1xf32>,
    return
  }
  func.func @transform_0(%arg0: i32) -> (i32, i32, i32, i32) {
    %c0_i32 = arith.constant 0 : i32
    %c0_i32_0 = arith.constant 0 : i32
    %c0_i32_1 = arith.constant 0 : i32
    %c0_i32_2 = arith.constant 0 : i32
    return %arg0, %c0_i32, %c0_i32_0, %c0_i32_1 : i32, i32, i32, i32
  }
  func.func @transform_1(%arg0: i32) -> (i32, i32, i32) {
    %c0_i32 = arith.constant 0 : i32
    %c0_i32_0 = arith.constant 0 : i32
    %c0_i32_1 = arith.constant 0 : i32
    %c0_i32_2 = arith.constant 0 : i32
    return %c0_i32, %c0_i32_0, %c0_i32_1 : i32, i32, i32
  }
  func.func @transform_2(%arg0: i32) -> (i32, i32) {
    %c0_i32 = arith.constant 0 : i32
    %c0_i32_0 = arith.constant 0 : i32
    %c0_i32_1 = arith.constant 0 : i32
    return %c0_i32, %c0_i32_0 : i32, i32
  }
  func.func @transform_3(%arg0: i32) -> (i32, i32) {
    %c0_i32 = arith.constant 0 : i32
    %c0_i32_0 = arith.constant 0 : i32
    %c0_i32_1 = arith.constant 0 : i32
    return %c0_i32, %c0_i32_0 : i32, i32
  }
  func.func @transform_4(%arg0: i32) -> (i32, i32) {
    %c0_i32 = arith.constant 0 : i32
    %c0_i32_0 = arith.constant 0 : i32
    %c0_i32_1 = arith.constant 0 : i32
    return %c0_i32, %c0_i32_0 : i32, i32
  }
  func.func @transform_5(%arg0: i32) -> (i32, i32) {
    %c0_i32 = arith.constant 0 : i32
    %c0_i32_0 = arith.constant 0 : i32
    %c0_i32_1 = arith.constant 0 : i32
    return %c0_i32, %c0_i32_0 : i32, i32
  }
  func.func @transform_6(%arg0: i32) -> (i32, i32) {
    %c0_i32 = arith.constant 0 : i32
    %c0_i32_0 = arith.constant 0 : i32
    %c0_i32_1 = arith.constant 0 : i32
    return %c0_i32, %c0_i32_0 : i32, i32
  }
  func.func @transform_7(%arg0: i32) -> (i32, i32) {
    %c0_i32 = arith.constant 0 : i32
    %c0_i32_0 = arith.constant 0 : i32
    %c0_i32_1 = arith.constant 0 : i32
    return %c0_i32, %c0_i32_0 : i32, i32
  }
  func.func @transform_8(%arg0: i32) -> (i32, i32) {
    %c0_i32 = arith.constant 0 : i32
    %c0_i32_0 = arith.constant 0 : i32
    %c0_i32_1 = arith.constant 0 : i32
    return %c0_i32, %c0_i32_0 : i32, i32
  }
  func.func @transform_9(%arg0: i32) -> (i32, i32) {
    %c0_i32 = arith.constant 0 : i32
    %c0_i32_0 = arith.constant 0 : i32
    %c0_i32_1 = arith.constant 0 : i32
    return %c0_i32, %c0_i32_0 : i32, i32
  }
  func.func @transform_10(%arg0: i32) -> (i32, i32) {
    %c0_i32 = arith.constant 0 : i32
    %c0_i32_0 = arith.constant 0 : i32
    %c0_i32_1 = arith.constant 0 : i32
    return %c0_i32, %c0_i32_0 : i32, i32
  }
  func.func @transform_11(%arg0: i32) -> (i32, i32) {
    %c0_i32 = arith.constant 0 : i32
    %c0_i32_0 = arith.constant 0 : i32
    %c0_i32_1 = arith.constant 0 : i32
    return %c0_i32, %c0_i32_0 : i32, i32
  }
  func.func @transform_12(%arg0: i32) -> (i32, i32, i32) {
    %c0_i32 = arith.constant 0 : i32
    %c0_i32_0 = arith.constant 0 : i32
    %c0_i32_1 = arith.constant 0 : i32
    return %arg0, %c0_i32, %c0_i32_0 : i32, i32, i32
  }
}

module attributes {stable_mosaic.version = 11 : i64} {
  func.func @_matching_pool_kernel(%arg0: i32, %arg1: memref<1x2x8x128xf32, #tpu.memory_space<vmem>>, %arg2: memref<2x16x128xf32, #tpu.memory_space<vmem>>, %arg3: memref<128x128xbf16, #tpu.memory_space<vmem>>, %arg4: memref<1x128xf32, #tpu.memory_space<vmem>>, %arg5: memref<128x128xbf16, #tpu.memory_space<vmem>>, %arg6: memref<128x128xbf16, #tpu.memory_space<vmem>>, %arg7: memref<1x128xf32, #tpu.memory_space<vmem>>, %arg8: memref<128x128xbf16, #tpu.memory_space<vmem>>, %arg9: memref<128x128xbf16, #tpu.memory_space<vmem>>, %arg10: memref<1x128xf32, #tpu.memory_space<vmem>>, %arg11: memref<1x128xf32, #tpu.memory_space<vmem>>, %arg12: memref<1x128xf32, #tpu.memory_space<vmem>>, %arg13: memref<1x2x1xf32, #tpu.memory_space<vmem>>) attributes {dimension_semantics = [#tpu.dimension_semantics<parallel>], iteration_bounds = array<i64: 1>, scalar_prefetch = 0 : i64, scratch_operands = 0 : i64, tpu.core_type = #tpu.core_type<tc>, window_params = [{transform_indices = @transform_0, window_bounds = array<i64: 1, 2, 8, 128>}, {pipeline_mode = #tpu.pipeline_mode<synchronous>, transform_indices = @transform_1, window_bounds = array<i64: 2, 16, 128>}, {pipeline_mode = #tpu.pipeline_mode<synchronous>, transform_indices = @transform_2, window_bounds = array<i64: 128, 128>}, {pipeline_mode = #tpu.pipeline_mode<synchronous>, transform_indices = @transform_3, window_bounds = array<i64: 1, 128>}, {pipeline_mode = #tpu.pipeline_mode<synchronous>, transform_indices = @transform_4, window_bounds = array<i64: 128, 128>}, {pipeline_mode = #tpu.pipeline_mode<synchronous>, transform_indices = @transform_5, window_bounds = array<i64: 128, 128>}, {pipeline_mode = #tpu.pipeline_mode<synchronous>, transform_indices = @transform_6, window_bounds = array<i64: 1, 128>}, {pipeline_mode = #tpu.pipeline_mode<synchronous>, transform_indices = @transform_7, window_bounds = array<i64: 128, 128>}, {pipeline_mode = #tpu.pipeline_mode<synchronous>, transform_indices = @transform_8, window_bounds = array<i64: 128, 128>}, {pipeline_mode = #tpu.pipeline_mode<synchronous>, transform_indices = @transform_9, window_bounds = array<i64: 1, 128>}, {pipeline_mode = #tpu.pipeline_mode<synchronous>, transform_indices = @transform_10, window_bounds = array<i64: 1, 128>}, {pipeline_mode = #tpu.pipeline_mode<synchronous>, transform_indices = @transform_11, window_bounds = array<i64: 1, 128>}, {transform_indices = @transform_12, window_bounds = array<i64: 1, 2, 1>}]} {
    %c0 = arith.constant 0 : index
    %c0_0 = arith.constant 0 : index
    %c0_1 = arith.constant 0 : index
    %c0_2 = arith.constant 0 : index
    %0 = vector.load %arg1[%c0, %c0_0, %c0_1, %c0_2] : memref<1x2x8x128xf32, #tpu.memory_space<vmem>>, vector<1x2x8x128xf32>
    %1 = vector.shape_cast %0 : vector<1x2x8x128xf32> to vector<2x8x128xf32>
    %c0_3 = arith.constant 0 : index
    %c0_4 = arith.constant 0 : index
    %c0_5 = arith.constant 0 : index
    %2 = vector.load %arg2[%c0_3, %c0_4, %c0_5] : memref<2x16x128xf32, #tpu.memory_space<vmem>>, vector<2x16x128xf32>
    %3 = vector.shape_cast %1 : vector<2x8x128xf32> to vector<16x128xf32>
    %4 = arith.truncf %3 : vector<16x128xf32> to vector<16x128xbf16>
    %c0_6 = arith.constant 0 : index
    %c0_7 = arith.constant 0 : index
    %5 = vector.load %arg3[%c0_6, %c0_7] : memref<128x128xbf16, #tpu.memory_space<vmem>>, vector<128x128xbf16>
    %cst = arith.constant dense<0.000000e+00> : vector<16x128xf32>
    %6 = tpu.matmul %4, %5, %cst {dimension_numbers = #tpu.dot_dimension_numbers<[1], [0], [0], [1], [0, 0, 1, 1], [], []>} : vector<16x128xbf16>, vector<128x128xbf16>, vector<16x128xf32> -> vector<16x128xf32>
    %c0_8 = arith.constant 0 : index
    %c0_9 = arith.constant 0 : index
    %7 = vector.load %arg4[%c0_8, %c0_9] : memref<1x128xf32, #tpu.memory_space<vmem>>, vector<1x128xf32>
    %8 = vector.broadcast %7 : vector<1x128xf32> to vector<16x128xf32>
    %9 = arith.addf %6, %8 : vector<16x128xf32>
    %10 = vector.shape_cast %9 : vector<16x128xf32> to vector<2x8x128xf32>
    "tpu.trace_start"() <{level = 10 : i32, message = "bpl,bal->bpa"}> : () -> ()
    %cst_10 = arith.constant dense<0.000000e+00> : vector<2x16x8xf32>
    %11 = tpu.matmul %2, %10, %cst_10 {dimension_numbers = #tpu.dot_dimension_numbers<[2], [2], [1], [1], [0, 0, 0, 1, 1, 1], [0], [0]>} : vector<2x16x128xf32>, vector<2x8x128xf32>, vector<2x16x8xf32> -> vector<2x16x8xf32>
    "tpu.trace_stop"() : () -> ()
    %cst_11 = arith.constant dense<0xFF800000> : vector<2x16xf32>
    %12 = vector.multi_reduction <maximumf>, %11, %cst_11 [2] : vector<2x16x8xf32> to vector<2x16xf32>
    %13 = vector.shape_cast %12 : vector<2x16xf32> to vector<2x16x1xf32>
    %14 = vector.broadcast %13 : vector<2x16x1xf32> to vector<2x16x8xf32>
    %15 = arith.subf %11, %14 : vector<2x16x8xf32>
    %16 = math.exp %15 : vector<2x16x8xf32>
    %cst_12 = arith.constant dense<0.000000e+00> : vector<2x16xf32>
    %17 = vector.multi_reduction <add>, %16, %cst_12 [2] : vector<2x16x8xf32> to vector<2x16xf32>
    %18 = vector.shape_cast %17 : vector<2x16xf32> to vector<2x16x1xf32>
    %19 = tpu.reciprocal %18 {approx = true} : vector<2x16x1xf32> -> vector<2x16x1xf32>
    %20 = vector.broadcast %19 : vector<2x16x1xf32> to vector<2x16x8xf32>
    %21 = arith.mulf %16, %20 : vector<2x16x8xf32>
    "tpu.trace_start"() <{level = 10 : i32, message = "bpa,bal->bpl"}> : () -> ()
    %cst_13 = arith.constant dense<0.000000e+00> : vector<2x16x128xf32>
    %22 = tpu.matmul %21, %10, %cst_13 {dimension_numbers = #tpu.dot_dimension_numbers<[2], [1], [1], [2], [0, 0, 0, 1, 1, 2], [0], [0]>} : vector<2x16x8xf32>, vector<2x8x128xf32>, vector<2x16x128xf32> -> vector<2x16x128xf32>
    "tpu.trace_stop"() : () -> ()
    "tpu.trace_start"() <{level = 10 : i32, message = "bpa,bpl->bal"}> : () -> ()
    %cst_14 = arith.constant dense<0.000000e+00> : vector<2x8x128xf32>
    %23 = tpu.matmul %21, %2, %cst_14 {dimension_numbers = #tpu.dot_dimension_numbers<[1], [1], [2], [2], [0, 0, 0, 2, 1, 2], [0], [0]>} : vector<2x16x8xf32>, vector<2x16x128xf32>, vector<2x8x128xf32> -> vector<2x8x128xf32>
    "tpu.trace_stop"() : () -> ()
    %24 = arith.subf %23, %10 : vector<2x8x128xf32>
    %25 = vector.shape_cast %24 : vector<2x8x128xf32> to vector<16x128xf32>
    %26 = arith.mulf %23, %10 : vector<2x8x128xf32>
    %27 = vector.shape_cast %26 : vector<2x8x128xf32> to vector<16x128xf32>
    %28 = arith.truncf %25 : vector<16x128xf32> to vector<16x128xbf16>
    %c0_15 = arith.constant 0 : index
    %c0_16 = arith.constant 0 : index
    %29 = vector.load %arg5[%c0_15, %c0_16] : memref<128x128xbf16, #tpu.memory_space<vmem>>, vector<128x128xbf16>
    %cst_17 = arith.constant dense<0.000000e+00> : vector<16x128xf32>
    %30 = tpu.matmul %28, %29, %cst_17 {dimension_numbers = #tpu.dot_dimension_numbers<[1], [0], [0], [1], [0, 0, 1, 1], [], []>} : vector<16x128xbf16>, vector<128x128xbf16>, vector<16x128xf32> -> vector<16x128xf32>
    %31 = arith.truncf %27 : vector<16x128xf32> to vector<16x128xbf16>
    %c0_18 = arith.constant 0 : index
    %c0_19 = arith.constant 0 : index
    %32 = vector.load %arg6[%c0_18, %c0_19] : memref<128x128xbf16, #tpu.memory_space<vmem>>, vector<128x128xbf16>
    %cst_20 = arith.constant dense<0.000000e+00> : vector<16x128xf32>
    %33 = tpu.matmul %31, %32, %cst_20 {dimension_numbers = #tpu.dot_dimension_numbers<[1], [0], [0], [1], [0, 0, 1, 1], [], []>} : vector<16x128xbf16>, vector<128x128xbf16>, vector<16x128xf32> -> vector<16x128xf32>
    %34 = arith.addf %30, %33 : vector<16x128xf32>
    %c0_21 = arith.constant 0 : index
    %c0_22 = arith.constant 0 : index
    %35 = vector.load %arg7[%c0_21, %c0_22] : memref<1x128xf32, #tpu.memory_space<vmem>>, vector<1x128xf32>
    %36 = vector.broadcast %35 : vector<1x128xf32> to vector<16x128xf32>
    %37 = arith.addf %34, %36 : vector<16x128xf32>
    %cst_23 = arith.constant 0.000000e+00 : f32
    %38 = vector.broadcast %cst_23 : f32 to vector<16x128xf32>
    %39 = arith.maximumf %37, %38 : vector<16x128xf32>
    %40 = vector.shape_cast %39 : vector<16x128xf32> to vector<2x8x128xf32>
    %41 = arith.subf %22, %2 : vector<2x16x128xf32>
    %42 = vector.shape_cast %41 : vector<2x16x128xf32> to vector<32x128xf32>
    %43 = arith.mulf %22, %2 : vector<2x16x128xf32>
    %44 = vector.shape_cast %43 : vector<2x16x128xf32> to vector<32x128xf32>
    %45 = arith.truncf %42 : vector<32x128xf32> to vector<32x128xbf16>
    %c0_24 = arith.constant 0 : index
    %c0_25 = arith.constant 0 : index
    %46 = vector.load %arg8[%c0_24, %c0_25] : memref<128x128xbf16, #tpu.memory_space<vmem>>, vector<128x128xbf16>
    %cst_26 = arith.constant dense<0.000000e+00> : vector<32x128xf32>
    %47 = tpu.matmul %45, %46, %cst_26 {dimension_numbers = #tpu.dot_dimension_numbers<[1], [0], [0], [1], [0, 0, 1, 1], [], []>} : vector<32x128xbf16>, vector<128x128xbf16>, vector<32x128xf32> -> vector<32x128xf32>
    %48 = arith.truncf %44 : vector<32x128xf32> to vector<32x128xbf16>
    %c0_27 = arith.constant 0 : index
    %c0_28 = arith.constant 0 : index
    %49 = vector.load %arg9[%c0_27, %c0_28] : memref<128x128xbf16, #tpu.memory_space<vmem>>, vector<128x128xbf16>
    %cst_29 = arith.constant dense<0.000000e+00> : vector<32x128xf32>
    %50 = tpu.matmul %48, %49, %cst_29 {dimension_numbers = #tpu.dot_dimension_numbers<[1], [0], [0], [1], [0, 0, 1, 1], [], []>} : vector<32x128xbf16>, vector<128x128xbf16>, vector<32x128xf32> -> vector<32x128xf32>
    %51 = arith.addf %47, %50 : vector<32x128xf32>
    %c0_30 = arith.constant 0 : index
    %c0_31 = arith.constant 0 : index
    %52 = vector.load %arg10[%c0_30, %c0_31] : memref<1x128xf32, #tpu.memory_space<vmem>>, vector<1x128xf32>
    %53 = vector.broadcast %52 : vector<1x128xf32> to vector<32x128xf32>
    %54 = arith.addf %51, %53 : vector<32x128xf32>
    %cst_32 = arith.constant 0.000000e+00 : f32
    %55 = vector.broadcast %cst_32 : f32 to vector<32x128xf32>
    %56 = arith.maximumf %54, %55 : vector<32x128xf32>
    %57 = vector.shape_cast %56 : vector<32x128xf32> to vector<2x16x128xf32>
    %cst_33 = arith.constant dense<0xFF800000> : vector<2x128xf32>
    %58 = vector.multi_reduction <maximumf>, %57, %cst_33 [1] : vector<2x16x128xf32> to vector<2x128xf32>
    %cst_34 = arith.constant dense<0xFF800000> : vector<2x128xf32>
    %59 = vector.multi_reduction <maximumf>, %40, %cst_34 [1] : vector<2x8x128xf32> to vector<2x128xf32>
    %c0_35 = arith.constant 0 : index
    %c0_36 = arith.constant 0 : index
    %60 = vector.load %arg11[%c0_35, %c0_36] : memref<1x128xf32, #tpu.memory_space<vmem>>, vector<1x128xf32>
    %61 = vector.broadcast %60 : vector<1x128xf32> to vector<2x128xf32>
    %62 = arith.mulf %58, %61 : vector<2x128xf32>
    %cst_37 = arith.constant dense<0.000000e+00> : vector<2xf32>
    %63 = vector.multi_reduction <add>, %62, %cst_37 [1] : vector<2x128xf32> to vector<2xf32>
    %64 = vector.shape_cast %63 : vector<2xf32> to vector<2x1xf32>
    %c0_38 = arith.constant 0 : index
    %c0_39 = arith.constant 0 : index
    %65 = vector.load %arg12[%c0_38, %c0_39] : memref<1x128xf32, #tpu.memory_space<vmem>>, vector<1x128xf32>
    %66 = vector.broadcast %65 : vector<1x128xf32> to vector<2x128xf32>
    %67 = arith.mulf %59, %66 : vector<2x128xf32>
    %cst_40 = arith.constant dense<0.000000e+00> : vector<2xf32>
    %68 = vector.multi_reduction <add>, %67, %cst_40 [1] : vector<2x128xf32> to vector<2xf32>
    %69 = vector.shape_cast %68 : vector<2xf32> to vector<2x1xf32>
    %70 = arith.addf %64, %69 : vector<2x1xf32>
    %c0_41 = arith.constant 0 : index
    %c0_42 = arith.constant 0 : index
    %c0_43 = arith.constant 0 : index
    %71 = vector.load %arg13[%c0_41, %c0_42, %c0_43] : memref<1x2x1xf32, #tpu.memory_space<vmem>>, vector<1x2x1xf32>
    %72 = vector.shape_cast %71 : vector<1x2x1xf32> to vector<2x1xf32>
    %73 = vector.shape_cast %70 : vector<2x1xf32> to vector<1x2x1xf32>
    tpu.vector_store %arg13[%c0_41, %c0_42, %c0_43], %73 {strides = array<i32>} : memref<1x2x1xf32, #tpu.memory_space<vmem>>, vector<1x2x1xf32>,
    return
  }
  func.func @transform_0(%arg0: i32) -> (i32, i32, i32, i32) {
    %c0_i32 = arith.constant 0 : i32
    %c0_i32_0 = arith.constant 0 : i32
    %c0_i32_1 = arith.constant 0 : i32
    %c0_i32_2 = arith.constant 0 : i32
    return %arg0, %c0_i32, %c0_i32_0, %c0_i32_1 : i32, i32, i32, i32
  }
  func.func @transform_1(%arg0: i32) -> (i32, i32, i32) {
    %c0_i32 = arith.constant 0 : i32
    %c0_i32_0 = arith.constant 0 : i32
    %c0_i32_1 = arith.constant 0 : i32
    %c0_i32_2 = arith.constant 0 : i32
    return %c0_i32, %c0_i32_0, %c0_i32_1 : i32, i32, i32
  }
  func.func @transform_2(%arg0: i32) -> (i32, i32) {
    %c0_i32 = arith.constant 0 : i32
    %c0_i32_0 = arith.constant 0 : i32
    %c0_i32_1 = arith.constant 0 : i32
    return %c0_i32, %c0_i32_0 : i32, i32
  }
  func.func @transform_3(%arg0: i32) -> (i32, i32) {
    %c0_i32 = arith.constant 0 : i32
    %c0_i32_0 = arith.constant 0 : i32
    %c0_i32_1 = arith.constant 0 : i32
    return %c0_i32, %c0_i32_0 : i32, i32
  }
  func.func @transform_4(%arg0: i32) -> (i32, i32) {
    %c0_i32 = arith.constant 0 : i32
    %c0_i32_0 = arith.constant 0 : i32
    %c0_i32_1 = arith.constant 0 : i32
    return %c0_i32, %c0_i32_0 : i32, i32
  }
  func.func @transform_5(%arg0: i32) -> (i32, i32) {
    %c0_i32 = arith.constant 0 : i32
    %c0_i32_0 = arith.constant 0 : i32
    %c0_i32_1 = arith.constant 0 : i32
    return %c0_i32, %c0_i32_0 : i32, i32
  }
  func.func @transform_6(%arg0: i32) -> (i32, i32) {
    %c0_i32 = arith.constant 0 : i32
    %c0_i32_0 = arith.constant 0 : i32
    %c0_i32_1 = arith.constant 0 : i32
    return %c0_i32, %c0_i32_0 : i32, i32
  }
  func.func @transform_7(%arg0: i32) -> (i32, i32) {
    %c0_i32 = arith.constant 0 : i32
    %c0_i32_0 = arith.constant 0 : i32
    %c0_i32_1 = arith.constant 0 : i32
    return %c0_i32, %c0_i32_0 : i32, i32
  }
  func.func @transform_8(%arg0: i32) -> (i32, i32) {
    %c0_i32 = arith.constant 0 : i32
    %c0_i32_0 = arith.constant 0 : i32
    %c0_i32_1 = arith.constant 0 : i32
    return %c0_i32, %c0_i32_0 : i32, i32
  }
  func.func @transform_9(%arg0: i32) -> (i32, i32) {
    %c0_i32 = arith.constant 0 : i32
    %c0_i32_0 = arith.constant 0 : i32
    %c0_i32_1 = arith.constant 0 : i32
    return %c0_i32, %c0_i32_0 : i32, i32
  }
  func.func @transform_10(%arg0: i32) -> (i32, i32) {
    %c0_i32 = arith.constant 0 : i32
    %c0_i32_0 = arith.constant 0 : i32
    %c0_i32_1 = arith.constant 0 : i32
    return %c0_i32, %c0_i32_0 : i32, i32
  }
  func.func @transform_11(%arg0: i32) -> (i32, i32) {
    %c0_i32 = arith.constant 0 : i32
    %c0_i32_0 = arith.constant 0 : i32
    %c0_i32_1 = arith.constant 0 : i32
    return %c0_i32, %c0_i32_0 : i32, i32
  }
  func.func @transform_12(%arg0: i32) -> (i32, i32, i32) {
    %c0_i32 = arith.constant 0 : i32
    %c0_i32_0 = arith.constant 0 : i32
    %c0_i32_1 = arith.constant 0 : i32
    return %arg0, %c0_i32, %c0_i32_0 : i32, i32, i32
  }
}

</mosaic_0001>

<llo_original>
// kernel: dcmn_forward.2
$region0: #{dcmn_forward.2}
  #allocation0 [shape = 'u32[]', space=smem, size = 0x4, offset = 0x4, fixed_abs, tag = 'smem constant byte address 0x4 - core index']
  #allocation1 [shape = 'u32[144,128]{1,0:T(1,128)}', space=vmem, size = 0x12000, scoped, tag = 'internal scratch']
  %s0 = inlined_call_operand.vmem [shape: f32[1,2,8,128], index: 0, kind: input, shape index: {}]
  %s1 = inlined_call_operand.vmem [shape: f32[2,16,128], index: 1, kind: input, shape index: {}]
  %s2 = inlined_call_operand.vmem [shape: bf16[128,128], index: 2, kind: input, shape index: {}]
  %s3 = inlined_call_operand.vmem [shape: f32[1,128], index: 3, kind: input, shape index: {}]
  %s4 = inlined_call_operand.vmem [shape: bf16[128,128], index: 4, kind: input, shape index: {}]
  %s5 = inlined_call_operand.vmem [shape: bf16[128,128], index: 5, kind: input, shape index: {}]
  %s6 = inlined_call_operand.vmem [shape: f32[1,128], index: 6, kind: input, shape index: {}]
  %s7 = inlined_call_operand.vmem [shape: bf16[128,128], index: 7, kind: input, shape index: {}]
  %s8 = inlined_call_operand.vmem [shape: bf16[128,128], index: 8, kind: input, shape index: {}]
  %s9 = inlined_call_operand.vmem [shape: f32[1,128], index: 9, kind: input, shape index: {}]
  %s10 = inlined_call_operand.vmem [shape: f32[1,128], index: 10, kind: input, shape index: {}]
  %s11 = inlined_call_operand.vmem [shape: f32[1,128], index: 11, kind: input, shape index: {}]
  %s12 = inlined_call_operand.vmem [shape: f32[1,2,1], index: 12, kind: output, shape index: {}]
  %s13 = sld [smem:[#allocation0]]
  $region58: #{dcmn_forward.2} parent=0
    _
  %s15 = ssub.s32 1, %s13
  %s16 = scalar_select 0, %s15, %s13
  // Predicated region
  $region2: #{dcmn_forward.2} parent=0 // pred_check
    _
  $region3: #{dcmn_forward.2} parent=0 // pred_check_branch
    %18 = sbr.rel (0) target = $region5
  $region4: #{dcmn_forward.2} parent=0 // pred_region
    _
  $region5: #{dcmn_forward.2} parent=0 // pred_fallthru
    _
  // Predicated region
  $region6: #{dcmn_forward.2} parent=0 // pred_check
    _
  $region7: #{dcmn_forward.2} parent=0 // pred_check_branch
    %20 = sbr.rel (0) target = $region9
  $region8: #{dcmn_forward.2} parent=0 // pred_region
    _
  $region9: #{dcmn_forward.2} parent=0 // pred_fallthru
    _
  // Predicated region
  $region10: #{dcmn_forward.2} parent=0 // pred_check
    _
  $region11: #{dcmn_forward.2} parent=0 // pred_check_branch
    %22 = sbr.rel (0) target = $region13
  $region12: #{dcmn_forward.2} parent=0 // pred_region
    _
  $region13: #{dcmn_forward.2} parent=0 // pred_fallthru
    _
  // Predicated region
  $region14: #{dcmn_forward.2} parent=0 // pred_check
    _
  $region15: #{dcmn_forward.2} parent=0 // pred_check_branch
    %24 = sbr.rel (0) target = $region17
  $region16: #{dcmn_forward.2} parent=0 // pred_region
    _
  $region17: #{dcmn_forward.2} parent=0 // pred_fallthru
    _
  // Predicated region
  $region18: #{dcmn_forward.2} parent=0 // pred_check
    _
  $region19: #{dcmn_forward.2} parent=0 // pred_check_branch
    %26 = sbr.rel (0) target = $region21
  $region20: #{dcmn_forward.2} parent=0 // pred_region
    _
  $region21: #{dcmn_forward.2} parent=0 // pred_fallthru
    _
  // Predicated region
  $region22: #{dcmn_forward.2} parent=0 // pred_check
    _
  $region23: #{dcmn_forward.2} parent=0 // pred_check_branch
    %28 = sbr.rel (0) target = $region25
  $region24: #{dcmn_forward.2} parent=0 // pred_region
    _
  $region25: #{dcmn_forward.2} parent=0 // pred_fallthru
    _
  // Predicated region
  $region26: #{dcmn_forward.2} parent=0 // pred_check
    _
  $region27: #{dcmn_forward.2} parent=0 // pred_check_branch
    %30 = sbr.rel (0) target = $region29
  $region28: #{dcmn_forward.2} parent=0 // pred_region
    _
  $region29: #{dcmn_forward.2} parent=0 // pred_fallthru
    _
  // Predicated region
  $region30: #{dcmn_forward.2} parent=0 // pred_check
    _
  $region31: #{dcmn_forward.2} parent=0 // pred_check_branch
    %32 = sbr.rel (0) target = $region33
  $region32: #{dcmn_forward.2} parent=0 // pred_region
    _
  $region33: #{dcmn_forward.2} parent=0 // pred_fallthru
    _
  // Predicated region
  $region34: #{dcmn_forward.2} parent=0 // pred_check
    _
  $region35: #{dcmn_forward.2} parent=0 // pred_check_branch
    %34 = sbr.rel (0) target = $region37
  $region36: #{dcmn_forward.2} parent=0 // pred_region
    _
  $region37: #{dcmn_forward.2} parent=0 // pred_fallthru
    _
  // Predicated region
  $region38: #{dcmn_forward.2} parent=0 // pred_check
    _
  $region39: #{dcmn_forward.2} parent=0 // pred_check_branch
    %36 = sbr.rel (0) target = $region41
  $region40: #{dcmn_forward.2} parent=0 // pred_region
    _
  $region41: #{dcmn_forward.2} parent=0 // pred_fallthru
    _
  // Predicated region
  $region42: #{dcmn_forward.2} parent=0 // pred_check
    _
  $region43: #{dcmn_forward.2} parent=0 // pred_check_branch
    %38 = sbr.rel (0) target = $region45
  $region44: #{dcmn_forward.2} parent=0 // pred_region
    _
  $region45: #{dcmn_forward.2} parent=0 // pred_fallthru
    _
  // Predicated region
  $region46: #{dcmn_forward.2} parent=0 // pred_check
    _
  $region47: #{dcmn_forward.2} parent=0 // pred_check_branch
    %40 = sbr.rel (0) target = $region49
  $region48: #{dcmn_forward.2} parent=0 // pred_region
    _
  $region49: #{dcmn_forward.2} parent=0 // pred_fallthru
    _
  %v42 = vld [vmem:[%s0] sm:$0xff]
  %v43 = vld [vmem:[%s0 + $0x8] sm:$0xff]
  %v44 = vld [vmem:[%s1] sm:$0xff]
  %v45 = vld [vmem:[%s1 + $0x8] sm:$0xff]
  %v46 = vld [vmem:[%s1 + $0x10] sm:$0xff]
  %v47 = vld [vmem:[%s1 + $0x18] sm:$0xff]
  %v48 = vpack.c.bf16 %v43, %v42
  %v49 = vld [vmem:[%s2] sm:$0xf]
  %v50 = vld [vmem:[%s2 + $0x4] sm:$0xf]
  %v51 = vld [vmem:[%s2 + $0x8] sm:$0xf]
  %v52 = vld [vmem:[%s2 + $0xc] sm:$0xf]
  %v53 = vld [vmem:[%s2 + $0x10] sm:$0xf]
  %v54 = vld [vmem:[%s2 + $0x14] sm:$0xf]
  %v55 = vld [vmem:[%s2 + $0x18] sm:$0xf]
  %v56 = vld [vmem:[%s2 + $0x1c] sm:$0xf]
  %v57 = vld [vmem:[%s2 + $0x20] sm:$0xf]
  %v58 = vld [vmem:[%s2 + $0x24] sm:$0xf]
  %v59 = vld [vmem:[%s2 + $0x28] sm:$0xf]
  %v60 = vld [vmem:[%s2 + $0x2c] sm:$0xf]
  %v61 = vld [vmem:[%s2 + $0x30] sm:$0xf]
  %v62 = vld [vmem:[%s2 + $0x34] sm:$0xf]
  %v63 = vld [vmem:[%s2 + $0x38] sm:$0xf]
  %v64 = vld [vmem:[%s2 + $0x3c] sm:$0xf]
  %v65 = vld [vmem:[%s3] sm:$0x1]
  %v67 = vlaneseq
  %v68 = vshrl.u32 %v67, 7
  %v69 = vsub.s32 0, %v68
  %v70 = vrot.slane %v65, %v69
  %v88 = vunpack.c.l.b16 %v49
  %v89 = vunpack.c.l.b16 %v50
  %v90 = vunpack.c.l.b16 %v51
  %v91 = vunpack.c.l.b16 %v52
  %v92 = vunpack.c.l.b16 %v53
  %v93 = vunpack.c.l.b16 %v54
  %v94 = vunpack.c.l.b16 %v55
  %v95 = vunpack.c.l.b16 %v56
  %v96 = vunpack.c.l.b16 %v57
  %v97 = vunpack.c.l.b16 %v58
  %v98 = vunpack.c.l.b16 %v59
  %v99 = vunpack.c.l.b16 %v60
  %v100 = vunpack.c.l.b16 %v61
  %v101 = vunpack.c.l.b16 %v62
  %v102 = vunpack.c.l.b16 %v63
  %v103 = vunpack.c.l.b16 %v64
  %v104 = vpack.c.b16 %v89, %v88
  %v105 = vpack.c.b16 %v91, %v90
  %v106 = vpack.c.b16 %v93, %v92
  %v107 = vpack.c.b16 %v95, %v94
  %v108 = vpack.c.b16 %v97, %v96
  %v109 = vpack.c.b16 %v99, %v98
  %v110 = vpack.c.b16 %v101, %v100
  %v111 = vpack.c.b16 %v103, %v102
  %120 = vmatprep.subr.bf16.mxu0 0
  %121 = vmatpush1.bf16.msra.mxu0 %v104
  %122 = vmatprep.subr.bf16.mxu0 0
  %123 = vmatpush1.bf16.msra.mxu0 %v105
  %124 = vmatprep.subr.bf16.mxu0 0
  %125 = vmatpush1.bf16.msra.mxu0 %v106
  %126 = vmatprep.subr.bf16.mxu0 0
  %127 = vmatpush1.bf16.msra.mxu0 %v107
  %128 = vmatprep.subr.bf16.mxu0 0
  %129 = vmatpush1.bf16.msra.mxu0 %v108
  %130 = vmatprep.subr.bf16.mxu0 0
  %131 = vmatpush1.bf16.msra.mxu0 %v109
  %132 = vmatprep.subr.bf16.mxu0 0
  %133 = vmatpush1.bf16.msra.mxu0 %v110
  %134 = vmatprep.subr.bf16.mxu0 0
  %135 = vmatpush1.bf16.msra.mxu0 %v111
  %136 = vmatprep.subr.bf16.mxu0 0
  %137 = vmatpush1.bf16.msra.mxu0 0
  %138 = vmatprep.subr.bf16.mxu0 0
  %139 = vmatpush1.bf16.msra.mxu0 0
  %140 = vmatprep.subr.bf16.mxu0 0
  %141 = vmatpush1.bf16.msra.mxu0 0
  %142 = vmatprep.subr.bf16.mxu0 0
  %143 = vmatpush1.bf16.msra.mxu0 0
  %144 = vmatprep.subr.bf16.mxu0 0
  %145 = vmatpush1.bf16.msra.mxu0 0
  %146 = vmatprep.subr.bf16.mxu0 0
  %147 = vmatpush1.bf16.msra.mxu0 0
  %148 = vmatprep.subr.bf16.mxu0 0
  %149 = vmatpush1.bf16.msra.mxu0 0
  %150 = vmatprep.subr.bf16.mxu0 0
  %151 = vmatpush1.bf16.msra.mxu0 0
  %152 = vmatprep.mubr.bf16.mxu0 0
  %153 = vmatmul.mubr.bf16.gmra.mrb[0].mxu0 %v48
  %v154 = vpop.f32.mrb[0].mxu0
  %v155 = vadd.f32 %v70, %v154
  %v156 = vpop.f32.mrb[0].mxu0
  %v157 = vpop.f32.mrb[0].mxu0
  %v158 = vadd.f32 %v70, %v157
  %v159 = vpop.f32.mrb[0].mxu0
  %160 = vdwg.mxu0
  %161 = vmatprep.subr.mxu0 0.0
  %162 = vmatpush1.xpose.msra.mxu0 %v155
  %163 = vmatprep.subr.mxu0 0.0
  %164 = vmatpush1.xpose.msra.mxu0 0.0
  %165 = vmatprep.subr.mxu0 0.0
  %166 = vmatpush1.xpose.msra.mxu0 0.0
  %167 = vmatprep.subr.mxu0 0.0
  %168 = vmatpush1.xpose.msra.mxu0 0.0
  %169 = vmatprep.subr.mxu0 0.0
  %170 = vmatpush1.xpose.msra.mxu0 0.0
  %171 = vmatprep.subr.mxu0 0.0
  %172 = vmatpush1.xpose.msra.mxu0 0.0
  %173 = vmatprep.subr.mxu0 0.0
  %174 = vmatpush1.xpose.msra.mxu0 0.0
  %175 = vmatprep.subr.mxu0 0.0
  %176 = vmatpush1.xpose.msra.mxu0 0.0
  %177 = vmatprep.subr.mxu0 0.0
  %178 = vmatpush1.xpose.msra.mxu0 0.0
  %179 = vmatprep.subr.mxu0 0.0
  %180 = vmatpush1.xpose.msra.mxu0 0.0
  %181 = vmatprep.subr.mxu0 0.0
  %182 = vmatpush1.xpose.msra.mxu0 0.0
  %183 = vmatprep.subr.mxu0 0.0
  %184 = vmatpush1.xpose.msra.mxu0 0.0
  %185 = vmatprep.subr.mxu0 0.0
  %186 = vmatpush1.xpose.msra.mxu0 0.0
  %187 = vmatprep.subr.mxu0 0.0
  %188 = vmatpush1.xpose.msra.mxu0 0.0
  %189 = vmatprep.subr.mxu0 0.0
  %190 = vmatpush1.xpose.msra.mxu0 0.0
  %191 = vmatprep.subr.mxu0 0.0
  %192 = vmatpush1.xpose.msra.mxu0 0.0
  %193 = vmatprep.subr.mxu0 0.0
  %194 = vmatpush1.xpose.msra.mxu0 0.0
  %195 = vmatprep.subr.mxu0 0.0
  %196 = vmatpush1.xpose.msra.mxu0 0.0
  %197 = vmatprep.subr.mxu0 0.0
  %198 = vmatpush1.xpose.msra.mxu0 0.0
  %199 = vmatprep.subr.mxu0 0.0
  %200 = vmatpush1.xpose.msra.mxu0 0.0
  %201 = vmatprep.subr.mxu0 0.0
  %202 = vmatpush1.xpose.msra.mxu0 0.0
  %203 = vmatprep.subr.mxu0 0.0
  %204 = vmatpush1.xpose.msra.mxu0 0.0
  %205 = vmatprep.subr.mxu0 0.0
  %206 = vmatpush1.xpose.msra.mxu0 0.0
  %207 = vmatprep.subr.mxu0 0.0
  %208 = vmatpush1.xpose.msra.mxu0 0.0
  %209 = vmatprep.subr.mxu0 0.0
  %210 = vmatpush1.xpose.msra.mxu0 0.0
  %211 = vmatprep.subr.mxu0 0.0
  %212 = vmatpush1.xpose.msra.mxu0 0.0
  %213 = vmatprep.subr.mxu0 0.0
  %214 = vmatpush1.xpose.msra.mxu0 0.0
  %215 = vmatprep.subr.mxu0 0.0
  %216 = vmatpush1.xpose.msra.mxu0 0.0
  %217 = vmatprep.subr.mxu0 0.0
  %218 = vmatpush1.xpose.msra.mxu0 0.0
  %219 = vmatprep.subr.mxu0 0.0
  %220 = vmatpush1.xpose.msra.mxu0 0.0
  %221 = vmatprep.subr.mxu0 0.0
  %222 = vmatpush1.xpose.msra.mxu0 0.0
  %223 = vmatprep.subr.mxu0 0.0
  %224 = vmatpush1.xpose.msra.mxu0 0.0
  %225 = vmatprep.mubr.f32.mxu0 0.0
  %226 = vmatmul.mubr.f32.gmra.mrb[0].mxu0 %v44
  %v227 = vpop.f32.mrb[0].mxu0
  %v228 = vadd.f32 0.0, %v227
  %v229 = vpop.f32.mrb[0].mxu0
  %230 = vmatprep.mubr.f32.mxu0 0.0
  %231 = vmatmul.mubr.f32.gmra.mrb[0].mxu0 %v45
  %v232 = vpop.f32.mrb[0].mxu0
  %v233 = vadd.f32 0.0, %v232
  %v234 = vpop.f32.mrb[0].mxu0
  %235 = vdwg.mxu0
  %236 = vmatprep.subr.mxu0 0.0
  %237 = vmatpush1.xpose.msra.mxu0 %v158
  %238 = vmatprep.subr.mxu0 0.0
  %239 = vmatpush1.xpose.msra.mxu0 0.0
  %240 = vmatprep.subr.mxu0 0.0
  %241 = vmatpush1.xpose.msra.mxu0 0.0
  %242 = vmatprep.subr.mxu0 0.0
  %243 = vmatpush1.xpose.msra.mxu0 0.0
  %244 = vmatprep.subr.mxu0 0.0
  %245 = vmatpush1.xpose.msra.mxu0 0.0
  %246 = vmatprep.subr.mxu0 0.0
  %247 = vmatpush1.xpose.msra.mxu0 0.0
  %248 = vmatprep.subr.mxu0 0.0
  %249 = vmatpush1.xpose.msra.mxu0 0.0
  %250 = vmatprep.subr.mxu0 0.0
  %251 = vmatpush1.xpose.msra.mxu0 0.0
  %252 = vmatprep.subr.mxu0 0.0
  %253 = vmatpush1.xpose.msra.mxu0 0.0
  %254 = vmatprep.subr.mxu0 0.0
  %255 = vmatpush1.xpose.msra.mxu0 0.0
  %256 = vmatprep.subr.mxu0 0.0
  %257 = vmatpush1.xpose.msra.mxu0 0.0
  %258 = vmatprep.subr.mxu0 0.0
  %259 = vmatpush1.xpose.msra.mxu0 0.0
  %260 = vmatprep.subr.mxu0 0.0
  %261 = vmatpush1.xpose.msra.mxu0 0.0
  %262 = vmatprep.subr.mxu0 0.0
  %263 = vmatpush1.xpose.msra.mxu0 0.0
  %264 = vmatprep.subr.mxu0 0.0
  %265 = vmatpush1.xpose.msra.mxu0 0.0
  %266 = vmatprep.subr.mxu0 0.0
  %267 = vmatpush1.xpose.msra.mxu0 0.0
  %268 = vmatprep.subr.mxu0 0.0
  %269 = vmatpush1.xpose.msra.mxu0 0.0
  %270 = vmatprep.subr.mxu0 0.0
  %271 = vmatpush1.xpose.msra.mxu0 0.0
  %272 = vmatprep.subr.mxu0 0.0
  %273 = vmatpush1.xpose.msra.mxu0 0.0
  %274 = vmatprep.subr.mxu0 0.0
  %275 = vmatpush1.xpose.msra.mxu0 0.0
  %276 = vmatprep.subr.mxu0 0.0
  %277 = vmatpush1.xpose.msra.mxu0 0.0
  %278 = vmatprep.subr.mxu0 0.0
  %279 = vmatpush1.xpose.msra.mxu0 0.0
  %280 = vmatprep.subr.mxu0 0.0
  %281 = vmatpush1.xpose.msra.mxu0 0.0
  %282 = vmatprep.subr.mxu0 0.0
  %283 = vmatpush1.xpose.msra.mxu0 0.0
  %284 = vmatprep.subr.mxu0 0.0
  %285 = vmatpush1.xpose.msra.mxu0 0.0
  %286 = vmatprep.subr.mxu0 0.0
  %287 = vmatpush1.xpose.msra.mxu0 0.0
  %288 = vmatprep.subr.mxu0 0.0
  %289 = vmatpush1.xpose.msra.mxu0 0.0
  %290 = vmatprep.subr.mxu0 0.0
  %291 = vmatpush1.xpose.msra.mxu0 0.0
  %292 = vmatprep.subr.mxu0 0.0
  %293 = vmatpush1.xpose.msra.mxu0 0.0
  %294 = vmatprep.subr.mxu0 0.0
  %295 = vmatpush1.xpose.msra.mxu0 0.0
  %296 = vmatprep.subr.mxu0 0.0
  %297 = vmatpush1.xpose.msra.mxu0 0.0
  %298 = vmatprep.subr.mxu0 0.0
  %299 = vmatpush1.xpose.msra.mxu0 0.0
  %300 = vmatprep.mubr.f32.mxu0 0.0
  %301 = vmatmul.mubr.f32.gmra.mrb[0].mxu0 %v46
  %v302 = vpop.f32.mrb[0].mxu0
  %v303 = vadd.f32 0.0, %v302
  %v304 = vpop.f32.mrb[0].mxu0
  %305 = vmatprep.mubr.f32.mxu0 0.0
  %306 = vmatmul.mubr.f32.gmra.mrb[0].mxu0 %v47
  %v307 = vpop.f32.mrb[0].mxu0
  %v308 = vadd.f32 0.0, %v307
  %v309 = vpop.f32.mrb[0].mxu0
  %310 = vdwg.mxu0
  %vm311 = vcmask 64512
  %v312 = vsel %vm311, %v228, -inf
  %313 = vmax.xlane.f32.xlu0 %v312
  %v314 = vpop.xlane.xlu0 %313
  %v315 = vsel %vm311, %v233, -inf
  %316 = vmax.xlane.f32.xlu0 %v315
  %v317 = vpop.xlane.xlu0 %316
  %v318 = vsel %vm311, %v303, -inf
  %319 = vmax.xlane.f32.xlu0 %v318
  %v320 = vpop.xlane.xlu0 %319
  %v321 = vsel %vm311, %v308, -inf
  %322 = vmax.xlane.f32.xlu0 %v321
  %v323 = vpop.xlane.xlu0 %322
  %v324 = vsub.f32 %v228, %v314
  %v325 = vsub.f32 %v233, %v317
  %v326 = vsub.f32 %v303, %v320
  %v327 = vsub.f32 %v308, %v323
  %v328 = vmul.f32 %v324, 1.442695
  %v329 = vpow.pop %v328
  %v330 = vmul.f32 %v325, 1.442695
  %v331 = vpow.pop %v330
  %v332 = vmul.f32 %v326, 1.442695
  %v333 = vpow.pop %v332
  %v334 = vmul.f32 %v327, 1.442695
  %v335 = vpow.pop %v334
  %v336 = vsel %vm311, %v329, 0.0
  %337 = vadd.xlane.f32.xlu0 %v336
  %v338 = vpop.xlane.xlu0 %337
  %v339 = vsel %vm311, %v331, 0.0
  %340 = vadd.xlane.f32.xlu0 %v339
  %v341 = vpop.xlane.xlu0 %340
  %v342 = vsel %vm311, %v333, 0.0
  %343 = vadd.xlane.f32.xlu0 %v342
  %v344 = vpop.xlane.xlu0 %343
  %v345 = vsel %vm311, %v335, 0.0
  %346 = vadd.xlane.f32.xlu0 %v345
  %v347 = vpop.xlane.xlu0 %346
  %v348 = vrcp.pop %v338
  %v349 = vrcp.pop %v341
  %v350 = vrcp.pop %v344
  %v351 = vrcp.pop %v347
  %v352 = vmul.f32 %v329, %v348
  %v353 = vmul.f32 %v331, %v349
  %v354 = vmul.f32 %v333, %v350
  %v355 = vmul.f32 %v335, %v351
  %v357 = vsel %vm311, %v352, 0
  %v360 = vsel %vm311, %v353, 0
  %362 = vmatprep.subr.mxu0 0.0
  %363 = vmatpush1.msra.mxu0 %v155
  %364 = vmatprep.subr.mxu0 0.0
  %365 = vmatpush1.msra.mxu0 0.0
  %366 = vmatprep.subr.mxu0 0.0
  %367 = vmatpush1.msra.mxu0 0.0
  %368 = vmatprep.subr.mxu0 0.0
  %369 = vmatpush1.msra.mxu0 0.0
  %370 = vmatprep.subr.mxu0 0.0
  %371 = vmatpush1.msra.mxu0 0.0
  %372 = vmatprep.subr.mxu0 0.0
  %373 = vmatpush1.msra.mxu0 0.0
  %374 = vmatprep.subr.mxu0 0.0
  %375 = vmatpush1.msra.mxu0 0.0
  %376 = vmatprep.subr.mxu0 0.0
  %377 = vmatpush1.msra.mxu0 0.0
  %378 = vmatprep.subr.mxu0 0.0
  %379 = vmatpush1.msra.mxu0 0.0
  %380 = vmatprep.subr.mxu0 0.0
  %381 = vmatpush1.msra.mxu0 0.0
  %382 = vmatprep.subr.mxu0 0.0
  %383 = vmatpush1.msra.mxu0 0.0
  %384 = vmatprep.subr.mxu0 0.0
  %385 = vmatpush1.msra.mxu0 0.0
  %386 = vmatprep.subr.mxu0 0.0
  %387 = vmatpush1.msra.mxu0 0.0
  %388 = vmatprep.subr.mxu0 0.0
  %389 = vmatpush1.msra.mxu0 0.0
  %390 = vmatprep.subr.mxu0 0.0
  %391 = vmatpush1.msra.mxu0 0.0
  %392 = vmatprep.subr.mxu0 0.0
  %393 = vmatpush1.msra.mxu0 0.0
  %394 = vmatprep.subr.mxu0 0.0
  %395 = vmatpush1.msra.mxu0 0.0
  %396 = vmatprep.subr.mxu0 0.0
  %397 = vmatpush1.msra.mxu0 0.0
  %398 = vmatprep.subr.mxu0 0.0
  %399 = vmatpush1.msra.mxu0 0.0
  %400 = vmatprep.subr.mxu0 0.0
  %401 = vmatpush1.msra.mxu0 0.0
  %402 = vmatprep.subr.mxu0 0.0
  %403 = vmatpush1.msra.mxu0 0.0
  %404 = vmatprep.subr.mxu0 0.0
  %405 = vmatpush1.msra.mxu0 0.0
  %406 = vmatprep.subr.mxu0 0.0
  %407 = vmatpush1.msra.mxu0 0.0
  %408 = vmatprep.subr.mxu0 0.0
  %409 = vmatpush1.msra.mxu0 0.0
  %410 = vmatprep.subr.mxu0 0.0
  %411 = vmatpush1.msra.mxu0 0.0
  %412 = vmatprep.subr.mxu0 0.0
  %413 = vmatpush1.msra.mxu0 0.0
  %414 = vmatprep.subr.mxu0 0.0
  %415 = vmatpush1.msra.mxu0 0.0
  %416 = vmatprep.subr.mxu0 0.0
  %417 = vmatpush1.msra.mxu0 0.0
  %418 = vmatprep.subr.mxu0 0.0
  %419 = vmatpush1.msra.mxu0 0.0
  %420 = vmatprep.subr.mxu0 0.0
  %421 = vmatpush1.msra.mxu0 0.0
  %422 = vmatprep.subr.mxu0 0.0
  %423 = vmatpush1.msra.mxu0 0.0
  %424 = vmatprep.subr.mxu0 0.0
  %425 = vmatpush1.msra.mxu0 0.0
  %426 = vmatprep.mubr.f32.mxu0 0.0
  %427 = vmatmul.mubr.f32.gmra.mrb[0].mxu0 %v357
  %v428 = vpop.f32.mrb[0].mxu0
  %v429 = vadd.f32 0.0, %v428
  %v430 = vpop.f32.mrb[0].mxu0
  %431 = vmatprep.mubr.f32.mxu0 0.0
  %432 = vmatmul.mubr.f32.gmra.mrb[0].mxu0 %v360
  %v433 = vpop.f32.mrb[0].mxu0
  %v434 = vadd.f32 0.0, %v433
  %v435 = vpop.f32.mrb[0].mxu0
  %436 = vdwg.mxu0
  %v438 = vsel %vm311, %v354, 0
  %v441 = vsel %vm311, %v355, 0
  %443 = vmatprep.subr.mxu0 0.0
  %444 = vmatpush1.msra.mxu0 %v158
  %445 = vmatprep.subr.mxu0 0.0
  %446 = vmatpush1.msra.mxu0 0.0
  %447 = vmatprep.subr.mxu0 0.0
  %448 = vmatpush1.msra.mxu0 0.0
  %449 = vmatprep.subr.mxu0 0.0
  %450 = vmatpush1.msra.mxu0 0.0
  %451 = vmatprep.subr.mxu0 0.0
  %452 = vmatpush1.msra.mxu0 0.0
  %453 = vmatprep.subr.mxu0 0.0
  %454 = vmatpush1.msra.mxu0 0.0
  %455 = vmatprep.subr.mxu0 0.0
  %456 = vmatpush1.msra.mxu0 0.0
  %457 = vmatprep.subr.mxu0 0.0
  %458 = vmatpush1.msra.mxu0 0.0
  %459 = vmatprep.subr.mxu0 0.0
  %460 = vmatpush1.msra.mxu0 0.0
  %461 = vmatprep.subr.mxu0 0.0
  %462 = vmatpush1.msra.mxu0 0.0
  %463 = vmatprep.subr.mxu0 0.0
  %464 = vmatpush1.msra.mxu0 0.0
  %465 = vmatprep.subr.mxu0 0.0
  %466 = vmatpush1.msra.mxu0 0.0
  %467 = vmatprep.subr.mxu0 0.0
  %468 = vmatpush1.msra.mxu0 0.0
  %469 = vmatprep.subr.mxu0 0.0
  %470 = vmatpush1.msra.mxu0 0.0
  %471 = vmatprep.subr.mxu0 0.0
  %472 = vmatpush1.msra.mxu0 0.0
  %473 = vmatprep.subr.mxu0 0.0
  %474 = vmatpush1.msra.mxu0 0.0
  %475 = vmatprep.subr.mxu0 0.0
  %476 = vmatpush1.msra.mxu0 0.0
  %477 = vmatprep.subr.mxu0 0.0
  %478 = vmatpush1.msra.mxu0 0.0
  %479 = vmatprep.subr.mxu0 0.0
  %480 = vmatpush1.msra.mxu0 0.0
  %481 = vmatprep.subr.mxu0 0.0
  %482 = vmatpush1.msra.mxu0 0.0
  %483 = vmatprep.subr.mxu0 0.0
  %484 = vmatpush1.msra.mxu0 0.0
  %485 = vmatprep.subr.mxu0 0.0
  %486 = vmatpush1.msra.mxu0 0.0
  %487 = vmatprep.subr.mxu0 0.0
  %488 = vmatpush1.msra.mxu0 0.0
  %489 = vmatprep.subr.mxu0 0.0
  %490 = vmatpush1.msra.mxu0 0.0
  %491 = vmatprep.subr.mxu0 0.0
  %492 = vmatpush1.msra.mxu0 0.0
  %493 = vmatprep.subr.mxu0 0.0
  %494 = vmatpush1.msra.mxu0 0.0
  %495 = vmatprep.subr.mxu0 0.0
  %496 = vmatpush1.msra.mxu0 0.0
  %497 = vmatprep.subr.mxu0 0.0
  %498 = vmatpush1.msra.mxu0 0.0
  %499 = vmatprep.subr.mxu0 0.0
  %500 = vmatpush1.msra.mxu0 0.0
  %501 = vmatprep.subr.mxu0 0.0
  %502 = vmatpush1.msra.mxu0 0.0
  %503 = vmatprep.subr.mxu0 0.0
  %504 = vmatpush1.msra.mxu0 0.0
  %505 = vmatprep.subr.mxu0 0.0
  %506 = vmatpush1.msra.mxu0 0.0
  %507 = vmatprep.mubr.f32.mxu0 0.0
  %508 = vmatmul.mubr.f32.gmra.mrb[0].mxu0 %v438
  %v509 = vpop.f32.mrb[0].mxu0
  %v510 = vadd.f32 0.0, %v509
  %v511 = vpop.f32.mrb[0].mxu0
  %512 = vmatprep.mubr.f32.mxu0 0.0
  %513 = vmatmul.mubr.f32.gmra.mrb[0].mxu0 %v441
  %v514 = vpop.f32.mrb[0].mxu0
  %v515 = vadd.f32 0.0, %v514
  %v516 = vpop.f32.mrb[0].mxu0
  %517 = vdwg.mxu0
  %518 = vxpose.xlu0.b32.start [1/16] %v352, 128
  %519 = vxpose.xlu0.b32.cont [2/16] %v353, 128
  %520 = vxpose.xlu0.b32.cont [3/16] 0.0, 128
  %521 = vxpose.xlu0.b32.cont [4/16] 0.0, 128
  %522 = vxpose.xlu0.b32.cont [5/16] 0.0, 128
  %523 = vxpose.xlu0.b32.cont [6/16] 0.0, 128
  %524 = vxpose.xlu0.b32.cont [7/16] 0.0, 128
  %525 = vxpose.xlu0.b32.cont [8/16] 0.0, 128
  %526 = vxpose.xlu0.b32.cont [9/16] 0.0, 128
  %527 = vxpose.xlu0.b32.cont [10/16] 0.0, 128
  %528 = vxpose.xlu0.b32.cont [11/16] 0.0, 128
  %529 = vxpose.xlu0.b32.cont [12/16] 0.0, 128
  %530 = vxpose.xlu0.b32.cont [13/16] 0.0, 128
  %531 = vxpose.xlu0.b32.cont [14/16] 0.0, 128
  %532 = vxpose.xlu0.b32.cont [15/16] 0.0, 128
  %533 = vxpose.xlu0.b32.end [16/16] 0.0, 128
  %v534 = vpop.trf.xlu0
  %v535 = vpop.trf.xlu0
  %v536 = vpop.trf.xlu0
  %v537 = vpop.trf.xlu0
  %v538 = vpop.trf.xlu0
  %v539 = vpop.trf.xlu0
  %v540 = vpop.trf.xlu0
  %v541 = vpop.trf.xlu0
  %v542 = vpop.trf.xlu0
  %v543 = vpop.trf.xlu0
  %v544 = vpop.trf.xlu0
  %v545 = vpop.trf.xlu0
  %v546 = vpop.trf.xlu0
  %v547 = vpop.trf.xlu0
  %v548 = vpop.trf.xlu0
  %v549 = vpop.trf.xlu0
  %vm550 = vcmask 130048
  %v552 = vsel %vm550, %v534, 0
  %554 = vmatprep.subr.mxu0 0.0
  %555 = vmatpush1.msra.mxu0 %v44
  %556 = vmatprep.subr.mxu0 0.0
  %557 = vmatpush1.msra.mxu0 %v45
  %558 = vmatprep.subr.mxu0 0.0
  %559 = vmatpush1.msra.mxu0 0.0
  %560 = vmatprep.subr.mxu0 0.0
  %561 = vmatpush1.msra.mxu0 0.0
  %562 = vmatprep.subr.mxu0 0.0
  %563 = vmatpush1.msra.mxu0 0.0
  %564 = vmatprep.subr.mxu0 0.0
  %565 = vmatpush1.msra.mxu0 0.0
  %566 = vmatprep.subr.mxu0 0.0
  %567 = vmatpush1.msra.mxu0 0.0
  %568 = vmatprep.subr.mxu0 0.0
  %569 = vmatpush1.msra.mxu0 0.0
  %570 = vmatprep.subr.mxu0 0.0
  %571 = vmatpush1.msra.mxu0 0.0
  %572 = vmatprep.subr.mxu0 0.0
  %573 = vmatpush1.msra.mxu0 0.0
  %574 = vmatprep.subr.mxu0 0.0
  %575 = vmatpush1.msra.mxu0 0.0
  %576 = vmatprep.subr.mxu0 0.0
  %577 = vmatpush1.msra.mxu0 0.0
  %578 = vmatprep.subr.mxu0 0.0
  %579 = vmatpush1.msra.mxu0 0.0
  %580 = vmatprep.subr.mxu0 0.0
  %581 = vmatpush1.msra.mxu0 0.0
  %582 = vmatprep.subr.mxu0 0.0
  %583 = vmatpush1.msra.mxu0 0.0
  %584 = vmatprep.subr.mxu0 0.0
  %585 = vmatpush1.msra.mxu0 0.0
  %586 = vmatprep.subr.mxu0 0.0
  %587 = vmatpush1.msra.mxu0 0.0
  %588 = vmatprep.subr.mxu0 0.0
  %589 = vmatpush1.msra.mxu0 0.0
  %590 = vmatprep.subr.mxu0 0.0
  %591 = vmatpush1.msra.mxu0 0.0
  %592 = vmatprep.subr.mxu0 0.0
  %593 = vmatpush1.msra.mxu0 0.0
  %594 = vmatprep.subr.mxu0 0.0
  %595 = vmatpush1.msra.mxu0 0.0
  %596 = vmatprep.subr.mxu0 0.0
  %597 = vmatpush1.msra.mxu0 0.0
  %598 = vmatprep.subr.mxu0 0.0
  %599 = vmatpush1.msra.mxu0 0.0
  %600 = vmatprep.subr.mxu0 0.0
  %601 = vmatpush1.msra.mxu0 0.0
  %602 = vmatprep.subr.mxu0 0.0
  %603 = vmatpush1.msra.mxu0 0.0
  %604 = vmatprep.subr.mxu0 0.0
  %605 = vmatpush1.msra.mxu0 0.0
  %606 = vmatprep.subr.mxu0 0.0
  %607 = vmatpush1.msra.mxu0 0.0
  %608 = vmatprep.subr.mxu0 0.0
  %609 = vmatpush1.msra.mxu0 0.0
  %610 = vmatprep.subr.mxu0 0.0
  %611 = vmatpush1.msra.mxu0 0.0
  %612 = vmatprep.subr.mxu0 0.0
  %613 = vmatpush1.msra.mxu0 0.0
  %614 = vmatprep.subr.mxu0 0.0
  %615 = vmatpush1.msra.mxu0 0.0
  %616 = vmatprep.subr.mxu0 0.0
  %617 = vmatpush1.msra.mxu0 0.0
  %618 = vmatprep.mubr.f32.mxu0 0.0
  %619 = vmatmul.mubr.f32.gmra.mrb[0].mxu0 %v552
  %v620 = vpop.f32.mrb[0].mxu0
  %v621 = vadd.f32 0.0, %v620
  %v622 = vpop.f32.mrb[0].mxu0
  %623 = vdwg.mxu0
  %624 = vxpose.xlu0.b32.start [1/16] %v354, 128
  %625 = vxpose.xlu0.b32.cont [2/16] %v355, 128
  %626 = vxpose.xlu0.b32.cont [3/16] 0.0, 128
  %627 = vxpose.xlu0.b32.cont [4/16] 0.0, 128
  %628 = vxpose.xlu0.b32.cont [5/16] 0.0, 128
  %629 = vxpose.xlu0.b32.cont [6/16] 0.0, 128
  %630 = vxpose.xlu0.b32.cont [7/16] 0.0, 128
  %631 = vxpose.xlu0.b32.cont [8/16] 0.0, 128
  %632 = vxpose.xlu0.b32.cont [9/16] 0.0, 128
  %633 = vxpose.xlu0.b32.cont [10/16] 0.0, 128
  %634 = vxpose.xlu0.b32.cont [11/16] 0.0, 128
  %635 = vxpose.xlu0.b32.cont [12/16] 0.0, 128
  %636 = vxpose.xlu0.b32.cont [13/16] 0.0, 128
  %637 = vxpose.xlu0.b32.cont [14/16] 0.0, 128
  %638 = vxpose.xlu0.b32.cont [15/16] 0.0, 128
  %639 = vxpose.xlu0.b32.end [16/16] 0.0, 128
  %v640 = vpop.trf.xlu0
  %v641 = vpop.trf.xlu0
  %v642 = vpop.trf.xlu0
  %v643 = vpop.trf.xlu0
  %v644 = vpop.trf.xlu0
  %v645 = vpop.trf.xlu0
  %v646 = vpop.trf.xlu0
  %v647 = vpop.trf.xlu0
  %v648 = vpop.trf.xlu0
  %v649 = vpop.trf.xlu0
  %v650 = vpop.trf.xlu0
  %v651 = vpop.trf.xlu0
  %v652 = vpop.trf.xlu0
  %v653 = vpop.trf.xlu0
  %v654 = vpop.trf.xlu0
  %v655 = vpop.trf.xlu0
  %v657 = vsel %vm550, %v640, 0
  %659 = vmatprep.subr.mxu0 0.0
  %660 = vmatpush1.msra.mxu0 %v46
  %661 = vmatprep.subr.mxu0 0.0
  %662 = vmatpush1.msra.mxu0 %v47
  %663 = vmatprep.subr.mxu0 0.0
  %664 = vmatpush1.msra.mxu0 0.0
  %665 = vmatprep.subr.mxu0 0.0
  %666 = vmatpush1.msra.mxu0 0.0
  %667 = vmatprep.subr.mxu0 0.0
  %668 = vmatpush1.msra.mxu0 0.0
  %669 = vmatprep.subr.mxu0 0.0
  %670 = vmatpush1.msra.mxu0 0.0
  %671 = vmatprep.subr.mxu0 0.0
  %672 = vmatpush1.msra.mxu0 0.0
  %673 = vmatprep.subr.mxu0 0.0
  %674 = vmatpush1.msra.mxu0 0.0
  %675 = vmatprep.subr.mxu0 0.0
  %676 = vmatpush1.msra.mxu0 0.0
  %677 = vmatprep.subr.mxu0 0.0
  %678 = vmatpush1.msra.mxu0 0.0
  %679 = vmatprep.subr.mxu0 0.0
  %680 = vmatpush1.msra.mxu0 0.0
  %681 = vmatprep.subr.mxu0 0.0
  %682 = vmatpush1.msra.mxu0 0.0
  %683 = vmatprep.subr.mxu0 0.0
  %684 = vmatpush1.msra.mxu0 0.0
  %685 = vmatprep.subr.mxu0 0.0
  %686 = vmatpush1.msra.mxu0 0.0
  %687 = vmatprep.subr.mxu0 0.0
  %688 = vmatpush1.msra.mxu0 0.0
  %689 = vmatprep.subr.mxu0 0.0
  %690 = vmatpush1.msra.mxu0 0.0
  %691 = vmatprep.subr.mxu0 0.0
  %692 = vmatpush1.msra.mxu0 0.0
  %693 = vmatprep.subr.mxu0 0.0
  %694 = vmatpush1.msra.mxu0 0.0
  %695 = vmatprep.subr.mxu0 0.0
  %696 = vmatpush1.msra.mxu0 0.0
  %697 = vmatprep.subr.mxu0 0.0
  %698 = vmatpush1.msra.mxu0 0.0
  %699 = vmatprep.subr.mxu0 0.0
  %700 = vmatpush1.msra.mxu0 0.0
  %701 = vmatprep.subr.mxu0 0.0
  %702 = vmatpush1.msra.mxu0 0.0
  %703 = vmatprep.subr.mxu0 0.0
  %704 = vmatpush1.msra.mxu0 0.0
  %705 = vmatprep.subr.mxu0 0.0
  %706 = vmatpush1.msra.mxu0 0.0
  %707 = vmatprep.subr.mxu0 0.0
  %708 = vmatpush1.msra.mxu0 0.0
  %709 = vmatprep.subr.mxu0 0.0
  %710 = vmatpush1.msra.mxu0 0.0
  %711 = vmatprep.subr.mxu0 0.0
  %712 = vmatpush1.msra.mxu0 0.0
  %713 = vmatprep.subr.mxu0 0.0
  %714 = vmatpush1.msra.mxu0 0.0
  %715 = vmatprep.subr.mxu0 0.0
  %716 = vmatpush1.msra.mxu0 0.0
  %717 = vmatprep.subr.mxu0 0.0
  %718 = vmatpush1.msra.mxu0 0.0
  %719 = vmatprep.subr.mxu0 0.0
  %720 = vmatpush1.msra.mxu0 0.0
  %721 = vmatprep.subr.mxu0 0.0
  %722 = vmatpush1.msra.mxu0 0.0
  %723 = vmatprep.mubr.f32.mxu0 0.0
  %724 = vmatmul.mubr.f32.gmra.mrb[0].mxu0 %v657
  %v725 = vpop.f32.mrb[0].mxu0
  %v726 = vadd.f32 0.0, %v725
  %v727 = vpop.f32.mrb[0].mxu0
  %728 = vdwg.mxu0
  %v729 = vsub.f32 %v621, %v155
  %v730 = vsub.f32 %v726, %v158
  %v731 = vmul.f32 %v621, %v155
  %v732 = vmul.f32 %v726, %v158
  %v733 = vpack.c.bf16 %v730, %v729
  %v734 = vld [vmem:[%s4] sm:$0xf]
  %v735 = vld [vmem:[%s4 + $0x4] sm:$0xf]
  %v736 = vld [vmem:[%s4 + $0x8] sm:$0xf]
  %v737 = vld [vmem:[%s4 + $0xc] sm:$0xf]
  %v738 = vld [vmem:[%s4 + $0x10] sm:$0xf]
  %v739 = vld [vmem:[%s4 + $0x14] sm:$0xf]
  %v740 = vld [vmem:[%s4 + $0x18] sm:$0xf]
  %v741 = vld [vmem:[%s4 + $0x1c] sm:$0xf]
  %v742 = vld [vmem:[%s4 + $0x20] sm:$0xf]
  %v743 = vld [vmem:[%s4 + $0x24] sm:$0xf]
  %v744 = vld [vmem:[%s4 + $0x28] sm:$0xf]
  %v745 = vld [vmem:[%s4 + $0x2c] sm:$0xf]
  %v746 = vld [vmem:[%s4 + $0x30] sm:$0xf]
  %v747 = vld [vmem:[%s4 + $0x34] sm:$0xf]
  %v748 = vld [vmem:[%s4 + $0x38] sm:$0xf]
  %v749 = vld [vmem:[%s4 + $0x3c] sm:$0xf]
  %v750 = vpack.c.bf16 %v732, %v731
  %v751 = vld [vmem:[%s5] sm:$0xf]
  %v752 = vld [vmem:[%s5 + $0x4] sm:$0xf]
  %v753 = vld [vmem:[%s5 + $0x8] sm:$0xf]
  %v754 = vld [vmem:[%s5 + $0xc] sm:$0xf]
  %v755 = vld [vmem:[%s5 + $0x10] sm:$0xf]
  %v756 = vld [vmem:[%s5 + $0x14] sm:$0xf]
  %v757 = vld [vmem:[%s5 + $0x18] sm:$0xf]
  %v758 = vld [vmem:[%s5 + $0x1c] sm:$0xf]
  %v759 = vld [vmem:[%s5 + $0x20] sm:$0xf]
  %v760 = vld [vmem:[%s5 + $0x24] sm:$0xf]
  %v761 = vld [vmem:[%s5 + $0x28] sm:$0xf]
  %v762 = vld [vmem:[%s5 + $0x2c] sm:$0xf]
  %v763 = vld [vmem:[%s5 + $0x30] sm:$0xf]
  %v764 = vld [vmem:[%s5 + $0x34] sm:$0xf]
  %v765 = vld [vmem:[%s5 + $0x38] sm:$0xf]
  %v766 = vld [vmem:[%s5 + $0x3c] sm:$0xf]
  %v783 = vunpack.c.l.b16 %v751
  %v784 = vunpack.c.l.b16 %v752
  %v785 = vunpack.c.l.b16 %v753
  %v786 = vunpack.c.l.b16 %v754
  %v787 = vunpack.c.l.b16 %v755
  %v788 = vunpack.c.l.b16 %v756
  %v789 = vunpack.c.l.b16 %v757
  %v790 = vunpack.c.l.b16 %v758
  %v791 = vunpack.c.l.b16 %v759
  %v792 = vunpack.c.l.b16 %v760
  %v793 = vunpack.c.l.b16 %v761
  %v794 = vunpack.c.l.b16 %v762
  %v795 = vunpack.c.l.b16 %v763
  %v796 = vunpack.c.l.b16 %v764
  %v797 = vunpack.c.l.b16 %v765
  %v798 = vunpack.c.l.b16 %v766
  %v799 = vpack.c.b16 %v784, %v783
  %v800 = vpack.c.b16 %v786, %v785
  %v801 = vpack.c.b16 %v788, %v787
  %v802 = vpack.c.b16 %v790, %v789
  %v803 = vpack.c.b16 %v792, %v791
  %v804 = vpack.c.b16 %v794, %v793
  %v805 = vpack.c.b16 %v796, %v795
  %v806 = vpack.c.b16 %v798, %v797
  %815 = vmatprep.subr.bf16.mxu0 0
  %816 = vmatpush1.bf16.msra.mxu0 %v799
  %817 = vmatprep.subr.bf16.mxu0 0
  %818 = vmatpush1.bf16.msra.mxu0 %v800
  %819 = vmatprep.subr.bf16.mxu0 0
  %820 = vmatpush1.bf16.msra.mxu0 %v801
  %821 = vmatprep.subr.bf16.mxu0 0
  %822 = vmatpush1.bf16.msra.mxu0 %v802
  %823 = vmatprep.subr.bf16.mxu0 0
  %824 = vmatpush1.bf16.msra.mxu0 %v803
  %825 = vmatprep.subr.bf16.mxu0 0
  %826 = vmatpush1.bf16.msra.mxu0 %v804
  %827 = vmatprep.subr.bf16.mxu0 0
  %828 = vmatpush1.bf16.msra.mxu0 %v805
  %829 = vmatprep.subr.bf16.mxu0 0
  %830 = vmatpush1.bf16.msra.mxu0 %v806
  %831 = vmatprep.subr.bf16.mxu0 0
  %832 = vmatpush1.bf16.msra.mxu0 0
  %833 = vmatprep.subr.bf16.mxu0 0
  %834 = vmatpush1.bf16.msra.mxu0 0
  %835 = vmatprep.subr.bf16.mxu0 0
  %836 = vmatpush1.bf16.msra.mxu0 0
  %837 = vmatprep.subr.bf16.mxu0 0
  %838 = vmatpush1.bf16.msra.mxu0 0
  %839 = vmatprep.subr.bf16.mxu0 0
  %840 = vmatpush1.bf16.msra.mxu0 0
  %841 = vmatprep.subr.bf16.mxu0 0
  %842 = vmatpush1.bf16.msra.mxu0 0
  %843 = vmatprep.subr.bf16.mxu0 0
  %844 = vmatpush1.bf16.msra.mxu0 0
  %845 = vmatprep.subr.bf16.mxu0 0
  %846 = vmatpush1.bf16.msra.mxu0 0
  %847 = vmatprep.mubr.bf16.mxu0 0
  %848 = vmatmul.mubr.bf16.gmra.mrb[0].mxu0 %v750
  %v849 = vpop.f32.mrb[0].mxu0
  %v850 = vadd.f32 0.0, %v849
  %v851 = vpop.f32.mrb[0].mxu0
  %v852 = vpop.f32.mrb[0].mxu0
  %v853 = vadd.f32 0.0, %v852
  %v854 = vpop.f32.mrb[0].mxu0
  %855 = vdwg.mxu0
  %v872 = vunpack.c.l.b16 %v734
  %v873 = vunpack.c.l.b16 %v735
  %v874 = vunpack.c.l.b16 %v736
  %v875 = vunpack.c.l.b16 %v737
  %v876 = vunpack.c.l.b16 %v738
  %v877 = vunpack.c.l.b16 %v739
  %v878 = vunpack.c.l.b16 %v740
  %v879 = vunpack.c.l.b16 %v741
  %v880 = vunpack.c.l.b16 %v742
  %v881 = vunpack.c.l.b16 %v743
  %v882 = vunpack.c.l.b16 %v744
  %v883 = vunpack.c.l.b16 %v745
  %v884 = vunpack.c.l.b16 %v746
  %v885 = vunpack.c.l.b16 %v747
  %v886 = vunpack.c.l.b16 %v748
  %v887 = vunpack.c.l.b16 %v749
  %v888 = vpack.c.b16 %v873, %v872
  %v889 = vpack.c.b16 %v875, %v874
  %v890 = vpack.c.b16 %v877, %v876
  %v891 = vpack.c.b16 %v879, %v878
  %v892 = vpack.c.b16 %v881, %v880
  %v893 = vpack.c.b16 %v883, %v882
  %v894 = vpack.c.b16 %v885, %v884
  %v895 = vpack.c.b16 %v887, %v886
  %904 = vmatprep.subr.bf16.mxu0 0
  %905 = vmatpush1.bf16.msra.mxu0 %v888
  %906 = vmatprep.subr.bf16.mxu0 0
  %907 = vmatpush1.bf16.msra.mxu0 %v889
  %908 = vmatprep.subr.bf16.mxu0 0
  %909 = vmatpush1.bf16.msra.mxu0 %v890
  %910 = vmatprep.subr.bf16.mxu0 0
  %911 = vmatpush1.bf16.msra.mxu0 %v891
  %912 = vmatprep.subr.bf16.mxu0 0
  %913 = vmatpush1.bf16.msra.mxu0 %v892
  %914 = vmatprep.subr.bf16.mxu0 0
  %915 = vmatpush1.bf16.msra.mxu0 %v893
  %916 = vmatprep.subr.bf16.mxu0 0
  %917 = vmatpush1.bf16.msra.mxu0 %v894
  %918 = vmatprep.subr.bf16.mxu0 0
  %919 = vmatpush1.bf16.msra.mxu0 %v895
  %920 = vmatprep.subr.bf16.mxu0 0
  %921 = vmatpush1.bf16.msra.mxu0 0
  %922 = vmatprep.subr.bf16.mxu0 0
  %923 = vmatpush1.bf16.msra.mxu0 0
  %924 = vmatprep.subr.bf16.mxu0 0
  %925 = vmatpush1.bf16.msra.mxu0 0
  %926 = vmatprep.subr.bf16.mxu0 0
  %927 = vmatpush1.bf16.msra.mxu0 0
  %928 = vmatprep.subr.bf16.mxu0 0
  %929 = vmatpush1.bf16.msra.mxu0 0
  %930 = vmatprep.subr.bf16.mxu0 0
  %931 = vmatpush1.bf16.msra.mxu0 0
  %932 = vmatprep.subr.bf16.mxu0 0
  %933 = vmatpush1.bf16.msra.mxu0 0
  %934 = vmatprep.subr.bf16.mxu0 0
  %935 = vmatpush1.bf16.msra.mxu0 0
  %936 = vmatprep.mubr.bf16.mxu0 0
  %937 = vmatmul.mubr.bf16.gmra.mrb[0].mxu0 %v733
  %v938 = vpop.f32.mrb[0].mxu0
  %v939 = vadd.f32 %v850, %v938
  %v940 = vpop.f32.mrb[0].mxu0
  %v941 = vpop.f32.mrb[0].mxu0
  %v942 = vadd.f32 %v853, %v941
  %v943 = vpop.f32.mrb[0].mxu0
  %944 = vdwg.mxu0
  %v945 = vld [vmem:[%s6] sm:$0x1]
  %v947 = vlaneseq
  %v948 = vshrl.u32 %v947, 7
  %v949 = vsub.s32 0, %v948
  %v950 = vrot.slane %v945, %v949
  %v952 = vadd.f32 %v939, %v950
  %v953 = vadd.f32 %v942, %v950
  %v954 = vmax.f32 %v952, 0.0
  %v955 = vmax.f32 %v953, 0.0
  %v956 = vsub.f32 %v429, %v44
  %v957 = vsub.f32 %v434, %v45
  %v958 = vsub.f32 %v510, %v46
  %v959 = vsub.f32 %v515, %v47
  %v960 = vmul.f32 %v429, %v44
  %v961 = vmul.f32 %v434, %v45
  %v962 = vmul.f32 %v510, %v46
  %v963 = vmul.f32 %v515, %v47
  %v964 = vpack.c.bf16 %v957, %v956
  %v965 = vpack.c.bf16 %v959, %v958
  %v966 = vld [vmem:[%s7] sm:$0xf]
  %v967 = vld [vmem:[%s7 + $0x4] sm:$0xf]
  %v968 = vld [vmem:[%s7 + $0x8] sm:$0xf]
  %v969 = vld [vmem:[%s7 + $0xc] sm:$0xf]
  %v970 = vld [vmem:[%s7 + $0x10] sm:$0xf]
  %v971 = vld [vmem:[%s7 + $0x14] sm:$0xf]
  %v972 = vld [vmem:[%s7 + $0x18] sm:$0xf]
  %v973 = vld [vmem:[%s7 + $0x1c] sm:$0xf]
  %v974 = vld [vmem:[%s7 + $0x20] sm:$0xf]
  %v975 = vld [vmem:[%s7 + $0x24] sm:$0xf]
  %v976 = vld [vmem:[%s7 + $0x28] sm:$0xf]
  %v977 = vld [vmem:[%s7 + $0x2c] sm:$0xf]
  %v978 = vld [vmem:[%s7 + $0x30] sm:$0xf]
  %v979 = vld [vmem:[%s7 + $0x34] sm:$0xf]
  %v980 = vld [vmem:[%s7 + $0x38] sm:$0xf]
  %v981 = vld [vmem:[%s7 + $0x3c] sm:$0xf]
  %v982 = vpack.c.bf16 %v961, %v960
  %v983 = vpack.c.bf16 %v963, %v962
  %v984 = vld [vmem:[%s8] sm:$0xf]
  %v985 = vld [vmem:[%s8 + $0x4] sm:$0xf]
  %v986 = vld [vmem:[%s8 + $0x8] sm:$0xf]
  %v987 = vld [vmem:[%s8 + $0xc] sm:$0xf]
  %v988 = vld [vmem:[%s8 + $0x10] sm:$0xf]
  %v989 = vld [vmem:[%s8 + $0x14] sm:$0xf]
  %v990 = vld [vmem:[%s8 + $0x18] sm:$0xf]
  %v991 = vld [vmem:[%s8 + $0x1c] sm:$0xf]
  %v992 = vld [vmem:[%s8 + $0x20] sm:$0xf]
  %v993 = vld [vmem:[%s8 + $0x24] sm:$0xf]
  %v994 = vld [vmem:[%s8 + $0x28] sm:$0xf]
  %v995 = vld [vmem:[%s8 + $0x2c] sm:$0xf]
  %v996 = vld [vmem:[%s8 + $0x30] sm:$0xf]
  %v997 = vld [vmem:[%s8 + $0x34] sm:$0xf]
  %v998 = vld [vmem:[%s8 + $0x38] sm:$0xf]
  %v999 = vld [vmem:[%s8 + $0x3c] sm:$0xf]
  %v1016 = vunpack.c.l.b16 %v984
  %v1017 = vunpack.c.l.b16 %v985
  %v1018 = vunpack.c.l.b16 %v986
  %v1019 = vunpack.c.l.b16 %v987
  %v1020 = vunpack.c.l.b16 %v988
  %v1021 = vunpack.c.l.b16 %v989
  %v1022 = vunpack.c.l.b16 %v990
  %v1023 = vunpack.c.l.b16 %v991
  %v1024 = vunpack.c.l.b16 %v992
  %v1025 = vunpack.c.l.b16 %v993
  %v1026 = vunpack.c.l.b16 %v994
  %v1027 = vunpack.c.l.b16 %v995
  %v1028 = vunpack.c.l.b16 %v996
  %v1029 = vunpack.c.l.b16 %v997
  %v1030 = vunpack.c.l.b16 %v998
  %v1031 = vunpack.c.l.b16 %v999
  %v1032 = vpack.c.b16 %v1017, %v1016
  %v1033 = vpack.c.b16 %v1019, %v1018
  %v1034 = vpack.c.b16 %v1021, %v1020
  %v1035 = vpack.c.b16 %v1023, %v1022
  %v1036 = vpack.c.b16 %v1025, %v1024
  %v1037 = vpack.c.b16 %v1027, %v1026
  %v1038 = vpack.c.b16 %v1029, %v1028
  %v1039 = vpack.c.b16 %v1031, %v1030
  %1048 = vmatprep.subr.bf16.mxu0 0
  %1049 = vmatpush1.bf16.msra.mxu0 %v1032
  %1050 = vmatprep.subr.bf16.mxu0 0
  %1051 = vmatpush1.bf16.msra.mxu0 %v1033
  %1052 = vmatprep.subr.bf16.mxu0 0
  %1053 = vmatpush1.bf16.msra.mxu0 %v1034
  %1054 = vmatprep.subr.bf16.mxu0 0
  %1055 = vmatpush1.bf16.msra.mxu0 %v1035
  %1056 = vmatprep.subr.bf16.mxu0 0
  %1057 = vmatpush1.bf16.msra.mxu0 %v1036
  %1058 = vmatprep.subr.bf16.mxu0 0
  %1059 = vmatpush1.bf16.msra.mxu0 %v1037
  %1060 = vmatprep.subr.bf16.mxu0 0
  %1061 = vmatpush1.bf16.msra.mxu0 %v1038
  %1062 = vmatprep.subr.bf16.mxu0 0
  %1063 = vmatpush1.bf16.msra.mxu0 %v1039
  %1064 = vmatprep.subr.bf16.mxu0 0
  %1065 = vmatpush1.bf16.msra.mxu0 0
  %1066 = vmatprep.subr.bf16.mxu0 0
  %1067 = vmatpush1.bf16.msra.mxu0 0
  %1068 = vmatprep.subr.bf16.mxu0 0
  %1069 = vmatpush1.bf16.msra.mxu0 0
  %1070 = vmatprep.subr.bf16.mxu0 0
  %1071 = vmatpush1.bf16.msra.mxu0 0
  %1072 = vmatprep.subr.bf16.mxu0 0
  %1073 = vmatpush1.bf16.msra.mxu0 0
  %1074 = vmatprep.subr.bf16.mxu0 0
  %1075 = vmatpush1.bf16.msra.mxu0 0
  %1076 = vmatprep.subr.bf16.mxu0 0
  %1077 = vmatpush1.bf16.msra.mxu0 0
  %1078 = vmatprep.subr.bf16.mxu0 0
  %1079 = vmatpush1.bf16.msra.mxu0 0
  %1080 = vmatprep.mubr.bf16.mxu0 0
  %1081 = vmatmul.mubr.bf16.gmra.mrb[0].mxu0 %v982
  %v1082 = vpop.f32.mrb[0].mxu0
  %v1083 = vadd.f32 0.0, %v1082
  %v1084 = vpop.f32.mrb[0].mxu0
  %v1085 = vpop.f32.mrb[0].mxu0
  %v1086 = vadd.f32 0.0, %v1085
  %v1087 = vpop.f32.mrb[0].mxu0
  %1088 = vmatprep.mubr.bf16.mxu0 0
  %1089 = vmatmul.mubr.bf16.gmra.mrb[0].mxu0 %v983
  %v1090 = vpop.f32.mrb[0].mxu0
  %v1091 = vadd.f32 0.0, %v1090
  %v1092 = vpop.f32.mrb[0].mxu0
  %v1093 = vpop.f32.mrb[0].mxu0
  %v1094 = vadd.f32 0.0, %v1093
  %v1095 = vpop.f32.mrb[0].mxu0
  %1096 = vdwg.mxu0
  %v1113 = vunpack.c.l.b16 %v966
  %v1114 = vunpack.c.l.b16 %v967
  %v1115 = vunpack.c.l.b16 %v968
  %v1116 = vunpack.c.l.b16 %v969
  %v1117 = vunpack.c.l.b16 %v970
  %v1118 = vunpack.c.l.b16 %v971
  %v1119 = vunpack.c.l.b16 %v972
  %v1120 = vunpack.c.l.b16 %v973
  %v1121 = vunpack.c.l.b16 %v974
  %v1122 = vunpack.c.l.b16 %v975
  %v1123 = vunpack.c.l.b16 %v976
  %v1124 = vunpack.c.l.b16 %v977
  %v1125 = vunpack.c.l.b16 %v978
  %v1126 = vunpack.c.l.b16 %v979
  %v1127 = vunpack.c.l.b16 %v980
  %v1128 = vunpack.c.l.b16 %v981
  %v1129 = vpack.c.b16 %v1114, %v1113
  %v1130 = vpack.c.b16 %v1116, %v1115
  %v1131 = vpack.c.b16 %v1118, %v1117
  %v1132 = vpack.c.b16 %v1120, %v1119
  %v1133 = vpack.c.b16 %v1122, %v1121
  %v1134 = vpack.c.b16 %v1124, %v1123
  %v1135 = vpack.c.b16 %v1126, %v1125
  %v1136 = vpack.c.b16 %v1128, %v1127
  %1145 = vmatprep.subr.bf16.mxu0 0
  %1146 = vmatpush1.bf16.msra.mxu0 %v1129
  %1147 = vmatprep.subr.bf16.mxu0 0
  %1148 = vmatpush1.bf16.msra.mxu0 %v1130
  %1149 = vmatprep.subr.bf16.mxu0 0
  %1150 = vmatpush1.bf16.msra.mxu0 %v1131
  %1151 = vmatprep.subr.bf16.mxu0 0
  %1152 = vmatpush1.bf16.msra.mxu0 %v1132
  %1153 = vmatprep.subr.bf16.mxu0 0
  %1154 = vmatpush1.bf16.msra.mxu0 %v1133
  %1155 = vmatprep.subr.bf16.mxu0 0
  %1156 = vmatpush1.bf16.msra.mxu0 %v1134
  %1157 = vmatprep.subr.bf16.mxu0 0
  %1158 = vmatpush1.bf16.msra.mxu0 %v1135
  %1159 = vmatprep.subr.bf16.mxu0 0
  %1160 = vmatpush1.bf16.msra.mxu0 %v1136
  %1161 = vmatprep.subr.bf16.mxu0 0
  %1162 = vmatpush1.bf16.msra.mxu0 0
  %1163 = vmatprep.subr.bf16.mxu0 0
  %1164 = vmatpush1.bf16.msra.mxu0 0
  %1165 = vmatprep.subr.bf16.mxu0 0
  %1166 = vmatpush1.bf16.msra.mxu0 0
  %1167 = vmatprep.subr.bf16.mxu0 0
  %1168 = vmatpush1.bf16.msra.mxu0 0
  %1169 = vmatprep.subr.bf16.mxu0 0
  %1170 = vmatpush1.bf16.msra.mxu0 0
  %1171 = vmatprep.subr.bf16.mxu0 0
  %1172 = vmatpush1.bf16.msra.mxu0 0
  %1173 = vmatprep.subr.bf16.mxu0 0
  %1174 = vmatpush1.bf16.msra.mxu0 0
  %1175 = vmatprep.subr.bf16.mxu0 0
  %1176 = vmatpush1.bf16.msra.mxu0 0
  %1177 = vmatprep.mubr.bf16.mxu0 0
  %1178 = vmatmul.mubr.bf16.gmra.mrb[0].mxu0 %v964
  %v1179 = vpop.f32.mrb[0].mxu0
  %v1180 = vadd.f32 %v1083, %v1179
  %v1181 = vpop.f32.mrb[0].mxu0
  %v1182 = vpop.f32.mrb[0].mxu0
  %v1183 = vadd.f32 %v1086, %v1182
  %v1184 = vpop.f32.mrb[0].mxu0
  %1185 = vmatprep.mubr.bf16.mxu0 0
  %1186 = vmatmul.mubr.bf16.gmra.mrb[0].mxu0 %v965
  %v1187 = vpop.f32.mrb[0].mxu0
  %v1188 = vadd.f32 %v1091, %v1187
  %v1189 = vpop.f32.mrb[0].mxu0
  %v1190 = vpop.f32.mrb[0].mxu0
  %v1191 = vadd.f32 %v1094, %v1190
  %v1192 = vpop.f32.mrb[0].mxu0
  %1193 = vdwg.mxu0
  %v1194 = vld [vmem:[%s9] sm:$0x1]
  %v1196 = vlaneseq
  %v1197 = vshrl.u32 %v1196, 7
  %v1198 = vsub.s32 0, %v1197
  %v1199 = vrot.slane %v1194, %v1198
  %v1201 = vadd.f32 %v1180, %v1199
  %v1202 = vadd.f32 %v1183, %v1199
  %v1203 = vadd.f32 %v1188, %v1199
  %v1204 = vadd.f32 %v1191, %v1199
  %v1205 = vmax.f32 %v1201, 0.0
  %v1206 = vmax.f32 %v1202, 0.0
  %v1207 = vmax.f32 %v1203, 0.0
  %v1208 = vmax.f32 %v1204, 0.0
  %v1209 = vmax.f32 %v1205, %v1206
  %v1210 = vrot.slane %v1209, 4
  %v1211 = vmax.f32 %v1209, %v1210
  %v1212 = vrot.slane %v1211, 2
  %v1213 = vmax.f32 %v1211, %v1212
  %v1214 = vrot.slane %v1213, 1
  %v1215 = vmax.f32 %v1213, %v1214
  %v1216 = vmax.f32 %v1207, %v1208
  %v1217 = vrot.slane %v1216, 4
  %v1218 = vmax.f32 %v1216, %v1217
  %v1219 = vrot.slane %v1218, 2
  %v1220 = vmax.f32 %v1218, %v1219
  %v1221 = vrot.slane %v1220, 1
  %v1222 = vmax.f32 %v1220, %v1221
  %v1223 = vrot.slane %v954, 4
  %v1224 = vmax.f32 %v954, %v1223
  %v1225 = vrot.slane %v1224, 2
  %v1226 = vmax.f32 %v1224, %v1225
  %v1227 = vrot.slane %v1226, 1
  %v1228 = vmax.f32 %v1226, %v1227
  %v1229 = vrot.slane %v955, 4
  %v1230 = vmax.f32 %v955, %v1229
  %v1231 = vrot.slane %v1230, 2
  %v1232 = vmax.f32 %v1230, %v1231
  %v1233 = vrot.slane %v1232, 1
  %v1234 = vmax.f32 %v1232, %v1233
  %v1235 = vld [vmem:[%s10] sm:$0x1]
  %v1237 = vlaneseq
  %v1238 = vshrl.u32 %v1237, 7
  %v1239 = vsub.s32 0, %v1238
  %v1240 = vrot.slane %v1235, %v1239
  %v1242 = vmul.f32 %v1215, %v1240
  %v1243 = vmul.f32 %v1222, %v1240
  %v1246 = vrot.slane %v1243, 7
  %vm1247 = vcmask 1041409
  %v1248 = vsel %vm1247, %v1246, %v1242
  %vm1250 = vcmask 1041408
  %v1251 = vsel %vm1250, %v1248, 0.0
  %1252 = vadd.xlane.f32.xlu0 %v1251
  %v1253 = vpop.xlane.xlu0 %1252
  %v1254 = vld [vmem:[%s11] sm:$0x1]
  %v1256 = vlaneseq
  %v1257 = vshrl.u32 %v1256, 7
  %v1258 = vsub.s32 0, %v1257
  %v1259 = vrot.slane %v1254, %v1258
  %v1261 = vmul.f32 %v1228, %v1259
  %v1262 = vmul.f32 %v1234, %v1259
  %v1265 = vrot.slane %v1262, 7
  %v1266 = vsel %vm1247, %v1265, %v1261
  %v1268 = vsel %vm1250, %v1266, 0.0
  %1269 = vadd.xlane.f32.xlu0 %v1268
  %v1270 = vpop.xlane.xlu0 %1269
  %v1271 = vadd.f32 %v1253, %v1270
  %vm1272 = vcmask 1024
  %1273 = vst.msk [vmem:[%s12] sm:$0x3] %vm1272, %v1271
  // Predicated region
  $region50: #{dcmn_forward.2} parent=0 // pred_check
    _
  $region51: #{dcmn_forward.2} parent=0 // pred_check_branch
    %1275 = sbr.rel (0) target = $region53
  $region52: #{dcmn_forward.2} parent=0 // pred_region
    _
  $region53: #{dcmn_forward.2} parent=0 // pred_fallthru
    _
  // Predicated region
  $region54: #{dcmn_forward.2} parent=0 // pred_check
    _
  $region55: #{dcmn_forward.2} parent=0 // pred_check_branch
    %1277 = sbr.rel (0) target = $region57
  $region56: #{dcmn_forward.2} parent=0 // pred_region
    _
  $region57: #{dcmn_forward.2} parent=0 // pred_fallthru
    _

// kernel: dcmn_forward.3
$region0: #{dcmn_forward.3}
  #allocation0 [shape = 'u32[]', space=smem, size = 0x4, offset = 0x4, fixed_abs, tag = 'smem constant byte address 0x4 - core index']
  #allocation1 [shape = 'u32[144,128]{1,0:T(1,128)}', space=vmem, size = 0x12000, scoped, tag = 'internal scratch']
  %s0 = inlined_call_operand.vmem [shape: f32[4,2,8,128], index: 0, kind: input, shape index: {}]
  %s1 = inlined_call_operand.vmem [shape: f32[2,16,128], index: 1, kind: input, shape index: {}]
  %s2 = inlined_call_operand.vmem [shape: bf16[128,128], index: 2, kind: input, shape index: {}]
  %s3 = inlined_call_operand.vmem [shape: f32[1,128], index: 3, kind: input, shape index: {}]
  %s4 = inlined_call_operand.vmem [shape: bf16[128,128], index: 4, kind: input, shape index: {}]
  %s5 = inlined_call_operand.hbm [shape: bf16[128,128], index: 5, kind: input, shape index: {}]
  %s6 = inlined_call_operand.vmem [shape: f32[1,128], index: 6, kind: input, shape index: {}]
  %s7 = inlined_call_operand.hbm [shape: bf16[128,128], index: 7, kind: input, shape index: {}]
  %s8 = inlined_call_operand.hbm [shape: bf16[128,128], index: 8, kind: input, shape index: {}]
  %s9 = inlined_call_operand.hbm [shape: f32[1,128], index: 9, kind: input, shape index: {}]
  %s10 = inlined_call_operand.hbm [shape: f32[1,128], index: 10, kind: input, shape index: {}]
  %s11 = inlined_call_operand.hbm [shape: f32[1,128], index: 11, kind: input, shape index: {}]
  %s12 = inlined_call_operand.vmem [shape: f32[4,2,1], index: 12, kind: output, shape index: {}]
  %s13 = sld [smem:[#allocation0]]
  $region105: #{dcmn_forward.3} parent=0
    _
  %s15 = ssub.s32 1, %s13
  %s16 = scalar_select 0, %s15, %s13
  $region1: #{dcmn_forward.3} parent=0
    #allocation2 [shape = 'u8[32768]{0}', space=vmem, size = 0x8000, scoped, tag = 'input window, operand 5, single buffered']
    #allocation3 [shape = 's32[2]{0}', space=sflag, size = 0x8, scoped, tag = 'scoped memory for dcmn_forward.3']
    #allocation4 [shape = 'u8[32768]{0}', space=vmem, size = 0x8000, scoped, tag = 'input window, operand 7, single buffered']
    #allocation5 [shape = 's32[1]{0}', space=sflag, size = 0x4, scoped, tag = 'scoped memory for dcmn_forward.3']
    #allocation6 [shape = 'u8[32768]{0}', space=vmem, size = 0x8000, scoped, tag = 'input window, operand 8, single buffered']
    #allocation7 [shape = 'u8[512]{0}', space=vmem, size = 0x400, scoped, tag = 'input window, operand 9, single buffered']
    #allocation8 [shape = 's32[1]{0}', space=sflag, size = 0x4, scoped, tag = 'scoped memory for dcmn_forward.3']
    #allocation9 [shape = 'u8[512]{0}', space=vmem, size = 0x400, scoped, tag = 'input window, operand 10, single buffered']
    #allocation10 [shape = 'u8[512]{0}', space=vmem, size = 0x400, scoped, tag = 'input window, operand 11, single buffered']
    #allocation11 [shape = 's32[1]{0}', space=sflag, size = 0x4, scoped, tag = 'scoped memory for dcmn_forward.3']
    %17 = vsyncpa [#allocation3], 0
    %18 = vsyncpa [#allocation5], 0
    %19 = vsyncpa [#allocation8], 0
    %20 = vsyncpa [#allocation11], 0
    loop: start=0, step=1, limit=6
    $region2: #{dcmn_forward.3} parent=1 // loop_pre_header
      _
    $region3: #{dcmn_forward.3} parent=1 // loop_header
      %s22 = sphi 0, %s26
      %p23 = scmp.ge.s32.totalorder %s22, 6
      %s32 = sphi 0, %s34
      %s35 = sphi 0, %s32
      %s36 = sphi 0, %s35
      %s52 = sphi 0, %s36
      %s56 = sphi 0, %s56
      %s58 = sphi 0, %s56
      %s59 = sphi 0, %s58
      %s73 = sphi 0, %s59
      %s77 = sphi 0, %s77
      %s79 = sphi 0, %s77
      %s80 = sphi 0, %s79
      %s94 = sphi 0, %s80
      %s98 = sphi 0, %s98
      %s100 = sphi 0, %s98
      %s101 = sphi 0, %s100
      %s115 = sphi 0, %s101
      %s119 = sphi 0, %s119
      %s121 = sphi 0, %s119
      %s122 = sphi 0, %s121
      %s136 = sphi 0, %s122
      %s140 = sphi 0, %s140
      %s142 = sphi 0, %s140
      %s143 = sphi 0, %s142
      %s157 = sphi 0, %s143
      %s161 = sphi 0, %s161
      %s163 = sphi 0, %s161
      %s164 = sphi 0, %s163
      %s178 = sphi 0, %s164
      %s182 = sphi 0, %s182
      %s184 = sphi 0, %s182
      %s185 = sphi 0, %s184
      %s199 = sphi 0, %s185
      %s203 = sphi 0, %s203
      %s205 = sphi 0, %s203
      %s206 = sphi 0, %s205
      %s220 = sphi 0, %s206
      %s224 = sphi 0, %s224
      %s226 = sphi 0, %s224
      %s227 = sphi 0, %s226
      %s241 = sphi 0, %s227
      %s245 = sphi 0, %s245
      %s247 = sphi 0, %s245
      %s248 = sphi 0, %s247
      %s262 = sphi 0, %s248
      %s266 = sphi 0, %s266
      %s268 = sphi 0, %s266
      %s269 = sphi 0, %s268
      %s283 = sphi 0, %s269
      %s289 = sphi 0, %s291
      %s292 = sphi 0, %s289
      %s293 = sphi 0, %s292
      %s309 = sphi 0, %s293
    $region4: #{dcmn_forward.3} parent=1 // loop_header_branch
      %25 = sbr.rel (%p23) target = $region8
    $region5: #{dcmn_forward.3} parent=1 // loop_body
      %s27 = ssub.s32 %s22, 1
      %s28 = ssub.s32 %s22, 2
      %s29 = sadd.s32 %s22, 1
      %s30 = ssub.s32 %s22, %s29
      %p31 = scmp.eq.s32.totalorder %s30, 0
      %s33 = sadd.s32 %s32, 1
      %s34 = scalar_select %p31, %s32, %s33
      %p37 = pneg %p31
      %p38 = scmp.eq.s32.totalorder %s22, 3
      %p39 = por %p37, %p38
      %p40 = scmp.ne.s32.totalorder %s32, %s35
      %p41 = scmp.eq.s32.totalorder %s22, 0
      %p42 = por %p40, %p41
      %p43 = scmp.ne.s32.totalorder %s32, %s35
      %p44 = scmp.eq.s32.totalorder %s27, 3
      %p45 = por %p43, %p44
      %p46 = scmp.ne.s32.totalorder %s35, %s36
      %p47 = scmp.eq.s32.totalorder %s27, 0
      %p48 = por %p46, %p47
      %p49 = scmp.ne.s32.totalorder %s35, %s36
      %p50 = scmp.eq.s32.totalorder %s28, 3
      %p51 = por %p49, %p50
      %p53 = scmp.ne.s32.totalorder %s36, %s52
      %p54 = scmp.eq.s32.totalorder %s28, 0
      %p55 = por %p53, %p54
      %s57 = sadd.s32 %s56, 1
      %p60 = scmp.eq.s32.totalorder %s22, 3
      %p61 = scmp.ne.s32.totalorder %s56, %s58
      %p62 = scmp.eq.s32.totalorder %s22, 0
      %p63 = por %p61, %p62
      %p64 = scmp.ne.s32.totalorder %s56, %s58
      %p65 = scmp.eq.s32.totalorder %s27, 3
      %p66 = por %p64, %p65
      %p67 = scmp.ne.s32.totalorder %s58, %s59
      %p68 = scmp.eq.s32.totalorder %s27, 0
      %p69 = por %p67, %p68
      %p70 = scmp.ne.s32.totalorder %s58, %s59
      %p71 = scmp.eq.s32.totalorder %s28, 3
      %p72 = por %p70, %p71
      %p74 = scmp.ne.s32.totalorder %s59, %s73
      %p75 = scmp.eq.s32.totalorder %s28, 0
      %p76 = por %p74, %p75
      %s78 = sadd.s32 %s77, 1
      %p81 = scmp.eq.s32.totalorder %s22, 3
      %p82 = scmp.ne.s32.totalorder %s77, %s79
      %p83 = scmp.eq.s32.totalorder %s22, 0
      %p84 = por %p82, %p83
      %p85 = scmp.ne.s32.totalorder %s77, %s79
      %p86 = scmp.eq.s32.totalorder %s27, 3
      %p87 = por %p85, %p86
      %p88 = scmp.ne.s32.totalorder %s79, %s80
      %p89 = scmp.eq.s32.totalorder %s27, 0
      %p90 = por %p88, %p89
      %p91 = scmp.ne.s32.totalorder %s79, %s80
      %p92 = scmp.eq.s32.totalorder %s28, 3
      %p93 = por %p91, %p92
      %p95 = scmp.ne.s32.totalorder %s80, %s94
      %p96 = scmp.eq.s32.totalorder %s28, 0
      %p97 = por %p95, %p96
      %s99 = sadd.s32 %s98, 1
      %p102 = scmp.eq.s32.totalorder %s22, 3
      %p103 = scmp.ne.s32.totalorder %s98, %s100
      %p104 = scmp.eq.s32.totalorder %s22, 0
      %p105 = por %p103, %p104
      %p106 = scmp.ne.s32.totalorder %s98, %s100
      %p107 = scmp.eq.s32.totalorder %s27, 3
      %p108 = por %p106, %p107
      %p109 = scmp.ne.s32.totalorder %s100, %s101
      %p110 = scmp.eq.s32.totalorder %s27, 0
      %p111 = por %p109, %p110
      %p112 = scmp.ne.s32.totalorder %s100, %s101
      %p113 = scmp.eq.s32.totalorder %s28, 3
      %p114 = por %p112, %p113
      %p116 = scmp.ne.s32.totalorder %s101, %s115
      %p117 = scmp.eq.s32.totalorder %s28, 0
      %p118 = por %p116, %p117
      %s120 = sadd.s32 %s119, 1
      %p123 = scmp.eq.s32.totalorder %s22, 3
      %p124 = scmp.ne.s32.totalorder %s119, %s121
      %p125 = scmp.eq.s32.totalorder %s22, 0
      %p126 = por %p124, %p125
      %p127 = scmp.ne.s32.totalorder %s119, %s121
      %p128 = scmp.eq.s32.totalorder %s27, 3
      %p129 = por %p127, %p128
      %p130 = scmp.ne.s32.totalorder %s121, %s122
      %p131 = scmp.eq.s32.totalorder %s27, 0
      %p132 = por %p130, %p131
      %p133 = scmp.ne.s32.totalorder %s121, %s122
      %p134 = scmp.eq.s32.totalorder %s28, 3
      %p135 = por %p133, %p134
      %p137 = scmp.ne.s32.totalorder %s122, %s136
      %p138 = scmp.eq.s32.totalorder %s28, 0
      %p139 = por %p137, %p138
      %s141 = sadd.s32 %s140, 1
      %p144 = scmp.eq.s32.totalorder %s22, 3
      %p145 = scmp.ne.s32.totalorder %s140, %s142
      %p146 = scmp.eq.s32.totalorder %s22, 0
      %p147 = por %p145, %p146
      %p148 = scmp.ne.s32.totalorder %s140, %s142
      %p149 = scmp.eq.s32.totalorder %s27, 3
      %p150 = por %p148, %p149
      %p151 = scmp.ne.s32.totalorder %s142, %s143
      %p152 = scmp.eq.s32.totalorder %s27, 0
      %p153 = por %p151, %p152
      %p154 = scmp.ne.s32.totalorder %s142, %s143
      %p155 = scmp.eq.s32.totalorder %s28, 3
      %p156 = por %p154, %p155
      %p158 = scmp.ne.s32.totalorder %s143, %s157
      %p159 = scmp.eq.s32.totalorder %s28, 0
      %p160 = por %p158, %p159
      %s162 = sadd.s32 %s161, 1
      %p165 = scmp.eq.s32.totalorder %s22, 3
      %p166 = scmp.ne.s32.totalorder %s161, %s163
      %p167 = scmp.eq.s32.totalorder %s22, 0
      %p168 = por %p166, %p167
      %p169 = scmp.ne.s32.totalorder %s161, %s163
      %p170 = scmp.eq.s32.totalorder %s27, 3
      %p171 = por %p169, %p170
      %p172 = scmp.ne.s32.totalorder %s163, %s164
      %p173 = scmp.eq.s32.totalorder %s27, 0
      %p174 = por %p172, %p173
      %p175 = scmp.ne.s32.totalorder %s163, %s164
      %p176 = scmp.eq.s32.totalorder %s28, 3
      %p177 = por %p175, %p176
      %p179 = scmp.ne.s32.totalorder %s164, %s178
      %p180 = scmp.eq.s32.totalorder %s28, 0
      %p181 = por %p179, %p180
      %s183 = sadd.s32 %s182, 1
      %p186 = scmp.eq.s32.totalorder %s22, 3
      %p187 = scmp.ne.s32.totalorder %s182, %s184
      %p188 = scmp.eq.s32.totalorder %s22, 0
      %p189 = por %p187, %p188
      %p190 = scmp.ne.s32.totalorder %s182, %s184
      %p191 = scmp.eq.s32.totalorder %s27, 3
      %p192 = por %p190, %p191
      %p193 = scmp.ne.s32.totalorder %s184, %s185
      %p194 = scmp.eq.s32.totalorder %s27, 0
      %p195 = por %p193, %p194
      %p196 = scmp.ne.s32.totalorder %s184, %s185
      %p197 = scmp.eq.s32.totalorder %s28, 3
      %p198 = por %p196, %p197
      %p200 = scmp.ne.s32.totalorder %s185, %s199
      %p201 = scmp.eq.s32.totalorder %s28, 0
      %p202 = por %p200, %p201
      %s204 = sadd.s32 %s203, 1
      %p207 = scmp.eq.s32.totalorder %s22, 3
      %p208 = scmp.ne.s32.totalorder %s203, %s205
      %p209 = scmp.eq.s32.totalorder %s22, 0
      %p210 = por %p208, %p209
      %p211 = scmp.ne.s32.totalorder %s203, %s205
      %p212 = scmp.eq.s32.totalorder %s27, 3
      %p213 = por %p211, %p212
      %p214 = scmp.ne.s32.totalorder %s205, %s206
      %p215 = scmp.eq.s32.totalorder %s27, 0
      %p216 = por %p214, %p215
      %p217 = scmp.ne.s32.totalorder %s205, %s206
      %p218 = scmp.eq.s32.totalorder %s28, 3
      %p219 = por %p217, %p218
      %p221 = scmp.ne.s32.totalorder %s206, %s220
      %p222 = scmp.eq.s32.totalorder %s28, 0
      %p223 = por %p221, %p222
      %s225 = sadd.s32 %s224, 1
      %p228 = scmp.eq.s32.totalorder %s22, 3
      %p229 = scmp.ne.s32.totalorder %s224, %s226
      %p230 = scmp.eq.s32.totalorder %s22, 0
      %p231 = por %p229, %p230
      %p232 = scmp.ne.s32.totalorder %s224, %s226
      %p233 = scmp.eq.s32.totalorder %s27, 3
      %p234 = por %p232, %p233
      %p235 = scmp.ne.s32.totalorder %s226, %s227
      %p236 = scmp.eq.s32.totalorder %s27, 0
      %p237 = por %p235, %p236
      %p238 = scmp.ne.s32.totalorder %s226, %s227
      %p239 = scmp.eq.s32.totalorder %s28, 3
      %p240 = por %p238, %p239
      %p242 = scmp.ne.s32.totalorder %s227, %s241
      %p243 = scmp.eq.s32.totalorder %s28, 0
      %p244 = por %p242, %p243
      %s246 = sadd.s32 %s245, 1
      %p249 = scmp.eq.s32.totalorder %s22, 3
      %p250 = scmp.ne.s32.totalorder %s245, %s247
      %p251 = scmp.eq.s32.totalorder %s22, 0
      %p252 = por %p250, %p251
      %p253 = scmp.ne.s32.totalorder %s245, %s247
      %p254 = scmp.eq.s32.totalorder %s27, 3
      %p255 = por %p253, %p254
      %p256 = scmp.ne.s32.totalorder %s247, %s248
      %p257 = scmp.eq.s32.totalorder %s27, 0
      %p258 = por %p256, %p257
      %p259 = scmp.ne.s32.totalorder %s247, %s248
      %p260 = scmp.eq.s32.totalorder %s28, 3
      %p261 = por %p259, %p260
      %p263 = scmp.ne.s32.totalorder %s248, %s262
      %p264 = scmp.eq.s32.totalorder %s28, 0
      %p265 = por %p263, %p264
      %s267 = sadd.s32 %s266, 1
      %p270 = scmp.eq.s32.totalorder %s22, 3
      %p271 = scmp.ne.s32.totalorder %s266, %s268
      %p272 = scmp.eq.s32.totalorder %s22, 0
      %p273 = por %p271, %p272
      %p274 = scmp.ne.s32.totalorder %s266, %s268
      %p275 = scmp.eq.s32.totalorder %s27, 3
      %p276 = por %p274, %p275
      %p277 = scmp.ne.s32.totalorder %s268, %s269
      %p278 = scmp.eq.s32.totalorder %s27, 0
      %p279 = por %p277, %p278
      %p280 = scmp.ne.s32.totalorder %s268, %s269
      %p281 = scmp.eq.s32.totalorder %s28, 3
      %p282 = por %p280, %p281
      %p284 = scmp.ne.s32.totalorder %s269, %s283
      %p285 = scmp.eq.s32.totalorder %s28, 0
      %p286 = por %p284, %p285
      %s287 = ssub.s32 %s22, %s29
      %p288 = scmp.eq.s32.totalorder %s287, 0
      %s290 = sadd.s32 %s289, 1
      %s291 = scalar_select %p288, %s289, %s290
      %p294 = pneg %p288
      %p295 = scmp.eq.s32.totalorder %s22, 3
      %p296 = por %p294, %p295
      %p297 = scmp.ne.s32.totalorder %s289, %s292
      %p298 = scmp.eq.s32.totalorder %s22, 0
      %p299 = por %p297, %p298
      %p300 = scmp.ne.s32.totalorder %s289, %s292
      %p301 = scmp.eq.s32.totalorder %s27, 3
      %p302 = por %p300, %p301
      %p303 = scmp.ne.s32.totalorder %s292, %s293
      %p304 = scmp.eq.s32.totalorder %s27, 0
      %p305 = por %p303, %p304
      %p306 = scmp.ne.s32.totalorder %s292, %s293
      %p307 = scmp.eq.s32.totalorder %s28, 3
      %p308 = por %p306, %p307
      %p310 = scmp.ne.s32.totalorder %s293, %s309
      %p311 = scmp.eq.s32.totalorder %s28, 0
      %p312 = por %p310, %p311
      %p313 = scmp.le.s32.totalorder 1, %s22
      %p314 = scmp.lt.s32.totalorder %s22, 5
      %p315 = pnand %p313, %p314
      %p316 = pneg %p315
      // Predicated region
      $region9: #{dcmn_forward.3} parent=5 // pred_check
        _
      $region10: #{dcmn_forward.3} parent=5 // pred_check_branch
        %318 = sbr.rel (%p315) target = $region12
      $region11: #{dcmn_forward.3} parent=5 // pred_region
        %s319 = ssub.s32 %s22, 1
        // Predicated region
        $region13: #{dcmn_forward.3} parent=11 // pred_check
          %p320 = pneg %p69
        $region14: #{dcmn_forward.3} parent=11 // pred_check_branch
          %322 = sbr.rel (%p320) target = $region16
        $region15: #{dcmn_forward.3} parent=11 // pred_region
          _
        $region16: #{dcmn_forward.3} parent=11 // pred_fallthru
          _
        // Predicated region
        $region17: #{dcmn_forward.3} parent=11 // pred_check
          %p323 = pneg %p90
        $region18: #{dcmn_forward.3} parent=11 // pred_check_branch
          %325 = sbr.rel (%p323) target = $region20
        $region19: #{dcmn_forward.3} parent=11 // pred_region
          _
        $region20: #{dcmn_forward.3} parent=11 // pred_fallthru
          _
        // Predicated region
        $region21: #{dcmn_forward.3} parent=11 // pred_check
          %p326 = pneg %p111
        $region22: #{dcmn_forward.3} parent=11 // pred_check_branch
          %328 = sbr.rel (%p326) target = $region24
        $region23: #{dcmn_forward.3} parent=11 // pred_region
          _
        $region24: #{dcmn_forward.3} parent=11 // pred_fallthru
          _
        // Predicated region
        $region25: #{dcmn_forward.3} parent=11 // pred_check
          %p329 = pneg %p132
        $region26: #{dcmn_forward.3} parent=11 // pred_check_branch
          %331 = sbr.rel (%p329) target = $region28
        $region27: #{dcmn_forward.3} parent=11 // pred_region
          _
        $region28: #{dcmn_forward.3} parent=11 // pred_fallthru
          _
        // Predicated region
        $region29: #{dcmn_forward.3} parent=11 // pred_check
          %p332 = pneg %p153
        $region30: #{dcmn_forward.3} parent=11 // pred_check_branch
          %334 = sbr.rel (%p332) target = $region32
        $region31: #{dcmn_forward.3} parent=11 // pred_region
          %s336 = ssub.s32 1024, 1024
          %337 = vsyncadd [#allocation3], %s336
          %s338 = sshll.u32 [#allocation2], 4
          %s339 = int_to_ptr.vmem [resolvable:$true] %s338
          %344 = dma.hbm_to_vmem [thread:$0]  %s5, 1024, %s339, [#allocation3], 64, 64, 4
        $region32: #{dcmn_forward.3} parent=11 // pred_fallthru
          _
        // Predicated region
        $region33: #{dcmn_forward.3} parent=11 // pred_check
          %p345 = pneg %p174
        $region34: #{dcmn_forward.3} parent=11 // pred_check_branch
          %347 = sbr.rel (%p345) target = $region36
        $region35: #{dcmn_forward.3} parent=11 // pred_region
          _
        $region36: #{dcmn_forward.3} parent=11 // pred_fallthru
          _
        // Predicated region
        $region37: #{dcmn_forward.3} parent=11 // pred_check
          %p348 = pneg %p195
        $region38: #{dcmn_forward.3} parent=11 // pred_check_branch
          %350 = sbr.rel (%p348) target = $region40
        $region39: #{dcmn_forward.3} parent=11 // pred_region
          %s352 = ssub.s32 1024, 1024
          %353 = vsyncadd [#allocation5], %s352
          %s354 = sshll.u32 [#allocation4], 4
          %s355 = int_to_ptr.vmem [resolvable:$true] %s354
          %360 = dma.hbm_to_vmem [thread:$0]  %s7, 1024, %s355, [#allocation5], 64, 64, 4
        $region40: #{dcmn_forward.3} parent=11 // pred_fallthru
          _
        // Predicated region
        $region41: #{dcmn_forward.3} parent=11 // pred_check
          %p361 = pneg %p216
        $region42: #{dcmn_forward.3} parent=11 // pred_check_branch
          %363 = sbr.rel (%p361) target = $region44
        $region43: #{dcmn_forward.3} parent=11 // pred_region
          %s365 = ssub.s32 1024, 1024
          %366 = vsyncadd [#allocation5], %s365
          %s367 = sshll.u32 [#allocation6], 4
          %s368 = int_to_ptr.vmem [resolvable:$true] %s367
          %373 = dma.hbm_to_vmem [thread:$0]  %s8, 1024, %s368, [#allocation5], 64, 64, 4
        $region44: #{dcmn_forward.3} parent=11 // pred_fallthru
          _
        // Predicated region
        $region45: #{dcmn_forward.3} parent=11 // pred_check
          %p374 = pneg %p237
        $region46: #{dcmn_forward.3} parent=11 // pred_check_branch
          %376 = sbr.rel (%p374) target = $region48
        $region47: #{dcmn_forward.3} parent=11 // pred_region
          %s378 = ssub.s32 16, 16
          %379 = vsyncadd [#allocation8], %s378
          %s381 = sshll.u32 [#allocation7], 4
          %s382 = int_to_ptr.vmem [resolvable:$true] %s381
          %384 = dma.hbm_to_vmem [thread:$0]  %s9, 16, %s382, [#allocation8]
        $region48: #{dcmn_forward.3} parent=11 // pred_fallthru
          _
        // Predicated region
        $region49: #{dcmn_forward.3} parent=11 // pred_check
          %p385 = pneg %p258
        $region50: #{dcmn_forward.3} parent=11 // pred_check_branch
          %387 = sbr.rel (%p385) target = $region52
        $region51: #{dcmn_forward.3} parent=11 // pred_region
          %s389 = ssub.s32 16, 16
          %390 = vsyncadd [#allocation8], %s389
          %s392 = sshll.u32 [#allocation9], 4
          %s393 = int_to_ptr.vmem [resolvable:$true] %s392
          %395 = dma.hbm_to_vmem [thread:$0]  %s10, 16, %s393, [#allocation8]
        $region52: #{dcmn_forward.3} parent=11 // pred_fallthru
          _
        // Predicated region
        $region53: #{dcmn_forward.3} parent=11 // pred_check
          %p396 = pneg %p279
        $region54: #{dcmn_forward.3} parent=11 // pred_check_branch
          %398 = sbr.rel (%p396) target = $region56
        $region55: #{dcmn_forward.3} parent=11 // pred_region
          %s400 = ssub.s32 16, 16
          %401 = vsyncadd [#allocation11], %s400
          %s403 = sshll.u32 [#allocation10], 4
          %s404 = int_to_ptr.vmem [resolvable:$true] %s403
          %406 = dma.hbm_to_vmem [thread:$0]  %s11, 16, %s404, [#allocation11]
        $region56: #{dcmn_forward.3} parent=11 // pred_fallthru
          _
      $region12: #{dcmn_forward.3} parent=5 // pred_fallthru
        _
      %p407 = scmp.lt.s32.totalorder %s22, 4
      // Predicated region
      $region57: #{dcmn_forward.3} parent=5 // pred_check
        %p408 = pneg %p407
      $region58: #{dcmn_forward.3} parent=5 // pred_check_branch
        %410 = sbr.rel (%p408) target = $region60
      $region59: #{dcmn_forward.3} parent=5 // pred_region
        // Predicated region
        $region61: #{dcmn_forward.3} parent=59 // pred_check
          %p411 = pneg %p42
        $region62: #{dcmn_forward.3} parent=59 // pred_check_branch
          %413 = sbr.rel (%p411) target = $region64
        $region63: #{dcmn_forward.3} parent=59 // pred_region
          %p414 = scmp.lt.s32.totalorder %s22, 3
          %s415 = scalar_select %p414, %s22, 3
          %s416 = smul.addr %s415, 2
          %s417 = smul.addr %s416, 8
          %s418 = scalar_lea.vmem %s0, %s417
        $region64: #{dcmn_forward.3} parent=59 // pred_fallthru
          _
      $region60: #{dcmn_forward.3} parent=5 // pred_fallthru
        _
      %p419 = scmp.le.s32.totalorder 1, %s22
      %p420 = scmp.lt.s32.totalorder %s22, 5
      %p421 = pnand %p419, %p420
      %p422 = pneg %p421
      // Predicated region
      $region65: #{dcmn_forward.3} parent=5 // pred_check
        _
      $region66: #{dcmn_forward.3} parent=5 // pred_check_branch
        %424 = sbr.rel (%p421) target = $region68
      $region67: #{dcmn_forward.3} parent=5 // pred_region
        %s425 = ssub.s32 %s22, 1
        // Predicated region
        $region69: #{dcmn_forward.3} parent=67 // pred_check
          %p426 = pneg %p153
        $region70: #{dcmn_forward.3} parent=67 // pred_check_branch
          %428 = sbr.rel (%p426) target = $region72
        $region71: #{dcmn_forward.3} parent=67 // pred_region
          %429 = dma.done [#allocation3], 1024
        $region72: #{dcmn_forward.3} parent=67 // pred_fallthru
          _
        // Predicated region
        $region73: #{dcmn_forward.3} parent=67 // pred_check
          %p430 = pneg %p195
        $region74: #{dcmn_forward.3} parent=67 // pred_check_branch
          %432 = sbr.rel (%p430) target = $region76
        $region75: #{dcmn_forward.3} parent=67 // pred_region
          %433 = dma.done [#allocation5], 1024
        $region76: #{dcmn_forward.3} parent=67 // pred_fallthru
          _
        // Predicated region
        $region77: #{dcmn_forward.3} parent=67 // pred_check
          %p434 = pneg %p216
        $region78: #{dcmn_forward.3} parent=67 // pred_check_branch
          %436 = sbr.rel (%p434) target = $region80
        $region79: #{dcmn_forward.3} parent=67 // pred_region
          %437 = dma.done [#allocation5], 1024
        $region80: #{dcmn_forward.3} parent=67 // pred_fallthru
          _
        // Predicated region
        $region81: #{dcmn_forward.3} parent=67 // pred_check
          %p438 = pneg %p237
        $region82: #{dcmn_forward.3} parent=67 // pred_check_branch
          %440 = sbr.rel (%p438) target = $region84
        $region83: #{dcmn_forward.3} parent=67 // pred_region
          %441 = dma.done [#allocation8], 16
        $region84: #{dcmn_forward.3} parent=67 // pred_fallthru
          _
        // Predicated region
        $region85: #{dcmn_forward.3} parent=67 // pred_check
          %p442 = pneg %p258
        $region86: #{dcmn_forward.3} parent=67 // pred_check_branch
          %444 = sbr.rel (%p442) target = $region88
        $region87: #{dcmn_forward.3} parent=67 // pred_region
          %445 = dma.done [#allocation8], 16
        $region88: #{dcmn_forward.3} parent=67 // pred_fallthru
          _
        // Predicated region
        $region89: #{dcmn_forward.3} parent=67 // pred_check
          %p446 = pneg %p279
        $region90: #{dcmn_forward.3} parent=67 // pred_check_branch
          %448 = sbr.rel (%p446) target = $region92
        $region91: #{dcmn_forward.3} parent=67 // pred_region
          %449 = dma.done [#allocation11], 16
        $region92: #{dcmn_forward.3} parent=67 // pred_fallthru
          _
        %p450 = scmp.lt.s32.totalorder %s27, 3
        %s451 = scalar_select %p450, %s27, 3
        %s452 = smul.addr %s451, 2
        %s453 = smul.addr %s452, 8
        %s454 = scalar_lea.vmem %s0, %s453
        %p455 = pneg %p48
        %p456 = pneg %p45
        %p457 = pneg %p69
        %p458 = pneg %p66
        %p459 = pneg %p90
        %p460 = pneg %p87
        %p461 = pneg %p111
        %p462 = pneg %p108
        %p463 = pneg %p132
        %p464 = pneg %p129
        %p465 = pneg %p153
        %p466 = pneg %p150
        %p467 = pneg %p174
        %p468 = pneg %p171
        %p469 = pneg %p195
        %p470 = pneg %p192
        %p471 = pneg %p216
        %p472 = pneg %p213
        %p473 = pneg %p237
        %p474 = pneg %p234
        %p475 = pneg %p258
        %p476 = pneg %p255
        %p477 = pneg %p279
        %p478 = pneg %p276
        %p479 = pneg %p305
        %p480 = pneg %p302
        %p481 = scmp.lt.s32.totalorder %s27, 3
        %s482 = scalar_select %p481, %s27, 3
        %s483 = smul.addr %s482, 2
        %s484 = scalar_lea.vmem %s12, %s483
        %p485 = scmp.lt.s32.totalorder %s27, 3
        %s486 = scalar_select %p485, %s27, 3
        %s487 = smul.addr %s486, 2
        %s488 = smul.addr %s487, 8
        %s489 = scalar_lea.vmem %s0, %s488
        %p490 = scmp.lt.s32.totalorder %s27, 3
        %s491 = scalar_select %p490, %s27, 3
        %s492 = smul.addr %s491, 2
        %s493 = scalar_lea.vmem %s12, %s492
        %v495 = vld [vmem:[%s489] sm:$0xff]
        %v496 = vld [vmem:[%s489 + $0x8] sm:$0xff]
        %v497 = vld [vmem:[%s1] sm:$0xff]
        %v498 = vld [vmem:[%s1 + $0x8] sm:$0xff]
        %v499 = vld [vmem:[%s1 + $0x10] sm:$0xff]
        %v500 = vld [vmem:[%s1 + $0x18] sm:$0xff]
        %v501 = vpack.c.bf16 %v496, %v495
        %v502 = vld [vmem:[%s2] sm:$0xf]
        %v503 = vld [vmem:[%s2 + $0x4] sm:$0xf]
        %v504 = vld [vmem:[%s2 + $0x8] sm:$0xf]
        %v505 = vld [vmem:[%s2 + $0xc] sm:$0xf]
        %v506 = vld [vmem:[%s2 + $0x10] sm:$0xf]
        %v507 = vld [vmem:[%s2 + $0x14] sm:$0xf]
        %v508 = vld [vmem:[%s2 + $0x18] sm:$0xf]
        %v509 = vld [vmem:[%s2 + $0x1c] sm:$0xf]
        %v510 = vld [vmem:[%s2 + $0x20] sm:$0xf]
        %v511 = vld [vmem:[%s2 + $0x24] sm:$0xf]
        %v512 = vld [vmem:[%s2 + $0x28] sm:$0xf]
        %v513 = vld [vmem:[%s2 + $0x2c] sm:$0xf]
        %v514 = vld [vmem:[%s2 + $0x30] sm:$0xf]
        %v515 = vld [vmem:[%s2 + $0x34] sm:$0xf]
        %v516 = vld [vmem:[%s2 + $0x38] sm:$0xf]
        %v517 = vld [vmem:[%s2 + $0x3c] sm:$0xf]
        %v518 = vld [vmem:[%s3] sm:$0x1]
        %v520 = vlaneseq
        %v521 = vshrl.u32 %v520, 7
        %v522 = vsub.s32 0, %v521
        %v523 = vrot.slane %v518, %v522
        %v541 = vunpack.c.l.b16 %v502
        %v542 = vunpack.c.l.b16 %v503
        %v543 = vunpack.c.l.b16 %v504
        %v544 = vunpack.c.l.b16 %v505
        %v545 = vunpack.c.l.b16 %v506
        %v546 = vunpack.c.l.b16 %v507
        %v547 = vunpack.c.l.b16 %v508
        %v548 = vunpack.c.l.b16 %v509
        %v549 = vunpack.c.l.b16 %v510
        %v550 = vunpack.c.l.b16 %v511
        %v551 = vunpack.c.l.b16 %v512
        %v552 = vunpack.c.l.b16 %v513
        %v553 = vunpack.c.l.b16 %v514
        %v554 = vunpack.c.l.b16 %v515
        %v555 = vunpack.c.l.b16 %v516
        %v556 = vunpack.c.l.b16 %v517
        %v557 = vpack.c.b16 %v542, %v541
        %v558 = vpack.c.b16 %v544, %v543
        %v559 = vpack.c.b16 %v546, %v545
        %v560 = vpack.c.b16 %v548, %v547
        %v561 = vpack.c.b16 %v550, %v549
        %v562 = vpack.c.b16 %v552, %v551
        %v563 = vpack.c.b16 %v554, %v553
        %v564 = vpack.c.b16 %v556, %v555
        %573 = vmatprep.subr.bf16.mxu0 0
        %574 = vmatpush1.bf16.msra.mxu0 %v557
        %575 = vmatprep.subr.bf16.mxu0 0
        %576 = vmatpush1.bf16.msra.mxu0 %v558
        %577 = vmatprep.subr.bf16.mxu0 0
        %578 = vmatpush1.bf16.msra.mxu0 %v559
        %579 = vmatprep.subr.bf16.mxu0 0
        %580 = vmatpush1.bf16.msra.mxu0 %v560
        %581 = vmatprep.subr.bf16.mxu0 0
        %582 = vmatpush1.bf16.msra.mxu0 %v561
        %583 = vmatprep.subr.bf16.mxu0 0
        %584 = vmatpush1.bf16.msra.mxu0 %v562
        %585 = vmatprep.subr.bf16.mxu0 0
        %586 = vmatpush1.bf16.msra.mxu0 %v563
        %587 = vmatprep.subr.bf16.mxu0 0
        %588 = vmatpush1.bf16.msra.mxu0 %v564
        %589 = vmatprep.subr.bf16.mxu0 0
        %590 = vmatpush1.bf16.msra.mxu0 0
        %591 = vmatprep.subr.bf16.mxu0 0
        %592 = vmatpush1.bf16.msra.mxu0 0
        %593 = vmatprep.subr.bf16.mxu0 0
        %594 = vmatpush1.bf16.msra.mxu0 0
        %595 = vmatprep.subr.bf16.mxu0 0
        %596 = vmatpush1.bf16.msra.mxu0 0
        %597 = vmatprep.subr.bf16.mxu0 0
        %598 = vmatpush1.bf16.msra.mxu0 0
        %599 = vmatprep.subr.bf16.mxu0 0
        %600 = vmatpush1.bf16.msra.mxu0 0
        %601 = vmatprep.subr.bf16.mxu0 0
        %602 = vmatpush1.bf16.msra.mxu0 0
        %603 = vmatprep.subr.bf16.mxu0 0
        %604 = vmatpush1.bf16.msra.mxu0 0
        %605 = vmatprep.mubr.bf16.mxu0 0
        %606 = vmatmul.mubr.bf16.gmra.mrb[0].mxu0 %v501
        %v607 = vpop.f32.mrb[0].mxu0
        %v608 = vadd.f32 %v523, %v607
        %v609 = vpop.f32.mrb[0].mxu0
        %v610 = vpop.f32.mrb[0].mxu0
        %v611 = vadd.f32 %v523, %v610
        %v612 = vpop.f32.mrb[0].mxu0
        %613 = vdwg.mxu0
        %614 = vmatprep.subr.mxu0 0.0
        %615 = vmatpush1.xpose.msra.mxu0 %v608
        %616 = vmatprep.subr.mxu0 0.0
        %617 = vmatpush1.xpose.msra.mxu0 0.0
        %618 = vmatprep.subr.mxu0 0.0
        %619 = vmatpush1.xpose.msra.mxu0 0.0
        %620 = vmatprep.subr.mxu0 0.0
        %621 = vmatpush1.xpose.msra.mxu0 0.0
        %622 = vmatprep.subr.mxu0 0.0
        %623 = vmatpush1.xpose.msra.mxu0 0.0
        %624 = vmatprep.subr.mxu0 0.0
        %625 = vmatpush1.xpose.msra.mxu0 0.0
        %626 = vmatprep.subr.mxu0 0.0
        %627 = vmatpush1.xpose.msra.mxu0 0.0
        %628 = vmatprep.subr.mxu0 0.0
        %629 = vmatpush1.xpose.msra.mxu0 0.0
        %630 = vmatprep.subr.mxu0 0.0
        %631 = vmatpush1.xpose.msra.mxu0 0.0
        %632 = vmatprep.subr.mxu0 0.0
        %633 = vmatpush1.xpose.msra.mxu0 0.0
        %634 = vmatprep.subr.mxu0 0.0
        %635 = vmatpush1.xpose.msra.mxu0 0.0
        %636 = vmatprep.subr.mxu0 0.0
        %637 = vmatpush1.xpose.msra.mxu0 0.0
        %638 = vmatprep.subr.mxu0 0.0
        %639 = vmatpush1.xpose.msra.mxu0 0.0
        %640 = vmatprep.subr.mxu0 0.0
        %641 = vmatpush1.xpose.msra.mxu0 0.0
        %642 = vmatprep.subr.mxu0 0.0
        %643 = vmatpush1.xpose.msra.mxu0 0.0
        %644 = vmatprep.subr.mxu0 0.0
        %645 = vmatpush1.xpose.msra.mxu0 0.0
        %646 = vmatprep.subr.mxu0 0.0
        %647 = vmatpush1.xpose.msra.mxu0 0.0
        %648 = vmatprep.subr.mxu0 0.0
        %649 = vmatpush1.xpose.msra.mxu0 0.0
        %650 = vmatprep.subr.mxu0 0.0
        %651 = vmatpush1.xpose.msra.mxu0 0.0
        %652 = vmatprep.subr.mxu0 0.0
        %653 = vmatpush1.xpose.msra.mxu0 0.0
        %654 = vmatprep.subr.mxu0 0.0
        %655 = vmatpush1.xpose.msra.mxu0 0.0
        %656 = vmatprep.subr.mxu0 0.0
        %657 = vmatpush1.xpose.msra.mxu0 0.0
        %658 = vmatprep.subr.mxu0 0.0
        %659 = vmatpush1.xpose.msra.mxu0 0.0
        %660 = vmatprep.subr.mxu0 0.0
        %661 = vmatpush1.xpose.msra.mxu0 0.0
        %662 = vmatprep.subr.mxu0 0.0
        %663 = vmatpush1.xpose.msra.mxu0 0.0
        %664 = vmatprep.subr.mxu0 0.0
        %665 = vmatpush1.xpose.msra.mxu0 0.0
        %666 = vmatprep.subr.mxu0 0.0
        %667 = vmatpush1.xpose.msra.mxu0 0.0
        %668 = vmatprep.subr.mxu0 0.0
        %669 = vmatpush1.xpose.msra.mxu0 0.0
        %670 = vmatprep.subr.mxu0 0.0
        %671 = vmatpush1.xpose.msra.mxu0 0.0
        %672 = vmatprep.subr.mxu0 0.0
        %673 = vmatpush1.xpose.msra.mxu0 0.0
        %674 = vmatprep.subr.mxu0 0.0
        %675 = vmatpush1.xpose.msra.mxu0 0.0
        %676 = vmatprep.subr.mxu0 0.0
        %677 = vmatpush1.xpose.msra.mxu0 0.0
        %678 = vmatprep.mubr.f32.mxu0 0.0
        %679 = vmatmul.mubr.f32.gmra.mrb[0].mxu0 %v497
        %v680 = vpop.f32.mrb[0].mxu0
        %v681 = vadd.f32 0.0, %v680
        %v682 = vpop.f32.mrb[0].mxu0
        %683 = vmatprep.mubr.f32.mxu0 0.0
        %684 = vmatmul.mubr.f32.gmra.mrb[0].mxu0 %v498
        %v685 = vpop.f32.mrb[0].mxu0
        %v686 = vadd.f32 0.0, %v685
        %v687 = vpop.f32.mrb[0].mxu0
        %688 = vdwg.mxu0
        %689 = vmatprep.subr.mxu0 0.0
        %690 = vmatpush1.xpose.msra.mxu0 %v611
        %691 = vmatprep.subr.mxu0 0.0
        %692 = vmatpush1.xpose.msra.mxu0 0.0
        %693 = vmatprep.subr.mxu0 0.0
        %694 = vmatpush1.xpose.msra.mxu0 0.0
        %695 = vmatprep.subr.mxu0 0.0
        %696 = vmatpush1.xpose.msra.mxu0 0.0
        %697 = vmatprep.subr.mxu0 0.0
        %698 = vmatpush1.xpose.msra.mxu0 0.0
        %699 = vmatprep.subr.mxu0 0.0
        %700 = vmatpush1.xpose.msra.mxu0 0.0
        %701 = vmatprep.subr.mxu0 0.0
        %702 = vmatpush1.xpose.msra.mxu0 0.0
        %703 = vmatprep.subr.mxu0 0.0
        %704 = vmatpush1.xpose.msra.mxu0 0.0
        %705 = vmatprep.subr.mxu0 0.0
        %706 = vmatpush1.xpose.msra.mxu0 0.0
        %707 = vmatprep.subr.mxu0 0.0
        %708 = vmatpush1.xpose.msra.mxu0 0.0
        %709 = vmatprep.subr.mxu0 0.0
        %710 = vmatpush1.xpose.msra.mxu0 0.0
        %711 = vmatprep.subr.mxu0 0.0
        %712 = vmatpush1.xpose.msra.mxu0 0.0
        %713 = vmatprep.subr.mxu0 0.0
        %714 = vmatpush1.xpose.msra.mxu0 0.0
        %715 = vmatprep.subr.mxu0 0.0
        %716 = vmatpush1.xpose.msra.mxu0 0.0
        %717 = vmatprep.subr.mxu0 0.0
        %718 = vmatpush1.xpose.msra.mxu0 0.0
        %719 = vmatprep.subr.mxu0 0.0
        %720 = vmatpush1.xpose.msra.mxu0 0.0
        %721 = vmatprep.subr.mxu0 0.0
        %722 = vmatpush1.xpose.msra.mxu0 0.0
        %723 = vmatprep.subr.mxu0 0.0
        %724 = vmatpush1.xpose.msra.mxu0 0.0
        %725 = vmatprep.subr.mxu0 0.0
        %726 = vmatpush1.xpose.msra.mxu0 0.0
        %727 = vmatprep.subr.mxu0 0.0
        %728 = vmatpush1.xpose.msra.mxu0 0.0
        %729 = vmatprep.subr.mxu0 0.0
        %730 = vmatpush1.xpose.msra.mxu0 0.0
        %731 = vmatprep.subr.mxu0 0.0
        %732 = vmatpush1.xpose.msra.mxu0 0.0
        %733 = vmatprep.subr.mxu0 0.0
        %734 = vmatpush1.xpose.msra.mxu0 0.0
        %735 = vmatprep.subr.mxu0 0.0
        %736 = vmatpush1.xpose.msra.mxu0 0.0
        %737 = vmatprep.subr.mxu0 0.0
        %738 = vmatpush1.xpose.msra.mxu0 0.0
        %739 = vmatprep.subr.mxu0 0.0
        %740 = vmatpush1.xpose.msra.mxu0 0.0
        %741 = vmatprep.subr.mxu0 0.0
        %742 = vmatpush1.xpose.msra.mxu0 0.0
        %743 = vmatprep.subr.mxu0 0.0
        %744 = vmatpush1.xpose.msra.mxu0 0.0
        %745 = vmatprep.subr.mxu0 0.0
        %746 = vmatpush1.xpose.msra.mxu0 0.0
        %747 = vmatprep.subr.mxu0 0.0
        %748 = vmatpush1.xpose.msra.mxu0 0.0
        %749 = vmatprep.subr.mxu0 0.0
        %750 = vmatpush1.xpose.msra.mxu0 0.0
        %751 = vmatprep.subr.mxu0 0.0
        %752 = vmatpush1.xpose.msra.mxu0 0.0
        %753 = vmatprep.mubr.f32.mxu0 0.0
        %754 = vmatmul.mubr.f32.gmra.mrb[0].mxu0 %v499
        %v755 = vpop.f32.mrb[0].mxu0
        %v756 = vadd.f32 0.0, %v755
        %v757 = vpop.f32.mrb[0].mxu0
        %758 = vmatprep.mubr.f32.mxu0 0.0
        %759 = vmatmul.mubr.f32.gmra.mrb[0].mxu0 %v500
        %v760 = vpop.f32.mrb[0].mxu0
        %v761 = vadd.f32 0.0, %v760
        %v762 = vpop.f32.mrb[0].mxu0
        %763 = vdwg.mxu0
        %vm764 = vcmask 64512
        %v765 = vsel %vm764, %v681, -inf
        %766 = vmax.xlane.f32.xlu0 %v765
        %v767 = vpop.xlane.xlu0 %766
        %v768 = vsel %vm764, %v686, -inf
        %769 = vmax.xlane.f32.xlu0 %v768
        %v770 = vpop.xlane.xlu0 %769
        %v771 = vsel %vm764, %v756, -inf
        %772 = vmax.xlane.f32.xlu0 %v771
        %v773 = vpop.xlane.xlu0 %772
        %v774 = vsel %vm764, %v761, -inf
        %775 = vmax.xlane.f32.xlu0 %v774
        %v776 = vpop.xlane.xlu0 %775
        %v777 = vsub.f32 %v681, %v767
        %v778 = vsub.f32 %v686, %v770
        %v779 = vsub.f32 %v756, %v773
        %v780 = vsub.f32 %v761, %v776
        %v781 = vmul.f32 %v777, 1.442695
        %v782 = vpow.pop %v781
        %v783 = vmul.f32 %v778, 1.442695
        %v784 = vpow.pop %v783
        %v785 = vmul.f32 %v779, 1.442695
        %v786 = vpow.pop %v785
        %v787 = vmul.f32 %v780, 1.442695
        %v788 = vpow.pop %v787
        %v789 = vsel %vm764, %v782, 0.0
        %790 = vadd.xlane.f32.xlu0 %v789
        %v791 = vpop.xlane.xlu0 %790
        %v792 = vsel %vm764, %v784, 0.0
        %793 = vadd.xlane.f32.xlu0 %v792
        %v794 = vpop.xlane.xlu0 %793
        %v795 = vsel %vm764, %v786, 0.0
        %796 = vadd.xlane.f32.xlu0 %v795
        %v797 = vpop.xlane.xlu0 %796
        %v798 = vsel %vm764, %v788, 0.0
        %799 = vadd.xlane.f32.xlu0 %v798
        %v800 = vpop.xlane.xlu0 %799
        %v801 = vrcp.pop %v791
        %v802 = vrcp.pop %v794
        %v803 = vrcp.pop %v797
        %v804 = vrcp.pop %v800
        %v805 = vmul.f32 %v782, %v801
        %v806 = vmul.f32 %v784, %v802
        %v807 = vmul.f32 %v786, %v803
        %v808 = vmul.f32 %v788, %v804
        %v810 = vsel %vm764, %v805, 0
        %v813 = vsel %vm764, %v806, 0
        %815 = vmatprep.subr.mxu0 0.0
        %816 = vmatpush1.msra.mxu0 %v608
        %817 = vmatprep.subr.mxu0 0.0
        %818 = vmatpush1.msra.mxu0 0.0
        %819 = vmatprep.subr.mxu0 0.0
        %820 = vmatpush1.msra.mxu0 0.0
        %821 = vmatprep.subr.mxu0 0.0
        %822 = vmatpush1.msra.mxu0 0.0
        %823 = vmatprep.subr.mxu0 0.0
        %824 = vmatpush1.msra.mxu0 0.0
        %825 = vmatprep.subr.mxu0 0.0
        %826 = vmatpush1.msra.mxu0 0.0
        %827 = vmatprep.subr.mxu0 0.0
        %828 = vmatpush1.msra.mxu0 0.0
        %829 = vmatprep.subr.mxu0 0.0
        %830 = vmatpush1.msra.mxu0 0.0
        %831 = vmatprep.subr.mxu0 0.0
        %832 = vmatpush1.msra.mxu0 0.0
        %833 = vmatprep.subr.mxu0 0.0
        %834 = vmatpush1.msra.mxu0 0.0
        %835 = vmatprep.subr.mxu0 0.0
        %836 = vmatpush1.msra.mxu0 0.0
        %837 = vmatprep.subr.mxu0 0.0
        %838 = vmatpush1.msra.mxu0 0.0
        %839 = vmatprep.subr.mxu0 0.0
        %840 = vmatpush1.msra.mxu0 0.0
        %841 = vmatprep.subr.mxu0 0.0
        %842 = vmatpush1.msra.mxu0 0.0
        %843 = vmatprep.subr.mxu0 0.0
        %844 = vmatpush1.msra.mxu0 0.0
        %845 = vmatprep.subr.mxu0 0.0
        %846 = vmatpush1.msra.mxu0 0.0
        %847 = vmatprep.subr.mxu0 0.0
        %848 = vmatpush1.msra.mxu0 0.0
        %849 = vmatprep.subr.mxu0 0.0
        %850 = vmatpush1.msra.mxu0 0.0
        %851 = vmatprep.subr.mxu0 0.0
        %852 = vmatpush1.msra.mxu0 0.0
        %853 = vmatprep.subr.mxu0 0.0
        %854 = vmatpush1.msra.mxu0 0.0
        %855 = vmatprep.subr.mxu0 0.0
        %856 = vmatpush1.msra.mxu0 0.0
        %857 = vmatprep.subr.mxu0 0.0
        %858 = vmatpush1.msra.mxu0 0.0
        %859 = vmatprep.subr.mxu0 0.0
        %860 = vmatpush1.msra.mxu0 0.0
        %861 = vmatprep.subr.mxu0 0.0
        %862 = vmatpush1.msra.mxu0 0.0
        %863 = vmatprep.subr.mxu0 0.0
        %864 = vmatpush1.msra.mxu0 0.0
        %865 = vmatprep.subr.mxu0 0.0
        %866 = vmatpush1.msra.mxu0 0.0
        %867 = vmatprep.subr.mxu0 0.0
        %868 = vmatpush1.msra.mxu0 0.0
        %869 = vmatprep.subr.mxu0 0.0
        %870 = vmatpush1.msra.mxu0 0.0
        %871 = vmatprep.subr.mxu0 0.0
        %872 = vmatpush1.msra.mxu0 0.0
        %873 = vmatprep.subr.mxu0 0.0
        %874 = vmatpush1.msra.mxu0 0.0
        %875 = vmatprep.subr.mxu0 0.0
        %876 = vmatpush1.msra.mxu0 0.0
        %877 = vmatprep.subr.mxu0 0.0
        %878 = vmatpush1.msra.mxu0 0.0
        %879 = vmatprep.mubr.f32.mxu0 0.0
        %880 = vmatmul.mubr.f32.gmra.mrb[0].mxu0 %v810
        %v881 = vpop.f32.mrb[0].mxu0
        %v882 = vadd.f32 0.0, %v881
        %v883 = vpop.f32.mrb[0].mxu0
        %884 = vmatprep.mubr.f32.mxu0 0.0
        %885 = vmatmul.mubr.f32.gmra.mrb[0].mxu0 %v813
        %v886 = vpop.f32.mrb[0].mxu0
        %v887 = vadd.f32 0.0, %v886
        %v888 = vpop.f32.mrb[0].mxu0
        %889 = vdwg.mxu0
        %v891 = vsel %vm764, %v807, 0
        %v894 = vsel %vm764, %v808, 0
        %896 = vmatprep.subr.mxu0 0.0
        %897 = vmatpush1.msra.mxu0 %v611
        %898 = vmatprep.subr.mxu0 0.0
        %899 = vmatpush1.msra.mxu0 0.0
        %900 = vmatprep.subr.mxu0 0.0
        %901 = vmatpush1.msra.mxu0 0.0
        %902 = vmatprep.subr.mxu0 0.0
        %903 = vmatpush1.msra.mxu0 0.0
        %904 = vmatprep.subr.mxu0 0.0
        %905 = vmatpush1.msra.mxu0 0.0
        %906 = vmatprep.subr.mxu0 0.0
        %907 = vmatpush1.msra.mxu0 0.0
        %908 = vmatprep.subr.mxu0 0.0
        %909 = vmatpush1.msra.mxu0 0.0
        %910 = vmatprep.subr.mxu0 0.0
        %911 = vmatpush1.msra.mxu0 0.0
        %912 = vmatprep.subr.mxu0 0.0
        %913 = vmatpush1.msra.mxu0 0.0
        %914 = vmatprep.subr.mxu0 0.0
        %915 = vmatpush1.msra.mxu0 0.0
        %916 = vmatprep.subr.mxu0 0.0
        %917 = vmatpush1.msra.mxu0 0.0
        %918 = vmatprep.subr.mxu0 0.0
        %919 = vmatpush1.msra.mxu0 0.0
        %920 = vmatprep.subr.mxu0 0.0
        %921 = vmatpush1.msra.mxu0 0.0
        %922 = vmatprep.subr.mxu0 0.0
        %923 = vmatpush1.msra.mxu0 0.0
        %924 = vmatprep.subr.mxu0 0.0
        %925 = vmatpush1.msra.mxu0 0.0
        %926 = vmatprep.subr.mxu0 0.0
        %927 = vmatpush1.msra.mxu0 0.0
        %928 = vmatprep.subr.mxu0 0.0
        %929 = vmatpush1.msra.mxu0 0.0
        %930 = vmatprep.subr.mxu0 0.0
        %931 = vmatpush1.msra.mxu0 0.0
        %932 = vmatprep.subr.mxu0 0.0
        %933 = vmatpush1.msra.mxu0 0.0
        %934 = vmatprep.subr.mxu0 0.0
        %935 = vmatpush1.msra.mxu0 0.0
        %936 = vmatprep.subr.mxu0 0.0
        %937 = vmatpush1.msra.mxu0 0.0
        %938 = vmatprep.subr.mxu0 0.0
        %939 = vmatpush1.msra.mxu0 0.0
        %940 = vmatprep.subr.mxu0 0.0
        %941 = vmatpush1.msra.mxu0 0.0
        %942 = vmatprep.subr.mxu0 0.0
        %943 = vmatpush1.msra.mxu0 0.0
        %944 = vmatprep.subr.mxu0 0.0
        %945 = vmatpush1.msra.mxu0 0.0
        %946 = vmatprep.subr.mxu0 0.0
        %947 = vmatpush1.msra.mxu0 0.0
        %948 = vmatprep.subr.mxu0 0.0
        %949 = vmatpush1.msra.mxu0 0.0
        %950 = vmatprep.subr.mxu0 0.0
        %951 = vmatpush1.msra.mxu0 0.0
        %952 = vmatprep.subr.mxu0 0.0
        %953 = vmatpush1.msra.mxu0 0.0
        %954 = vmatprep.subr.mxu0 0.0
        %955 = vmatpush1.msra.mxu0 0.0
        %956 = vmatprep.subr.mxu0 0.0
        %957 = vmatpush1.msra.mxu0 0.0
        %958 = vmatprep.subr.mxu0 0.0
        %959 = vmatpush1.msra.mxu0 0.0
        %960 = vmatprep.mubr.f32.mxu0 0.0
        %961 = vmatmul.mubr.f32.gmra.mrb[0].mxu0 %v891
        %v962 = vpop.f32.mrb[0].mxu0
        %v963 = vadd.f32 0.0, %v962
        %v964 = vpop.f32.mrb[0].mxu0
        %965 = vmatprep.mubr.f32.mxu0 0.0
        %966 = vmatmul.mubr.f32.gmra.mrb[0].mxu0 %v894
        %v967 = vpop.f32.mrb[0].mxu0
        %v968 = vadd.f32 0.0, %v967
        %v969 = vpop.f32.mrb[0].mxu0
        %970 = vdwg.mxu0
        %971 = vxpose.xlu0.b32.start [1/16] %v805, 128
        %972 = vxpose.xlu0.b32.cont [2/16] %v806, 128
        %973 = vxpose.xlu0.b32.cont [3/16] 0.0, 128
        %974 = vxpose.xlu0.b32.cont [4/16] 0.0, 128
        %975 = vxpose.xlu0.b32.cont [5/16] 0.0, 128
        %976 = vxpose.xlu0.b32.cont [6/16] 0.0, 128
        %977 = vxpose.xlu0.b32.cont [7/16] 0.0, 128
        %978 = vxpose.xlu0.b32.cont [8/16] 0.0, 128
        %979 = vxpose.xlu0.b32.cont [9/16] 0.0, 128
        %980 = vxpose.xlu0.b32.cont [10/16] 0.0, 128
        %981 = vxpose.xlu0.b32.cont [11/16] 0.0, 128
        %982 = vxpose.xlu0.b32.cont [12/16] 0.0, 128
        %983 = vxpose.xlu0.b32.cont [13/16] 0.0, 128
        %984 = vxpose.xlu0.b32.cont [14/16] 0.0, 128
        %985 = vxpose.xlu0.b32.cont [15/16] 0.0, 128
        %986 = vxpose.xlu0.b32.end [16/16] 0.0, 128
        %v987 = vpop.trf.xlu0
        %v988 = vpop.trf.xlu0
        %v989 = vpop.trf.xlu0
        %v990 = vpop.trf.xlu0
        %v991 = vpop.trf.xlu0
        %v992 = vpop.trf.xlu0
        %v993 = vpop.trf.xlu0
        %v994 = vpop.trf.xlu0
        %v995 = vpop.trf.xlu0
        %v996 = vpop.trf.xlu0
        %v997 = vpop.trf.xlu0
        %v998 = vpop.trf.xlu0
        %v999 = vpop.trf.xlu0
        %v1000 = vpop.trf.xlu0
        %v1001 = vpop.trf.xlu0
        %v1002 = vpop.trf.xlu0
        %vm1003 = vcmask 130048
        %v1005 = vsel %vm1003, %v987, 0
        %1007 = vmatprep.subr.mxu0 0.0
        %1008 = vmatpush1.msra.mxu0 %v497
        %1009 = vmatprep.subr.mxu0 0.0
        %1010 = vmatpush1.msra.mxu0 %v498
        %1011 = vmatprep.subr.mxu0 0.0
        %1012 = vmatpush1.msra.mxu0 0.0
        %1013 = vmatprep.subr.mxu0 0.0
        %1014 = vmatpush1.msra.mxu0 0.0
        %1015 = vmatprep.subr.mxu0 0.0
        %1016 = vmatpush1.msra.mxu0 0.0
        %1017 = vmatprep.subr.mxu0 0.0
        %1018 = vmatpush1.msra.mxu0 0.0
        %1019 = vmatprep.subr.mxu0 0.0
        %1020 = vmatpush1.msra.mxu0 0.0
        %1021 = vmatprep.subr.mxu0 0.0
        %1022 = vmatpush1.msra.mxu0 0.0
        %1023 = vmatprep.subr.mxu0 0.0
        %1024 = vmatpush1.msra.mxu0 0.0
        %1025 = vmatprep.subr.mxu0 0.0
        %1026 = vmatpush1.msra.mxu0 0.0
        %1027 = vmatprep.subr.mxu0 0.0
        %1028 = vmatpush1.msra.mxu0 0.0
        %1029 = vmatprep.subr.mxu0 0.0
        %1030 = vmatpush1.msra.mxu0 0.0
        %1031 = vmatprep.subr.mxu0 0.0
        %1032 = vmatpush1.msra.mxu0 0.0
        %1033 = vmatprep.subr.mxu0 0.0
        %1034 = vmatpush1.msra.mxu0 0.0
        %1035 = vmatprep.subr.mxu0 0.0
        %1036 = vmatpush1.msra.mxu0 0.0
        %1037 = vmatprep.subr.mxu0 0.0
        %1038 = vmatpush1.msra.mxu0 0.0
        %1039 = vmatprep.subr.mxu0 0.0
        %1040 = vmatpush1.msra.mxu0 0.0
        %1041 = vmatprep.subr.mxu0 0.0
        %1042 = vmatpush1.msra.mxu0 0.0
        %1043 = vmatprep.subr.mxu0 0.0
        %1044 = vmatpush1.msra.mxu0 0.0
        %1045 = vmatprep.subr.mxu0 0.0
        %1046 = vmatpush1.msra.mxu0 0.0
        %1047 = vmatprep.subr.mxu0 0.0
        %1048 = vmatpush1.msra.mxu0 0.0
        %1049 = vmatprep.subr.mxu0 0.0
        %1050 = vmatpush1.msra.mxu0 0.0
        %1051 = vmatprep.subr.mxu0 0.0
        %1052 = vmatpush1.msra.mxu0 0.0
        %1053 = vmatprep.subr.mxu0 0.0
        %1054 = vmatpush1.msra.mxu0 0.0
        %1055 = vmatprep.subr.mxu0 0.0
        %1056 = vmatpush1.msra.mxu0 0.0
        %1057 = vmatprep.subr.mxu0 0.0
        %1058 = vmatpush1.msra.mxu0 0.0
        %1059 = vmatprep.subr.mxu0 0.0
        %1060 = vmatpush1.msra.mxu0 0.0
        %1061 = vmatprep.subr.mxu0 0.0
        %1062 = vmatpush1.msra.mxu0 0.0
        %1063 = vmatprep.subr.mxu0 0.0
        %1064 = vmatpush1.msra.mxu0 0.0
        %1065 = vmatprep.subr.mxu0 0.0
        %1066 = vmatpush1.msra.mxu0 0.0
        %1067 = vmatprep.subr.mxu0 0.0
        %1068 = vmatpush1.msra.mxu0 0.0
        %1069 = vmatprep.subr.mxu0 0.0
        %1070 = vmatpush1.msra.mxu0 0.0
        %1071 = vmatprep.mubr.f32.mxu0 0.0
        %1072 = vmatmul.mubr.f32.gmra.mrb[0].mxu0 %v1005
        %v1073 = vpop.f32.mrb[0].mxu0
        %v1074 = vadd.f32 0.0, %v1073
        %v1075 = vpop.f32.mrb[0].mxu0
        %1076 = vdwg.mxu0
        %1077 = vxpose.xlu0.b32.start [1/16] %v807, 128
        %1078 = vxpose.xlu0.b32.cont [2/16] %v808, 128
        %1079 = vxpose.xlu0.b32.cont [3/16] 0.0, 128
        %1080 = vxpose.xlu0.b32.cont [4/16] 0.0, 128
        %1081 = vxpose.xlu0.b32.cont [5/16] 0.0, 128
        %1082 = vxpose.xlu0.b32.cont [6/16] 0.0, 128
        %1083 = vxpose.xlu0.b32.cont [7/16] 0.0, 128
        %1084 = vxpose.xlu0.b32.cont [8/16] 0.0, 128
        %1085 = vxpose.xlu0.b32.cont [9/16] 0.0, 128
        %1086 = vxpose.xlu0.b32.cont [10/16] 0.0, 128
        %1087 = vxpose.xlu0.b32.cont [11/16] 0.0, 128
        %1088 = vxpose.xlu0.b32.cont [12/16] 0.0, 128
        %1089 = vxpose.xlu0.b32.cont [13/16] 0.0, 128
        %1090 = vxpose.xlu0.b32.cont [14/16] 0.0, 128
        %1091 = vxpose.xlu0.b32.cont [15/16] 0.0, 128
        %1092 = vxpose.xlu0.b32.end [16/16] 0.0, 128
        %v1093 = vpop.trf.xlu0
        %v1094 = vpop.trf.xlu0
        %v1095 = vpop.trf.xlu0
        %v1096 = vpop.trf.xlu0
        %v1097 = vpop.trf.xlu0
        %v1098 = vpop.trf.xlu0
        %v1099 = vpop.trf.xlu0
        %v1100 = vpop.trf.xlu0
        %v1101 = vpop.trf.xlu0
        %v1102 = vpop.trf.xlu0
        %v1103 = vpop.trf.xlu0
        %v1104 = vpop.trf.xlu0
        %v1105 = vpop.trf.xlu0
        %v1106 = vpop.trf.xlu0
        %v1107 = vpop.trf.xlu0
        %v1108 = vpop.trf.xlu0
        %v1110 = vsel %vm1003, %v1093, 0
        %1112 = vmatprep.subr.mxu0 0.0
        %1113 = vmatpush1.msra.mxu0 %v499
        %1114 = vmatprep.subr.mxu0 0.0
        %1115 = vmatpush1.msra.mxu0 %v500
        %1116 = vmatprep.subr.mxu0 0.0
        %1117 = vmatpush1.msra.mxu0 0.0
        %1118 = vmatprep.subr.mxu0 0.0
        %1119 = vmatpush1.msra.mxu0 0.0
        %1120 = vmatprep.subr.mxu0 0.0
        %1121 = vmatpush1.msra.mxu0 0.0
        %1122 = vmatprep.subr.mxu0 0.0
        %1123 = vmatpush1.msra.mxu0 0.0
        %1124 = vmatprep.subr.mxu0 0.0
        %1125 = vmatpush1.msra.mxu0 0.0
        %1126 = vmatprep.subr.mxu0 0.0
        %1127 = vmatpush1.msra.mxu0 0.0
        %1128 = vmatprep.subr.mxu0 0.0
        %1129 = vmatpush1.msra.mxu0 0.0
        %1130 = vmatprep.subr.mxu0 0.0
        %1131 = vmatpush1.msra.mxu0 0.0
        %1132 = vmatprep.subr.mxu0 0.0
        %1133 = vmatpush1.msra.mxu0 0.0
        %1134 = vmatprep.subr.mxu0 0.0
        %1135 = vmatpush1.msra.mxu0 0.0
        %1136 = vmatprep.subr.mxu0 0.0
        %1137 = vmatpush1.msra.mxu0 0.0
        %1138 = vmatprep.subr.mxu0 0.0
        %1139 = vmatpush1.msra.mxu0 0.0
        %1140 = vmatprep.subr.mxu0 0.0
        %1141 = vmatpush1.msra.mxu0 0.0
        %1142 = vmatprep.subr.mxu0 0.0
        %1143 = vmatpush1.msra.mxu0 0.0
        %1144 = vmatprep.subr.mxu0 0.0
        %1145 = vmatpush1.msra.mxu0 0.0
        %1146 = vmatprep.subr.mxu0 0.0
        %1147 = vmatpush1.msra.mxu0 0.0
        %1148 = vmatprep.subr.mxu0 0.0
        %1149 = vmatpush1.msra.mxu0 0.0
        %1150 = vmatprep.subr.mxu0 0.0
        %1151 = vmatpush1.msra.mxu0 0.0
        %1152 = vmatprep.subr.mxu0 0.0
        %1153 = vmatpush1.msra.mxu0 0.0
        %1154 = vmatprep.subr.mxu0 0.0
        %1155 = vmatpush1.msra.mxu0 0.0
        %1156 = vmatprep.subr.mxu0 0.0
        %1157 = vmatpush1.msra.mxu0 0.0
        %1158 = vmatprep.subr.mxu0 0.0
        %1159 = vmatpush1.msra.mxu0 0.0
        %1160 = vmatprep.subr.mxu0 0.0
        %1161 = vmatpush1.msra.mxu0 0.0
        %1162 = vmatprep.subr.mxu0 0.0
        %1163 = vmatpush1.msra.mxu0 0.0
        %1164 = vmatprep.subr.mxu0 0.0
        %1165 = vmatpush1.msra.mxu0 0.0
        %1166 = vmatprep.subr.mxu0 0.0
        %1167 = vmatpush1.msra.mxu0 0.0
        %1168 = vmatprep.subr.mxu0 0.0
        %1169 = vmatpush1.msra.mxu0 0.0
        %1170 = vmatprep.subr.mxu0 0.0
        %1171 = vmatpush1.msra.mxu0 0.0
        %1172 = vmatprep.subr.mxu0 0.0
        %1173 = vmatpush1.msra.mxu0 0.0
        %1174 = vmatprep.subr.mxu0 0.0
        %1175 = vmatpush1.msra.mxu0 0.0
        %1176 = vmatprep.mubr.f32.mxu0 0.0
        %1177 = vmatmul.mubr.f32.gmra.mrb[0].mxu0 %v1110
        %v1178 = vpop.f32.mrb[0].mxu0
        %v1179 = vadd.f32 0.0, %v1178
        %v1180 = vpop.f32.mrb[0].mxu0
        %1181 = vdwg.mxu0
        %v1182 = vsub.f32 %v1074, %v608
        %v1183 = vsub.f32 %v1179, %v611
        %v1184 = vmul.f32 %v1074, %v608
        %v1185 = vmul.f32 %v1179, %v611
        %v1186 = vpack.c.bf16 %v1183, %v1182
        %v1187 = vld [vmem:[%s4] sm:$0xf]
        %v1188 = vld [vmem:[%s4 + $0x4] sm:$0xf]
        %v1189 = vld [vmem:[%s4 + $0x8] sm:$0xf]
        %v1190 = vld [vmem:[%s4 + $0xc] sm:$0xf]
        %v1191 = vld [vmem:[%s4 + $0x10] sm:$0xf]
        %v1192 = vld [vmem:[%s4 + $0x14] sm:$0xf]
        %v1193 = vld [vmem:[%s4 + $0x18] sm:$0xf]
        %v1194 = vld [vmem:[%s4 + $0x1c] sm:$0xf]
        %v1195 = vld [vmem:[%s4 + $0x20] sm:$0xf]
        %v1196 = vld [vmem:[%s4 + $0x24] sm:$0xf]
        %v1197 = vld [vmem:[%s4 + $0x28] sm:$0xf]
        %v1198 = vld [vmem:[%s4 + $0x2c] sm:$0xf]
        %v1199 = vld [vmem:[%s4 + $0x30] sm:$0xf]
        %v1200 = vld [vmem:[%s4 + $0x34] sm:$0xf]
        %v1201 = vld [vmem:[%s4 + $0x38] sm:$0xf]
        %v1202 = vld [vmem:[%s4 + $0x3c] sm:$0xf]
        %v1203 = vpack.c.bf16 %v1185, %v1184
        %v1204 = vld [vmem:[#allocation2] sm:$0xf]
        %v1205 = vld [vmem:[#allocation2 + $0x4] sm:$0xf]
        %v1206 = vld [vmem:[#allocation2 + $0x8] sm:$0xf]
        %v1207 = vld [vmem:[#allocation2 + $0xc] sm:$0xf]
        %v1208 = vld [vmem:[#allocation2 + $0x10] sm:$0xf]
        %v1209 = vld [vmem:[#allocation2 + $0x14] sm:$0xf]
        %v1210 = vld [vmem:[#allocation2 + $0x18] sm:$0xf]
        %v1211 = vld [vmem:[#allocation2 + $0x1c] sm:$0xf]
        %v1212 = vld [vmem:[#allocation2 + $0x20] sm:$0xf]
        %v1213 = vld [vmem:[#allocation2 + $0x24] sm:$0xf]
        %v1214 = vld [vmem:[#allocation2 + $0x28] sm:$0xf]
        %v1215 = vld [vmem:[#allocation2 + $0x2c] sm:$0xf]
        %v1216 = vld [vmem:[#allocation2 + $0x30] sm:$0xf]
        %v1217 = vld [vmem:[#allocation2 + $0x34] sm:$0xf]
        %v1218 = vld [vmem:[#allocation2 + $0x38] sm:$0xf]
        %v1219 = vld [vmem:[#allocation2 + $0x3c] sm:$0xf]
        %v1236 = vunpack.c.l.b16 %v1204
        %v1237 = vunpack.c.l.b16 %v1205
        %v1238 = vunpack.c.l.b16 %v1206
        %v1239 = vunpack.c.l.b16 %v1207
        %v1240 = vunpack.c.l.b16 %v1208
        %v1241 = vunpack.c.l.b16 %v1209
        %v1242 = vunpack.c.l.b16 %v1210
        %v1243 = vunpack.c.l.b16 %v1211
        %v1244 = vunpack.c.l.b16 %v1212
        %v1245 = vunpack.c.l.b16 %v1213
        %v1246 = vunpack.c.l.b16 %v1214
        %v1247 = vunpack.c.l.b16 %v1215
        %v1248 = vunpack.c.l.b16 %v1216
        %v1249 = vunpack.c.l.b16 %v1217
        %v1250 = vunpack.c.l.b16 %v1218
        %v1251 = vunpack.c.l.b16 %v1219
        %v1252 = vpack.c.b16 %v1237, %v1236
        %v1253 = vpack.c.b16 %v1239, %v1238
        %v1254 = vpack.c.b16 %v1241, %v1240
        %v1255 = vpack.c.b16 %v1243, %v1242
        %v1256 = vpack.c.b16 %v1245, %v1244
        %v1257 = vpack.c.b16 %v1247, %v1246
        %v1258 = vpack.c.b16 %v1249, %v1248
        %v1259 = vpack.c.b16 %v1251, %v1250
        %1268 = vmatprep.subr.bf16.mxu0 0
        %1269 = vmatpush1.bf16.msra.mxu0 %v1252
        %1270 = vmatprep.subr.bf16.mxu0 0
        %1271 = vmatpush1.bf16.msra.mxu0 %v1253
        %1272 = vmatprep.subr.bf16.mxu0 0
        %1273 = vmatpush1.bf16.msra.mxu0 %v1254
        %1274 = vmatprep.subr.bf16.mxu0 0
        %1275 = vmatpush1.bf16.msra.mxu0 %v1255
        %1276 = vmatprep.subr.bf16.mxu0 0
        %1277 = vmatpush1.bf16.msra.mxu0 %v1256
        %1278 = vmatprep.subr.bf16.mxu0 0
        %1279 = vmatpush1.bf16.msra.mxu0 %v1257
        %1280 = vmatprep.subr.bf16.mxu0 0
        %1281 = vmatpush1.bf16.msra.mxu0 %v1258
        %1282 = vmatprep.subr.bf16.mxu0 0
        %1283 = vmatpush1.bf16.msra.mxu0 %v1259
        %1284 = vmatprep.subr.bf16.mxu0 0
        %1285 = vmatpush1.bf16.msra.mxu0 0
        %1286 = vmatprep.subr.bf16.mxu0 0
        %1287 = vmatpush1.bf16.msra.mxu0 0
        %1288 = vmatprep.subr.bf16.mxu0 0
        %1289 = vmatpush1.bf16.msra.mxu0 0
        %1290 = vmatprep.subr.bf16.mxu0 0
        %1291 = vmatpush1.bf16.msra.mxu0 0
        %1292 = vmatprep.subr.bf16.mxu0 0
        %1293 = vmatpush1.bf16.msra.mxu0 0
        %1294 = vmatprep.subr.bf16.mxu0 0
        %1295 = vmatpush1.bf16.msra.mxu0 0
        %1296 = vmatprep.subr.bf16.mxu0 0
        %1297 = vmatpush1.bf16.msra.mxu0 0
        %1298 = vmatprep.subr.bf16.mxu0 0
        %1299 = vmatpush1.bf16.msra.mxu0 0
        %1300 = vmatprep.mubr.bf16.mxu0 0
        %1301 = vmatmul.mubr.bf16.gmra.mrb[0].mxu0 %v1203
        %v1302 = vpop.f32.mrb[0].mxu0
        %v1303 = vadd.f32 0.0, %v1302
        %v1304 = vpop.f32.mrb[0].mxu0
        %v1305 = vpop.f32.mrb[0].mxu0
        %v1306 = vadd.f32 0.0, %v1305
        %v1307 = vpop.f32.mrb[0].mxu0
        %1308 = vdwg.mxu0
        %v1325 = vunpack.c.l.b16 %v1187
        %v1326 = vunpack.c.l.b16 %v1188
        %v1327 = vunpack.c.l.b16 %v1189
        %v1328 = vunpack.c.l.b16 %v1190
        %v1329 = vunpack.c.l.b16 %v1191
        %v1330 = vunpack.c.l.b16 %v1192
        %v1331 = vunpack.c.l.b16 %v1193
        %v1332 = vunpack.c.l.b16 %v1194
        %v1333 = vunpack.c.l.b16 %v1195
        %v1334 = vunpack.c.l.b16 %v1196
        %v1335 = vunpack.c.l.b16 %v1197
        %v1336 = vunpack.c.l.b16 %v1198
        %v1337 = vunpack.c.l.b16 %v1199
        %v1338 = vunpack.c.l.b16 %v1200
        %v1339 = vunpack.c.l.b16 %v1201
        %v1340 = vunpack.c.l.b16 %v1202
        %v1341 = vpack.c.b16 %v1326, %v1325
        %v1342 = vpack.c.b16 %v1328, %v1327
        %v1343 = vpack.c.b16 %v1330, %v1329
        %v1344 = vpack.c.b16 %v1332, %v1331
        %v1345 = vpack.c.b16 %v1334, %v1333
        %v1346 = vpack.c.b16 %v1336, %v1335
        %v1347 = vpack.c.b16 %v1338, %v1337
        %v1348 = vpack.c.b16 %v1340, %v1339
        %1357 = vmatprep.subr.bf16.mxu0 0
        %1358 = vmatpush1.bf16.msra.mxu0 %v1341
        %1359 = vmatprep.subr.bf16.mxu0 0
        %1360 = vmatpush1.bf16.msra.mxu0 %v1342
        %1361 = vmatprep.subr.bf16.mxu0 0
        %1362 = vmatpush1.bf16.msra.mxu0 %v1343
        %1363 = vmatprep.subr.bf16.mxu0 0
        %1364 = vmatpush1.bf16.msra.mxu0 %v1344
        %1365 = vmatprep.subr.bf16.mxu0 0
        %1366 = vmatpush1.bf16.msra.mxu0 %v1345
        %1367 = vmatprep.subr.bf16.mxu0 0
        %1368 = vmatpush1.bf16.msra.mxu0 %v1346
        %1369 = vmatprep.subr.bf16.mxu0 0
        %1370 = vmatpush1.bf16.msra.mxu0 %v1347
        %1371 = vmatprep.subr.bf16.mxu0 0
        %1372 = vmatpush1.bf16.msra.mxu0 %v1348
        %1373 = vmatprep.subr.bf16.mxu0 0
        %1374 = vmatpush1.bf16.msra.mxu0 0
        %1375 = vmatprep.subr.bf16.mxu0 0
        %1376 = vmatpush1.bf16.msra.mxu0 0
        %1377 = vmatprep.subr.bf16.mxu0 0
        %1378 = vmatpush1.bf16.msra.mxu0 0
        %1379 = vmatprep.subr.bf16.mxu0 0
        %1380 = vmatpush1.bf16.msra.mxu0 0
        %1381 = vmatprep.subr.bf16.mxu0 0
        %1382 = vmatpush1.bf16.msra.mxu0 0
        %1383 = vmatprep.subr.bf16.mxu0 0
        %1384 = vmatpush1.bf16.msra.mxu0 0
        %1385 = vmatprep.subr.bf16.mxu0 0
        %1386 = vmatpush1.bf16.msra.mxu0 0
        %1387 = vmatprep.subr.bf16.mxu0 0
        %1388 = vmatpush1.bf16.msra.mxu0 0
        %1389 = vmatprep.mubr.bf16.mxu0 0
        %1390 = vmatmul.mubr.bf16.gmra.mrb[0].mxu0 %v1186
        %v1391 = vpop.f32.mrb[0].mxu0
        %v1392 = vadd.f32 %v1303, %v1391
        %v1393 = vpop.f32.mrb[0].mxu0
        %v1394 = vpop.f32.mrb[0].mxu0
        %v1395 = vadd.f32 %v1306, %v1394
        %v1396 = vpop.f32.mrb[0].mxu0
        %1397 = vdwg.mxu0
        %v1398 = vld [vmem:[%s6] sm:$0x1]
        %v1400 = vlaneseq
        %v1401 = vshrl.u32 %v1400, 7
        %v1402 = vsub.s32 0, %v1401
        %v1403 = vrot.slane %v1398, %v1402
        %v1405 = vadd.f32 %v1392, %v1403
        %v1406 = vadd.f32 %v1395, %v1403
        %v1407 = vmax.f32 %v1405, 0.0
        %v1408 = vmax.f32 %v1406, 0.0
        %v1409 = vsub.f32 %v882, %v497
        %v1410 = vsub.f32 %v887, %v498
        %v1411 = vsub.f32 %v963, %v499
        %v1412 = vsub.f32 %v968, %v500
        %v1413 = vmul.f32 %v882, %v497
        %v1414 = vmul.f32 %v887, %v498
        %v1415 = vmul.f32 %v963, %v499
        %v1416 = vmul.f32 %v968, %v500
        %v1417 = vpack.c.bf16 %v1410, %v1409
        %v1418 = vpack.c.bf16 %v1412, %v1411
        %v1419 = vld [vmem:[#allocation4] sm:$0xf]
        %v1420 = vld [vmem:[#allocation4 + $0x4] sm:$0xf]
        %v1421 = vld [vmem:[#allocation4 + $0x8] sm:$0xf]
        %v1422 = vld [vmem:[#allocation4 + $0xc] sm:$0xf]
        %v1423 = vld [vmem:[#allocation4 + $0x10] sm:$0xf]
        %v1424 = vld [vmem:[#allocation4 + $0x14] sm:$0xf]
        %v1425 = vld [vmem:[#allocation4 + $0x18] sm:$0xf]
        %v1426 = vld [vmem:[#allocation4 + $0x1c] sm:$0xf]
        %v1427 = vld [vmem:[#allocation4 + $0x20] sm:$0xf]
        %v1428 = vld [vmem:[#allocation4 + $0x24] sm:$0xf]
        %v1429 = vld [vmem:[#allocation4 + $0x28] sm:$0xf]
        %v1430 = vld [vmem:[#allocation4 + $0x2c] sm:$0xf]
        %v1431 = vld [vmem:[#allocation4 + $0x30] sm:$0xf]
        %v1432 = vld [vmem:[#allocation4 + $0x34] sm:$0xf]
        %v1433 = vld [vmem:[#allocation4 + $0x38] sm:$0xf]
        %v1434 = vld [vmem:[#allocation4 + $0x3c] sm:$0xf]
        %v1435 = vpack.c.bf16 %v1414, %v1413
        %v1436 = vpack.c.bf16 %v1416, %v1415
        %v1437 = vld [vmem:[#allocation6] sm:$0xf]
        %v1438 = vld [vmem:[#allocation6 + $0x4] sm:$0xf]
        %v1439 = vld [vmem:[#allocation6 + $0x8] sm:$0xf]
        %v1440 = vld [vmem:[#allocation6 + $0xc] sm:$0xf]
        %v1441 = vld [vmem:[#allocation6 + $0x10] sm:$0xf]
        %v1442 = vld [vmem:[#allocation6 + $0x14] sm:$0xf]
        %v1443 = vld [vmem:[#allocation6 + $0x18] sm:$0xf]
        %v1444 = vld [vmem:[#allocation6 + $0x1c] sm:$0xf]
        %v1445 = vld [vmem:[#allocation6 + $0x20] sm:$0xf]
        %v1446 = vld [vmem:[#allocation6 + $0x24] sm:$0xf]
        %v1447 = vld [vmem:[#allocation6 + $0x28] sm:$0xf]
        %v1448 = vld [vmem:[#allocation6 + $0x2c] sm:$0xf]
        %v1449 = vld [vmem:[#allocation6 + $0x30] sm:$0xf]
        %v1450 = vld [vmem:[#allocation6 + $0x34] sm:$0xf]
        %v1451 = vld [vmem:[#allocation6 + $0x38] sm:$0xf]
        %v1452 = vld [vmem:[#allocation6 + $0x3c] sm:$0xf]
        %v1469 = vunpack.c.l.b16 %v1437
        %v1470 = vunpack.c.l.b16 %v1438
        %v1471 = vunpack.c.l.b16 %v1439
        %v1472 = vunpack.c.l.b16 %v1440
        %v1473 = vunpack.c.l.b16 %v1441
        %v1474 = vunpack.c.l.b16 %v1442
        %v1475 = vunpack.c.l.b16 %v1443
        %v1476 = vunpack.c.l.b16 %v1444
        %v1477 = vunpack.c.l.b16 %v1445
        %v1478 = vunpack.c.l.b16 %v1446
        %v1479 = vunpack.c.l.b16 %v1447
        %v1480 = vunpack.c.l.b16 %v1448
        %v1481 = vunpack.c.l.b16 %v1449
        %v1482 = vunpack.c.l.b16 %v1450
        %v1483 = vunpack.c.l.b16 %v1451
        %v1484 = vunpack.c.l.b16 %v1452
        %v1485 = vpack.c.b16 %v1470, %v1469
        %v1486 = vpack.c.b16 %v1472, %v1471
        %v1487 = vpack.c.b16 %v1474, %v1473
        %v1488 = vpack.c.b16 %v1476, %v1475
        %v1489 = vpack.c.b16 %v1478, %v1477
        %v1490 = vpack.c.b16 %v1480, %v1479
        %v1491 = vpack.c.b16 %v1482, %v1481
        %v1492 = vpack.c.b16 %v1484, %v1483
        %1501 = vmatprep.subr.bf16.mxu0 0
        %1502 = vmatpush1.bf16.msra.mxu0 %v1485
        %1503 = vmatprep.subr.bf16.mxu0 0
        %1504 = vmatpush1.bf16.msra.mxu0 %v1486
        %1505 = vmatprep.subr.bf16.mxu0 0
        %1506 = vmatpush1.bf16.msra.mxu0 %v1487
        %1507 = vmatprep.subr.bf16.mxu0 0
        %1508 = vmatpush1.bf16.msra.mxu0 %v1488
        %1509 = vmatprep.subr.bf16.mxu0 0
        %1510 = vmatpush1.bf16.msra.mxu0 %v1489
        %1511 = vmatprep.subr.bf16.mxu0 0
        %1512 = vmatpush1.bf16.msra.mxu0 %v1490
        %1513 = vmatprep.subr.bf16.mxu0 0
        %1514 = vmatpush1.bf16.msra.mxu0 %v1491
        %1515 = vmatprep.subr.bf16.mxu0 0
        %1516 = vmatpush1.bf16.msra.mxu0 %v1492
        %1517 = vmatprep.subr.bf16.mxu0 0
        %1518 = vmatpush1.bf16.msra.mxu0 0
        %1519 = vmatprep.subr.bf16.mxu0 0
        %1520 = vmatpush1.bf16.msra.mxu0 0
        %1521 = vmatprep.subr.bf16.mxu0 0
        %1522 = vmatpush1.bf16.msra.mxu0 0
        %1523 = vmatprep.subr.bf16.mxu0 0
        %1524 = vmatpush1.bf16.msra.mxu0 0
        %1525 = vmatprep.subr.bf16.mxu0 0
        %1526 = vmatpush1.bf16.msra.mxu0 0
        %1527 = vmatprep.subr.bf16.mxu0 0
        %1528 = vmatpush1.bf16.msra.mxu0 0
        %1529 = vmatprep.subr.bf16.mxu0 0
        %1530 = vmatpush1.bf16.msra.mxu0 0
        %1531 = vmatprep.subr.bf16.mxu0 0
        %1532 = vmatpush1.bf16.msra.mxu0 0
        %1533 = vmatprep.mubr.bf16.mxu0 0
        %1534 = vmatmul.mubr.bf16.gmra.mrb[0].mxu0 %v1435
        %v1535 = vpop.f32.mrb[0].mxu0
        %v1536 = vadd.f32 0.0, %v1535
        %v1537 = vpop.f32.mrb[0].mxu0
        %v1538 = vpop.f32.mrb[0].mxu0
        %v1539 = vadd.f32 0.0, %v1538
        %v1540 = vpop.f32.mrb[0].mxu0
        %1541 = vmatprep.mubr.bf16.mxu0 0
        %1542 = vmatmul.mubr.bf16.gmra.mrb[0].mxu0 %v1436
        %v1543 = vpop.f32.mrb[0].mxu0
        %v1544 = vadd.f32 0.0, %v1543
        %v1545 = vpop.f32.mrb[0].mxu0
        %v1546 = vpop.f32.mrb[0].mxu0
        %v1547 = vadd.f32 0.0, %v1546
        %v1548 = vpop.f32.mrb[0].mxu0
        %1549 = vdwg.mxu0
        %v1566 = vunpack.c.l.b16 %v1419
        %v1567 = vunpack.c.l.b16 %v1420
        %v1568 = vunpack.c.l.b16 %v1421
        %v1569 = vunpack.c.l.b16 %v1422
        %v1570 = vunpack.c.l.b16 %v1423
        %v1571 = vunpack.c.l.b16 %v1424
        %v1572 = vunpack.c.l.b16 %v1425
        %v1573 = vunpack.c.l.b16 %v1426
        %v1574 = vunpack.c.l.b16 %v1427
        %v1575 = vunpack.c.l.b16 %v1428
        %v1576 = vunpack.c.l.b16 %v1429
        %v1577 = vunpack.c.l.b16 %v1430
        %v1578 = vunpack.c.l.b16 %v1431
        %v1579 = vunpack.c.l.b16 %v1432
        %v1580 = vunpack.c.l.b16 %v1433
        %v1581 = vunpack.c.l.b16 %v1434
        %v1582 = vpack.c.b16 %v1567, %v1566
        %v1583 = vpack.c.b16 %v1569, %v1568
        %v1584 = vpack.c.b16 %v1571, %v1570
        %v1585 = vpack.c.b16 %v1573, %v1572
        %v1586 = vpack.c.b16 %v1575, %v1574
        %v1587 = vpack.c.b16 %v1577, %v1576
        %v1588 = vpack.c.b16 %v1579, %v1578
        %v1589 = vpack.c.b16 %v1581, %v1580
        %1598 = vmatprep.subr.bf16.mxu0 0
        %1599 = vmatpush1.bf16.msra.mxu0 %v1582
        %1600 = vmatprep.subr.bf16.mxu0 0
        %1601 = vmatpush1.bf16.msra.mxu0 %v1583
        %1602 = vmatprep.subr.bf16.mxu0 0
        %1603 = vmatpush1.bf16.msra.mxu0 %v1584
        %1604 = vmatprep.subr.bf16.mxu0 0
        %1605 = vmatpush1.bf16.msra.mxu0 %v1585
        %1606 = vmatprep.subr.bf16.mxu0 0
        %1607 = vmatpush1.bf16.msra.mxu0 %v1586
        %1608 = vmatprep.subr.bf16.mxu0 0
        %1609 = vmatpush1.bf16.msra.mxu0 %v1587
        %1610 = vmatprep.subr.bf16.mxu0 0
        %1611 = vmatpush1.bf16.msra.mxu0 %v1588
        %1612 = vmatprep.subr.bf16.mxu0 0
        %1613 = vmatpush1.bf16.msra.mxu0 %v1589
        %1614 = vmatprep.subr.bf16.mxu0 0
        %1615 = vmatpush1.bf16.msra.mxu0 0
        %1616 = vmatprep.subr.bf16.mxu0 0
        %1617 = vmatpush1.bf16.msra.mxu0 0
        %1618 = vmatprep.subr.bf16.mxu0 0
        %1619 = vmatpush1.bf16.msra.mxu0 0
        %1620 = vmatprep.subr.bf16.mxu0 0
        %1621 = vmatpush1.bf16.msra.mxu0 0
        %1622 = vmatprep.subr.bf16.mxu0 0
        %1623 = vmatpush1.bf16.msra.mxu0 0
        %1624 = vmatprep.subr.bf16.mxu0 0
        %1625 = vmatpush1.bf16.msra.mxu0 0
        %1626 = vmatprep.subr.bf16.mxu0 0
        %1627 = vmatpush1.bf16.msra.mxu0 0
        %1628 = vmatprep.subr.bf16.mxu0 0
        %1629 = vmatpush1.bf16.msra.mxu0 0
        %1630 = vmatprep.mubr.bf16.mxu0 0
        %1631 = vmatmul.mubr.bf16.gmra.mrb[0].mxu0 %v1417
        %v1632 = vpop.f32.mrb[0].mxu0
        %v1633 = vadd.f32 %v1536, %v1632
        %v1634 = vpop.f32.mrb[0].mxu0
        %v1635 = vpop.f32.mrb[0].mxu0
        %v1636 = vadd.f32 %v1539, %v1635
        %v1637 = vpop.f32.mrb[0].mxu0
        %1638 = vmatprep.mubr.bf16.mxu0 0
        %1639 = vmatmul.mubr.bf16.gmra.mrb[0].mxu0 %v1418
        %v1640 = vpop.f32.mrb[0].mxu0
        %v1641 = vadd.f32 %v1544, %v1640
        %v1642 = vpop.f32.mrb[0].mxu0
        %v1643 = vpop.f32.mrb[0].mxu0
        %v1644 = vadd.f32 %v1547, %v1643
        %v1645 = vpop.f32.mrb[0].mxu0
        %1646 = vdwg.mxu0
        %v1647 = vld [vmem:[#allocation7] sm:$0x1]
        %v1649 = vlaneseq
        %v1650 = vshrl.u32 %v1649, 7
        %v1651 = vsub.s32 0, %v1650
        %v1652 = vrot.slane %v1647, %v1651
        %v1654 = vadd.f32 %v1633, %v1652
        %v1655 = vadd.f32 %v1636, %v1652
        %v1656 = vadd.f32 %v1641, %v1652
        %v1657 = vadd.f32 %v1644, %v1652
        %v1658 = vmax.f32 %v1654, 0.0
        %v1659 = vmax.f32 %v1655, 0.0
        %v1660 = vmax.f32 %v1656, 0.0
        %v1661 = vmax.f32 %v1657, 0.0
        %v1662 = vmax.f32 %v1658, %v1659
        %v1663 = vrot.slane %v1662, 4
        %v1664 = vmax.f32 %v1662, %v1663
        %v1665 = vrot.slane %v1664, 2
        %v1666 = vmax.f32 %v1664, %v1665
        %v1667 = vrot.slane %v1666, 1
        %v1668 = vmax.f32 %v1666, %v1667
        %v1669 = vmax.f32 %v1660, %v1661
        %v1670 = vrot.slane %v1669, 4
        %v1671 = vmax.f32 %v1669, %v1670
        %v1672 = vrot.slane %v1671, 2
        %v1673 = vmax.f32 %v1671, %v1672
        %v1674 = vrot.slane %v1673, 1
        %v1675 = vmax.f32 %v1673, %v1674
        %v1676 = vrot.slane %v1407, 4
        %v1677 = vmax.f32 %v1407, %v1676
        %v1678 = vrot.slane %v1677, 2
        %v1679 = vmax.f32 %v1677, %v1678
        %v1680 = vrot.slane %v1679, 1
        %v1681 = vmax.f32 %v1679, %v1680
        %v1682 = vrot.slane %v1408, 4
        %v1683 = vmax.f32 %v1408, %v1682
        %v1684 = vrot.slane %v1683, 2
        %v1685 = vmax.f32 %v1683, %v1684
        %v1686 = vrot.slane %v1685, 1
        %v1687 = vmax.f32 %v1685, %v1686
        %v1688 = vld [vmem:[#allocation9] sm:$0x1]
        %v1690 = vlaneseq
        %v1691 = vshrl.u32 %v1690, 7
        %v1692 = vsub.s32 0, %v1691
        %v1693 = vrot.slane %v1688, %v1692
        %v1695 = vmul.f32 %v1668, %v1693
        %v1696 = vmul.f32 %v1675, %v1693
        %v1699 = vrot.slane %v1696, 7
        %vm1700 = vcmask 1041409
        %v1701 = vsel %vm1700, %v1699, %v1695
        %vm1703 = vcmask 1041408
        %v1704 = vsel %vm1703, %v1701, 0.0
        %1705 = vadd.xlane.f32.xlu0 %v1704
        %v1706 = vpop.xlane.xlu0 %1705
        %v1707 = vld [vmem:[#allocation10] sm:$0x1]
        %v1709 = vlaneseq
        %v1710 = vshrl.u32 %v1709, 7
        %v1711 = vsub.s32 0, %v1710
        %v1712 = vrot.slane %v1707, %v1711
        %v1714 = vmul.f32 %v1681, %v1712
        %v1715 = vmul.f32 %v1687, %v1712
        %v1718 = vrot.slane %v1715, 7
        %v1719 = vsel %vm1700, %v1718, %v1714
        %v1721 = vsel %vm1703, %v1719, 0.0
        %1722 = vadd.xlane.f32.xlu0 %v1721
        %v1723 = vpop.xlane.xlu0 %1722
        %v1724 = vadd.f32 %v1706, %v1723
        %vm1725 = vcmask 1024
        %1726 = vst.msk [vmem:[%s493] sm:$0x3] %vm1725, %v1724
        %p1727 = scmp.lt.s32.totalorder %s27, 3
        %s1728 = scalar_select %p1727, %s27, 3
        %s1729 = smul.addr %s1728, 2
        %s1730 = scalar_lea.vmem %s12, %s1729
        // Predicated region
        $region93: #{dcmn_forward.3} parent=67 // pred_check
          %p1731 = pneg %p302
        $region94: #{dcmn_forward.3} parent=67 // pred_check_branch
          %1733 = sbr.rel (%p1731) target = $region96
        $region95: #{dcmn_forward.3} parent=67 // pred_region
          _
        $region96: #{dcmn_forward.3} parent=67 // pred_fallthru
          _
      $region68: #{dcmn_forward.3} parent=5 // pred_fallthru
        _
      %p1734 = scmp.le.s32.totalorder 2, %s22
      // Predicated region
      $region97: #{dcmn_forward.3} parent=5 // pred_check
        %p1735 = pneg %p1734
      $region98: #{dcmn_forward.3} parent=5 // pred_check_branch
        %1737 = sbr.rel (%p1735) target = $region100
      $region99: #{dcmn_forward.3} parent=5 // pred_region
        %s1738 = ssub.s32 %s22, 2
        // Predicated region
        $region101: #{dcmn_forward.3} parent=99 // pred_check
          %p1739 = pneg %p308
        $region102: #{dcmn_forward.3} parent=99 // pred_check_branch
          %1741 = sbr.rel (%p1739) target = $region104
        $region103: #{dcmn_forward.3} parent=99 // pred_region
          %p1742 = scmp.lt.s32.totalorder %s28, 3
          %s1743 = scalar_select %p1742, %s28, 3
          %s1744 = smul.addr %s1743, 2
          %s1745 = scalar_lea.vmem %s12, %s1744
        $region104: #{dcmn_forward.3} parent=99 // pred_fallthru
          _
      $region100: #{dcmn_forward.3} parent=5 // pred_fallthru
        _
    $region6: #{dcmn_forward.3} parent=1 // loop_footer
      %s26 = sadd.s32 1, %s22
    $region7: #{dcmn_forward.3} parent=1 // loop_footer_branch
      %21 = sbr.rel target = $region3
    $region8: #{dcmn_forward.3} parent=1 // loop_exit
      _
    %1746 = vsyncpa [#allocation3], 1
    %s1747 = scalar_lea.sflag [#allocation3], 1
    %1748 = vsyncpa %s1747, 1
    %1749 = vsyncpa [#allocation5], 1
    %1750 = vsyncpa [#allocation8], 1
    %1751 = vsyncpa [#allocation11], 1

</llo_original>
